<compile_context>
chip_gen: v6e
topology: v6e:2x2x1
jax: 0.10.0
libtpu: 0.0.40
codegen_flags: <defaults>
</compile_context>

<pallas_src>
import functools

import jax
import jax.numpy as jnp
from jax.experimental import pallas as pl
from jax.experimental.pallas import tpu as pltpu


# ----------------------------------------------------------------------------
# Fused kernel: stem + GAP + encoder.fc + predictor + l2-norm + head matmuls
# ----------------------------------------------------------------------------
def _coke_fused_kernel(img_ref, stem_w_ref, vecs_ref,
                       fc0_w, fc1_w, fc2_w, pr0_w, pr1_w,
                       *tail_refs,
                       B, HW, C, dim_mlp, dim, inv_T, eps, reuse_proj):
    if reuse_proj:
        prec_ref, duals_ref, xproj_ref, views_ref, gen_ref, stacked_ref = tail_refs
        genc_ref = None
    else:
        (prec_ref, genc_ref, duals_ref,
         xproj_ref, views_ref, gen_ref, stacked_ref) = tail_refs

    kt = pl.program_id(0)

    vecs = vecs_ref[...]                       # (14, maxw) f32, packed vectors

    def vrow(i, w):
        return vecs[i:i + 1, :w]               # (1, w) static slice

    def lin(a, w_r, b, g=None, bt=None, relu=False):
        # bf16 MXU matmul (weights pre-cast in wrapper), f32 accumulation.
        y = jnp.dot(a.astype(jnp.bfloat16), w_r[...],
                    preferred_element_type=jnp.float32) + b
        if g is not None:
            # PyTorch BatchNorm1d (train): full-batch biased stats, f32 math.
            mu = jnp.mean(y, axis=0, keepdims=True)
            var = jnp.mean(jnp.square(y - mu), axis=0, keepdims=True)
            y = (y - mu) * jax.lax.rsqrt(var + eps) * g + bt
        if relu:
            y = jnp.maximum(y, 0.0)
        return y

    def l2n(v):
        # F.normalize(dim=1, eps=1e-12); rsqrt lands on the EUP slot.
        ssq = jnp.maximum(jnp.sum(v * v, axis=-1, keepdims=True), 1e-24)
        return v * jax.lax.rsqrt(ssq)

    # The MLP result is carried across the Ktot grid axis in VMEM scratch.
    @pl.when(kt == 0)
    def _():
        # ---- synthetic stem: 1x1 conv, C small -> VPU broadcast MACs (no MXU) ----
        img = img_ref[...]                     # (B*HW, C) f32
        wst = stem_w_ref[...]                  # (C, dim_mlp) f32
        y = img[:, 0:1] * wst[0:1, :]
        for c in range(1, C):                  # static unroll over channels
            y = y + img[:, c:c + 1] * wst[c:c + 1, :]
        y = jnp.maximum(y + vrow(0, dim_mlp), 0.0)
        # global average pool: one reshape + sublane-axis sum (no per-batch dots)
        h = jnp.sum(y.reshape(B, HW, dim_mlp), axis=1) * (1.0 / HW)

        # ---- encoder.fc (Lin+BN+ReLU x2, Lin+BN) + predictor (Lin+BN+ReLU, Lin) ----
        a = lin(h, fc0_w, vrow(1, dim_mlp), vrow(2, dim_mlp), vrow(3, dim_mlp), relu=True)
        a = lin(a, fc1_w, vrow(4, dim_mlp), vrow(5, dim_mlp), vrow(6, dim_mlp), relu=True)
        x = lin(a, fc2_w, vrow(7, dim), vrow(8, dim), vrow(9, dim))          # encoder out
        p = lin(x, pr0_w, vrow(10, dim_mlp), vrow(11, dim_mlp), vrow(12, dim_mlp), relu=True)
        xp = lin(p, pr1_w, vrow(13, dim))                                    # predictor out

        x_pred = l2n(xp)
        x_proj = l2n(x)
        xproj_ref[...] = x_proj
        stacked_ref[...] = jnp.concatenate([x_pred, x_proj], axis=0).astype(jnp.bfloat16)

    # ---- per-Ktot-tile center scoring (bf16 MXU, f32 accumulation) ----
    stacked = stacked_ref[...]                                  # (2B, dim) bf16
    raw = jnp.dot(stacked, prec_ref[...], preferred_element_type=jnp.float32)
    views_ref[...] = raw * inv_T                                # [pred; proj] / T
    if reuse_proj:
        # epoch >= stage: gen_label centers == pre_centers; reuse raw proj scores.
        gen_ref[...] = raw[B:, :] + duals_ref[...]
    else:
        gen_ref[...] = jnp.dot(stacked[B:, :], genc_ref[...],
                               preferred_element_type=jnp.float32) + duals_ref[...]


_VEC_ORDER = ('stem_b',
              'fc0_b', 'fc0_g', 'fc0_beta',
              'fc1_b', 'fc1_g', 'fc1_beta',
              'fc2_b', 'fc2_g', 'fc2_beta',
              'pred0_b', 'pred0_g', 'pred0_beta',
              'pred1_b')


def coke_fused_forward(img_bhwc, params, pre_centers_all, gen_centers_all,
                       duals_all, *, T, reuse_proj):
    B, H, W, C = img_bhwc.shape
    HW = H * W
    dim_mlp = params['fc0_w'].shape[0]
    dim = params['fc2_w'].shape[1]
    Ktot = pre_centers_all.shape[1]

    # image as one (B*HW, C) row-major slab; channels handled as VPU MACs in-kernel
    img = img_bhwc.reshape(B * HW, C)

    # pack all per-layer 1-D bias/gamma/beta vectors into ONE (14, maxw) input
    maxw = max(dim_mlp, dim)

    def row(v):
        v = v.reshape(1, -1)
        if v.shape[1] < maxw:
            v = jnp.pad(v, ((0, 0), (0, maxw - v.shape[1])))
        return v

    vecs = jnp.concatenate([row(params[k]) for k in _VEC_ORDER], axis=0)

    # pre-cast heavy matmul operands to bf16 (half the DMA bytes / VMEM)
    bf = lambda a: a.astype(jnp.bfloat16)
    w_list = [bf(params['fc0_w']), bf(params['fc1_w']), bf(params['fc2_w']),
              bf(params['pred0_w']), bf(params['pred1_w'])]
    prec = bf(pre_centers_all)

    # Ktot tiling: single block for small Ktot; lane tiles for large Ktot so the
    # center DMAs pipeline against compute (and VMEM stays bounded, e.g. on v7x).
    tk = Ktot
    if Ktot > 2048:
        for cand in (1024, 512, 256, 128):
            if Ktot % cand == 0:
                tk = cand
                break
    nk = Ktot // tk

    inputs = [img, params['stem_w'], vecs] + w_list + [prec]
    if not reuse_proj:
        inputs.append(bf(gen_centers_all))
    inputs.append(duals_all.reshape(1, -1))

    def full(a):
        return pl.BlockSpec(a.shape, lambda k, _n=a.ndim: (0,) * _n)

    in_specs = [full(img), full(params['stem_w']), full(vecs)]
    in_specs += [full(w) for w in w_list]
    in_specs.append(pl.BlockSpec((dim, tk), lambda k: (0, k)))      # pre_centers
    if not reuse_proj:
        in_specs.append(pl.BlockSpec((dim, tk), lambda k: (0, k)))  # gen centers
    in_specs.append(pl.BlockSpec((1, tk), lambda k: (0, k)))        # duals

    out_shapes = (
        jax.ShapeDtypeStruct((B, dim), jnp.float32),        # x_proj (feats)
        jax.ShapeDtypeStruct((2 * B, Ktot), jnp.float32),   # [pred; proj] scores / T
        jax.ShapeDtypeStruct((B, Ktot), jnp.float32),       # gen-label scores + duals
    )
    out_specs = (
        pl.BlockSpec((B, dim), lambda k: (0, 0)),
        pl.BlockSpec((2 * B, tk), lambda k: (0, k)),
        pl.BlockSpec((B, tk), lambda k: (0, k)),
    )

    kern = functools.partial(
        _coke_fused_kernel, B=B, HW=HW, C=C, dim_mlp=dim_mlp, dim=dim,
        inv_T=1.0 / T, eps=1e-5, reuse_proj=reuse_proj)

    return pl.pallas_call(
        kern,
        out_shape=out_shapes,
        grid=(nk,),
        in_specs=in_specs,
        out_specs=out_specs,
        scratch_shapes=[pltpu.VMEM((2 * B, dim), jnp.bfloat16)],
        compiler_params=pltpu.CompilerParams(
            # The Ktot axis carries the MLP result in scratch -> "arbitrary".
            # TODO(synk): a "parallel" Ktot split (v7x 2nd TensorCore) would need
            #             per-core MLP recompute since scratch is per-core.
            dimension_semantics=("arbitrary",),
            vmem_limit_bytes=32 * 1024 * 1024),
    )(*inputs)


# ----------------------------------------------------------------------------
# Parameter / buffer initialization (deterministic, synthetic)
# ----------------------------------------------------------------------------
def init_params(key, c_in, dim_mlp, dim):
    ks = jax.random.split(key, 8)

    def lin(k, a, b):
        return 0.02 * jax.random.normal(k, (a, b), jnp.float32), jnp.zeros((b,), jnp.float32)

    p = {}
    p['stem_w'], p['stem_b'] = lin(ks[0], c_in, dim_mlp)
    # encoder.fc = Lin+BN+ReLU, Lin+BN+ReLU, Lin(dim_mlp->dim)+BN
    for idx, (a, b) in enumerate([(dim_mlp, dim_mlp), (dim_mlp, dim_mlp), (dim_mlp, dim)]):
        w, bb = lin(ks[1 + idx], a, b)
        p[f'fc{idx}_w'], p[f'fc{idx}_b'] = w, bb
        p[f'fc{idx}_g'] = jnp.ones((b,), jnp.float32)
        p[f'fc{idx}_beta'] = jnp.zeros((b,), jnp.float32)
    # predictor = Lin(dim->dim_mlp)+BN+ReLU, Lin(dim_mlp->dim)
    p['pred0_w'], p['pred0_b'] = lin(ks[4], dim, dim_mlp)
    p['pred0_g'] = jnp.ones((dim_mlp,), jnp.float32)
    p['pred0_beta'] = jnp.zeros((dim_mlp,), jnp.float32)
    p['pred1_w'], p['pred1_b'] = lin(ks[5], dim_mlp, dim)
    return p


def init_state(key, dim, K_list, num_head, num_ins, ls):
    keys = jax.random.split(key, num_head)
    st = {'pre_centers': [], 'cur_centers': [], 'duals': [], 'counters': []}
    for i, K in enumerate(K_list):
        c = jax.random.normal(keys[i], (dim, K), jnp.float32)
        c = c / jnp.maximum(jnp.sqrt(jnp.sum(c * c, axis=0, keepdims=True)), 1e-12)
        st['pre_centers'].append(c)
        st['cur_centers'].append(c)            # clone of the same init
        st['duals'].append(jnp.zeros((K,), jnp.float32))
        st['counters'].append(jnp.zeros((K,), jnp.float32))
    st['assign_labels'] = jnp.ones((num_head, num_ins, ls), jnp.int32)
    st['label_val'] = jnp.zeros((num_head, num_ins, ls), jnp.float32)
    st['label_idx'] = jnp.zeros((num_head, num_ins), jnp.int32)
    return st


# ----------------------------------------------------------------------------
# CoKe forward
# ----------------------------------------------------------------------------
def coke_forward(params, state, img_nhwc, target, epoch, *, cfg):
    T = cfg['T']
    K_list = cfg['K']
    num_head = cfg['num_head']
    stage = cfg['stage']
    dual_lr = cfg['dual_lr']
    ratio = cfg['ratio']
    lb = cfg['lb']

    # ---- concatenated centers / duals: one lane-dense matmul for all heads ----
    pre_all = jnp.concatenate(state['pre_centers'], axis=1)      # (dim, Ktot)
    duals_all = jnp.concatenate(state['duals'], axis=0)          # (Ktot,)
    reuse_proj = epoch >= stage                                  # static python branch
    gen_all = None if reuse_proj else jnp.concatenate(state['cur_centers'], axis=1)

    # ---- fully fused: stem+GAP + encoder.fc + predictor + l2-norm + head matmuls ----
    x_proj, views, gen_scores = coke_fused_forward(
        img_nhwc, params, pre_all, gen_all, duals_all, T=T, reuse_proj=reuse_proj)

    B = x_proj.shape[0]
    offs = [0]
    for K in K_list:
        offs.append(offs[-1] + K)

    pred_view = [views[:B, offs[i]:offs[i + 1]] for i in range(num_head)]
    proj_view = [views[B:, offs[i]:offs[i + 1]] for i in range(num_head)]

    # ---- no-grad bookkeeping (single device => concat_all_gather is identity) ----
    targets = target
    feats = jax.lax.stop_gradient(x_proj)
    gen_scores = jax.lax.stop_gradient(gen_scores)

    new_state = {
        'pre_centers': list(state['pre_centers']),
        'cur_centers': list(state['cur_centers']),
        'duals': list(state['duals']),
        'counters': list(state['counters']),
        'assign_labels': state['assign_labels'],
        'label_val': state['label_val'],
        'label_idx': state['label_idx'],
    }

    # gen_label for every head uses pre-update centers/duals of its own head, so
    # all labels come from the single fused scoring matmul above.
    gen_labels = [jnp.argmax(gen_scores[:, offs[j]:offs[j + 1]], axis=1).astype(jnp.int32)
                  for j in range(num_head)]

    def update_label(j, labels):
        # epoch < stage (or ls == 1) path
        # TODO(synk): label-smoothing update path for epoch >= stage not implemented.
        new_state['assign_labels'] = new_state['assign_labels'].at[j, targets, 0].set(labels)

    def get_label(j):
        # epoch <= stage (or ls == 1) path
        # TODO(synk): soft-label path (epoch > stage, per-row index_add + softmax) not implemented.
        return new_state['assign_labels'][j, target, 0]

    def update_center_mini_batch(j, labels):
        K = K_list[j]
        n = labels.shape[0]
        counts = jnp.zeros((K,), jnp.float32).at[labels].add(1.0)
        dual = new_state['duals'][j] - (dual_lr / n) * counts + dual_lr * lb[j]
        if ratio < 1:
            dual = jnp.maximum(dual, 0.0)
        old_counter = new_state['counters'][j]
        new_counter = old_counter + counts
        present = counts > 0
        denom = jnp.where(new_counter > 0, new_counter, 1.0)
        alpha = jnp.where(present, old_counter / denom, 1.0)
        center = new_state['cur_centers'][j] * alpha[None, :]
        # index_add_ with the post-update counter (matches PyTorch, which updates
        # counters[branch] before scaling feats by 1/counters[labels]).
        add = jnp.zeros((K, feats.shape[1]), jnp.float32).at[labels].add(
            feats / new_counter[labels][:, None])
        center = center + add.T
        if epoch < stage:
            norm = jnp.sqrt(jnp.sum(center * center, axis=0, keepdims=True))
            normalized = center / jnp.maximum(norm, 1e-12)
            center = jnp.where(present[None, :], normalized, center)
        new_state['duals'][j] = dual
        new_state['counters'][j] = new_counter
        new_state['cur_centers'][j] = center

    cur_labels = []
    if epoch == 0:
        for j in range(num_head):
            labels = gen_labels[j]
            update_label(j, labels)
            update_center_mini_batch(j, labels)
            cur_labels.append(get_label(j))
    else:
        for j in range(num_head):
            cur_labels.append(get_label(j))
            labels = gen_labels[j]
            update_center_mini_batch(j, labels)
            update_label(j, labels)

    return (pred_view, proj_view, cur_labels), new_state


# ----------------------------------------------------------------------------
# Main
# ----------------------------------------------------------------------------
if __name__ == "__main__":
    key = jax.random.PRNGKey(0)
    k_img, k_tgt, k_par, k_cen = jax.random.split(key, 4)

    B, C, H, W = 8, 3, 8, 8
    dim_mlp, dim = 128, 128
    K_list = (128, 256, 512)
    num_head, num_ins, ls = 3, 64, 5
    cfg = dict(T=0.1, dual_lr=20.0, stage=801, t=0.5, ratio=0.4, ls=ls,
               K=K_list, num_head=num_head, lb=tuple(0.4 / k for k in K_list))

    img_nchw = jax.random.normal(k_img, (B, C, H, W), jnp.float32)
    img_nhwc = jnp.transpose(img_nchw, (0, 2, 3, 1))  # layout: NCHW -> NHWC
    target = jax.random.permutation(k_tgt, num_ins)[:B].astype(jnp.int32)

    params = init_params(k_par, C, dim_mlp, dim)
    state = init_state(k_cen, dim, K_list, num_head, num_ins, ls)

    (pred_view, proj_view, cur_labels), new_state = coke_forward(
        params, state, img_nhwc, target, epoch=0, cfg=cfg)

    jax.block_until_ready((pred_view, proj_view, cur_labels, new_state))
    print("KERNEL_OK")
</pallas_src>

<mosaic_0001>
module attributes {stable_mosaic.version = 11 : i64} {
  func.func @_coke_fused_kernel(%arg0: i32, %arg1: memref<512x3xf32, #tpu.memory_space<vmem>>, %arg2: memref<3x128xf32, #tpu.memory_space<vmem>>, %arg3: memref<14x128xf32, #tpu.memory_space<vmem>>, %arg4: memref<128x128xbf16, #tpu.memory_space<vmem>>, %arg5: memref<128x128xbf16, #tpu.memory_space<vmem>>, %arg6: memref<128x128xbf16, #tpu.memory_space<vmem>>, %arg7: memref<128x128xbf16, #tpu.memory_space<vmem>>, %arg8: memref<128x128xbf16, #tpu.memory_space<vmem>>, %arg9: memref<128x896xbf16, #tpu.memory_space<vmem>>, %arg10: memref<128x896xbf16, #tpu.memory_space<vmem>>, %arg11: memref<1x896xf32, #tpu.memory_space<vmem>>, %arg12: memref<8x128xf32, #tpu.memory_space<vmem>>, %arg13: memref<16x896xf32, #tpu.memory_space<vmem>>, %arg14: memref<8x896xf32, #tpu.memory_space<vmem>>, %arg15: memref<16x128xbf16, #tpu.memory_space<vmem>>) attributes {dimension_semantics = [#tpu.dimension_semantics<arbitrary>], iteration_bounds = array<i64: 1>, scalar_prefetch = 0 : i64, scratch_operands = 1 : i64, tpu.core_type = #tpu.core_type<tc>, window_params = [{pipeline_mode = #tpu.pipeline_mode<synchronous>, transform_indices = @transform_0, window_bounds = array<i64: 512, 3>}, {pipeline_mode = #tpu.pipeline_mode<synchronous>, transform_indices = @transform_1, window_bounds = array<i64: 3, 128>}, {pipeline_mode = #tpu.pipeline_mode<synchronous>, transform_indices = @transform_2, window_bounds = array<i64: 14, 128>}, {pipeline_mode = #tpu.pipeline_mode<synchronous>, transform_indices = @transform_3, window_bounds = array<i64: 128, 128>}, {pipeline_mode = #tpu.pipeline_mode<synchronous>, transform_indices = @transform_4, window_bounds = array<i64: 128, 128>}, {pipeline_mode = #tpu.pipeline_mode<synchronous>, transform_indices = @transform_5, window_bounds = array<i64: 128, 128>}, {pipeline_mode = #tpu.pipeline_mode<synchronous>, transform_indices = @transform_6, window_bounds = array<i64: 128, 128>}, {pipeline_mode = #tpu.pipeline_mode<synchronous>, transform_indices = @transform_7, window_bounds = array<i64: 128, 128>}, {transform_indices = @transform_8, window_bounds = array<i64: 128, 896>}, {transform_indices = @transform_9, window_bounds = array<i64: 128, 896>}, {transform_indices = @transform_10, window_bounds = array<i64: 1, 896>}, {pipeline_mode = #tpu.pipeline_mode<synchronous>, transform_indices = @transform_11, window_bounds = array<i64: 8, 128>}, {transform_indices = @transform_12, window_bounds = array<i64: 16, 896>}, {transform_indices = @transform_13, window_bounds = array<i64: 8, 896>}]} {
    %c0 = arith.constant 0 : index
    %c0_0 = arith.constant 0 : index
    %0 = vector.load %arg3[%c0, %c0_0] : memref<14x128xf32, #tpu.memory_space<vmem>>, vector<14x128xf32>
    %c0_i32 = arith.constant 0 : i32
    %1 = arith.cmpi eq, %arg0, %c0_i32 : i32
    %2 = arith.extui %1 : i1 to i32
    %c0_i32_1 = arith.constant 0 : i32
    %3 = arith.cmpi ne, %2, %c0_i32_1 : i32
    scf.if %3 {
      %c0_16 = arith.constant 0 : index
      %c0_17 = arith.constant 0 : index
      %17 = vector.load %arg1[%c0_16, %c0_17] : memref<512x3xf32, #tpu.memory_space<vmem>>, vector<512x3xf32>
      %c0_18 = arith.constant 0 : index
      %c0_19 = arith.constant 0 : index
      %18 = vector.load %arg2[%c0_18, %c0_19] : memref<3x128xf32, #tpu.memory_space<vmem>>, vector<3x128xf32>
      %19 = vector.extract_strided_slice %17 {offsets = [0, 0], sizes = [512, 1], strides = [1, 1]} : vector<512x3xf32> to vector<512x1xf32>
      %20 = vector.extract_strided_slice %18 {offsets = [0, 0], sizes = [1, 128], strides = [1, 1]} : vector<3x128xf32> to vector<1x128xf32>
      %21 = vector.broadcast %19 : vector<512x1xf32> to vector<512x128xf32>
      %22 = vector.broadcast %20 : vector<1x128xf32> to vector<512x128xf32>
      %23 = arith.mulf %21, %22 : vector<512x128xf32>
      %24 = vector.extract_strided_slice %17 {offsets = [0, 1], sizes = [512, 1], strides = [1, 1]} : vector<512x3xf32> to vector<512x1xf32>
      %25 = vector.extract_strided_slice %18 {offsets = [1, 0], sizes = [1, 128], strides = [1, 1]} : vector<3x128xf32> to vector<1x128xf32>
      %26 = vector.broadcast %24 : vector<512x1xf32> to vector<512x128xf32>
      %27 = vector.broadcast %25 : vector<1x128xf32> to vector<512x128xf32>
      %28 = arith.mulf %26, %27 : vector<512x128xf32>
      %29 = arith.addf %23, %28 : vector<512x128xf32>
      %30 = vector.extract_strided_slice %17 {offsets = [0, 2], sizes = [512, 1], strides = [1, 1]} : vector<512x3xf32> to vector<512x1xf32>
      %31 = vector.extract_strided_slice %18 {offsets = [2, 0], sizes = [1, 128], strides = [1, 1]} : vector<3x128xf32> to vector<1x128xf32>
      %32 = vector.broadcast %30 : vector<512x1xf32> to vector<512x128xf32>
      %33 = vector.broadcast %31 : vector<1x128xf32> to vector<512x128xf32>
      %34 = arith.mulf %32, %33 : vector<512x128xf32>
      %35 = arith.addf %29, %34 : vector<512x128xf32>
      %36 = vector.extract_strided_slice %0 {offsets = [0, 0], sizes = [1, 128], strides = [1, 1]} : vector<14x128xf32> to vector<1x128xf32>
      %37 = vector.broadcast %36 : vector<1x128xf32> to vector<512x128xf32>
      %38 = arith.addf %35, %37 : vector<512x128xf32>
      %cst_20 = arith.constant 0.000000e+00 : f32
      %39 = vector.broadcast %cst_20 : f32 to vector<512x128xf32>
      %40 = arith.maximumf %38, %39 : vector<512x128xf32>
      %41 = vector.shape_cast %40 : vector<512x128xf32> to vector<8x64x128xf32>
      %cst_21 = arith.constant dense<0.000000e+00> : vector<8x128xf32>
      %42 = vector.multi_reduction <add>, %41, %cst_21 [1] : vector<8x64x128xf32> to vector<8x128xf32>
      %cst_22 = arith.constant 1.562500e-02 : f32
      %43 = vector.broadcast %cst_22 : f32 to vector<8x128xf32>
      %44 = arith.mulf %42, %43 : vector<8x128xf32>
      %45 = vector.extract_strided_slice %0 {offsets = [1, 0], sizes = [1, 128], strides = [1, 1]} : vector<14x128xf32> to vector<1x128xf32>
      %46 = vector.extract_strided_slice %0 {offsets = [2, 0], sizes = [1, 128], strides = [1, 1]} : vector<14x128xf32> to vector<1x128xf32>
      %47 = vector.extract_strided_slice %0 {offsets = [3, 0], sizes = [1, 128], strides = [1, 1]} : vector<14x128xf32> to vector<1x128xf32>
      %48 = arith.truncf %44 : vector<8x128xf32> to vector<8x128xbf16>
      %c0_23 = arith.constant 0 : index
      %c0_24 = arith.constant 0 : index
      %49 = vector.load %arg4[%c0_23, %c0_24] : memref<128x128xbf16, #tpu.memory_space<vmem>>, vector<128x128xbf16>
      %cst_25 = arith.constant dense<0.000000e+00> : vector<8x128xf32>
      %50 = tpu.matmul %48, %49, %cst_25 {dimension_numbers = #tpu.dot_dimension_numbers<[1], [0], [0], [1], [0, 0, 1, 1], [], []>} : vector<8x128xbf16>, vector<128x128xbf16>, vector<8x128xf32> -> vector<8x128xf32>
      %51 = vector.broadcast %45 : vector<1x128xf32> to vector<8x128xf32>
      %52 = arith.addf %50, %51 : vector<8x128xf32>
      %cst_26 = arith.constant dense<0.000000e+00> : vector<128xf32>
      %53 = vector.multi_reduction <add>, %52, %cst_26 [0] : vector<8x128xf32> to vector<128xf32>
      %54 = vector.shape_cast %53 : vector<128xf32> to vector<1x128xf32>
      %cst_27 = arith.constant 8.000000e+00 : f32
      %55 = vector.broadcast %cst_27 : f32 to vector<1x128xf32>
      %56 = arith.divf %54, %55 : vector<1x128xf32>
      %57 = vector.broadcast %56 : vector<1x128xf32> to vector<8x128xf32>
      %58 = arith.subf %52, %57 : vector<8x128xf32>
      %59 = arith.mulf %58, %58 : vector<8x128xf32>
      %cst_28 = arith.constant dense<0.000000e+00> : vector<128xf32>
      %60 = vector.multi_reduction <add>, %59, %cst_28 [0] : vector<8x128xf32> to vector<128xf32>
      %61 = vector.shape_cast %60 : vector<128xf32> to vector<1x128xf32>
      %cst_29 = arith.constant 8.000000e+00 : f32
      %62 = vector.broadcast %cst_29 : f32 to vector<1x128xf32>
      %63 = arith.divf %61, %62 : vector<1x128xf32>
      %64 = vector.broadcast %56 : vector<1x128xf32> to vector<8x128xf32>
      %65 = arith.subf %52, %64 : vector<8x128xf32>
      %cst_30 = arith.constant 9.99999974E-6 : f32
      %66 = vector.broadcast %cst_30 : f32 to vector<1x128xf32>
      %67 = arith.addf %63, %66 : vector<1x128xf32>
      %68 = math.rsqrt %67 : vector<1x128xf32>
      %69 = vector.broadcast %68 : vector<1x128xf32> to vector<8x128xf32>
      %70 = arith.mulf %65, %69 : vector<8x128xf32>
      %71 = vector.broadcast %46 : vector<1x128xf32> to vector<8x128xf32>
      %72 = arith.mulf %70, %71 : vector<8x128xf32>
      %73 = vector.broadcast %47 : vector<1x128xf32> to vector<8x128xf32>
      %74 = arith.addf %72, %73 : vector<8x128xf32>
      %cst_31 = arith.constant 0.000000e+00 : f32
      %75 = vector.broadcast %cst_31 : f32 to vector<8x128xf32>
      %76 = arith.maximumf %74, %75 : vector<8x128xf32>
      %77 = vector.extract_strided_slice %0 {offsets = [4, 0], sizes = [1, 128], strides = [1, 1]} : vector<14x128xf32> to vector<1x128xf32>
      %78 = vector.extract_strided_slice %0 {offsets = [5, 0], sizes = [1, 128], strides = [1, 1]} : vector<14x128xf32> to vector<1x128xf32>
      %79 = vector.extract_strided_slice %0 {offsets = [6, 0], sizes = [1, 128], strides = [1, 1]} : vector<14x128xf32> to vector<1x128xf32>
      %80 = arith.truncf %76 : vector<8x128xf32> to vector<8x128xbf16>
      %c0_32 = arith.constant 0 : index
      %c0_33 = arith.constant 0 : index
      %81 = vector.load %arg5[%c0_32, %c0_33] : memref<128x128xbf16, #tpu.memory_space<vmem>>, vector<128x128xbf16>
      %cst_34 = arith.constant dense<0.000000e+00> : vector<8x128xf32>
      %82 = tpu.matmul %80, %81, %cst_34 {dimension_numbers = #tpu.dot_dimension_numbers<[1], [0], [0], [1], [0, 0, 1, 1], [], []>} : vector<8x128xbf16>, vector<128x128xbf16>, vector<8x128xf32> -> vector<8x128xf32>
      %83 = vector.broadcast %77 : vector<1x128xf32> to vector<8x128xf32>
      %84 = arith.addf %82, %83 : vector<8x128xf32>
      %cst_35 = arith.constant dense<0.000000e+00> : vector<128xf32>
      %85 = vector.multi_reduction <add>, %84, %cst_35 [0] : vector<8x128xf32> to vector<128xf32>
      %86 = vector.shape_cast %85 : vector<128xf32> to vector<1x128xf32>
      %cst_36 = arith.constant 8.000000e+00 : f32
      %87 = vector.broadcast %cst_36 : f32 to vector<1x128xf32>
      %88 = arith.divf %86, %87 : vector<1x128xf32>
      %89 = vector.broadcast %88 : vector<1x128xf32> to vector<8x128xf32>
      %90 = arith.subf %84, %89 : vector<8x128xf32>
      %91 = arith.mulf %90, %90 : vector<8x128xf32>
      %cst_37 = arith.constant dense<0.000000e+00> : vector<128xf32>
      %92 = vector.multi_reduction <add>, %91, %cst_37 [0] : vector<8x128xf32> to vector<128xf32>
      %93 = vector.shape_cast %92 : vector<128xf32> to vector<1x128xf32>
      %cst_38 = arith.constant 8.000000e+00 : f32
      %94 = vector.broadcast %cst_38 : f32 to vector<1x128xf32>
      %95 = arith.divf %93, %94 : vector<1x128xf32>
      %96 = vector.broadcast %88 : vector<1x128xf32> to vector<8x128xf32>
      %97 = arith.subf %84, %96 : vector<8x128xf32>
      %cst_39 = arith.constant 9.99999974E-6 : f32
      %98 = vector.broadcast %cst_39 : f32 to vector<1x128xf32>
      %99 = arith.addf %95, %98 : vector<1x128xf32>
      %100 = math.rsqrt %99 : vector<1x128xf32>
      %101 = vector.broadcast %100 : vector<1x128xf32> to vector<8x128xf32>
      %102 = arith.mulf %97, %101 : vector<8x128xf32>
      %103 = vector.broadcast %78 : vector<1x128xf32> to vector<8x128xf32>
      %104 = arith.mulf %102, %103 : vector<8x128xf32>
      %105 = vector.broadcast %79 : vector<1x128xf32> to vector<8x128xf32>
      %106 = arith.addf %104, %105 : vector<8x128xf32>
      %cst_40 = arith.constant 0.000000e+00 : f32
      %107 = vector.broadcast %cst_40 : f32 to vector<8x128xf32>
      %108 = arith.maximumf %106, %107 : vector<8x128xf32>
      %109 = vector.extract_strided_slice %0 {offsets = [7, 0], sizes = [1, 128], strides = [1, 1]} : vector<14x128xf32> to vector<1x128xf32>
      %110 = vector.extract_strided_slice %0 {offsets = [8, 0], sizes = [1, 128], strides = [1, 1]} : vector<14x128xf32> to vector<1x128xf32>
      %111 = vector.extract_strided_slice %0 {offsets = [9, 0], sizes = [1, 128], strides = [1, 1]} : vector<14x128xf32> to vector<1x128xf32>
      %112 = arith.truncf %108 : vector<8x128xf32> to vector<8x128xbf16>
      %c0_41 = arith.constant 0 : index
      %c0_42 = arith.constant 0 : index
      %113 = vector.load %arg6[%c0_41, %c0_42] : memref<128x128xbf16, #tpu.memory_space<vmem>>, vector<128x128xbf16>
      %cst_43 = arith.constant dense<0.000000e+00> : vector<8x128xf32>
      %114 = tpu.matmul %112, %113, %cst_43 {dimension_numbers = #tpu.dot_dimension_numbers<[1], [0], [0], [1], [0, 0, 1, 1], [], []>} : vector<8x128xbf16>, vector<128x128xbf16>, vector<8x128xf32> -> vector<8x128xf32>
      %115 = vector.broadcast %109 : vector<1x128xf32> to vector<8x128xf32>
      %116 = arith.addf %114, %115 : vector<8x128xf32>
      %cst_44 = arith.constant dense<0.000000e+00> : vector<128xf32>
      %117 = vector.multi_reduction <add>, %116, %cst_44 [0] : vector<8x128xf32> to vector<128xf32>
      %118 = vector.shape_cast %117 : vector<128xf32> to vector<1x128xf32>
      %cst_45 = arith.constant 8.000000e+00 : f32
      %119 = vector.broadcast %cst_45 : f32 to vector<1x128xf32>
      %120 = arith.divf %118, %119 : vector<1x128xf32>
      %121 = vector.broadcast %120 : vector<1x128xf32> to vector<8x128xf32>
      %122 = arith.subf %116, %121 : vector<8x128xf32>
      %123 = arith.mulf %122, %122 : vector<8x128xf32>
      %cst_46 = arith.constant dense<0.000000e+00> : vector<128xf32>
      %124 = vector.multi_reduction <add>, %123, %cst_46 [0] : vector<8x128xf32> to vector<128xf32>
      %125 = vector.shape_cast %124 : vector<128xf32> to vector<1x128xf32>
      %cst_47 = arith.constant 8.000000e+00 : f32
      %126 = vector.broadcast %cst_47 : f32 to vector<1x128xf32>
      %127 = arith.divf %125, %126 : vector<1x128xf32>
      %128 = vector.broadcast %120 : vector<1x128xf32> to vector<8x128xf32>
      %129 = arith.subf %116, %128 : vector<8x128xf32>
      %cst_48 = arith.constant 9.99999974E-6 : f32
      %130 = vector.broadcast %cst_48 : f32 to vector<1x128xf32>
      %131 = arith.addf %127, %130 : vector<1x128xf32>
      %132 = math.rsqrt %131 : vector<1x128xf32>
      %133 = vector.broadcast %132 : vector<1x128xf32> to vector<8x128xf32>
      %134 = arith.mulf %129, %133 : vector<8x128xf32>
      %135 = vector.broadcast %110 : vector<1x128xf32> to vector<8x128xf32>
      %136 = arith.mulf %134, %135 : vector<8x128xf32>
      %137 = vector.broadcast %111 : vector<1x128xf32> to vector<8x128xf32>
      %138 = arith.addf %136, %137 : vector<8x128xf32>
      %139 = vector.extract_strided_slice %0 {offsets = [10, 0], sizes = [1, 128], strides = [1, 1]} : vector<14x128xf32> to vector<1x128xf32>
      %140 = vector.extract_strided_slice %0 {offsets = [11, 0], sizes = [1, 128], strides = [1, 1]} : vector<14x128xf32> to vector<1x128xf32>
      %141 = vector.extract_strided_slice %0 {offsets = [12, 0], sizes = [1, 128], strides = [1, 1]} : vector<14x128xf32> to vector<1x128xf32>
      %142 = arith.truncf %138 : vector<8x128xf32> to vector<8x128xbf16>
      %c0_49 = arith.constant 0 : index
      %c0_50 = arith.constant 0 : index
      %143 = vector.load %arg7[%c0_49, %c0_50] : memref<128x128xbf16, #tpu.memory_space<vmem>>, vector<128x128xbf16>
      %cst_51 = arith.constant dense<0.000000e+00> : vector<8x128xf32>
      %144 = tpu.matmul %142, %143, %cst_51 {dimension_numbers = #tpu.dot_dimension_numbers<[1], [0], [0], [1], [0, 0, 1, 1], [], []>} : vector<8x128xbf16>, vector<128x128xbf16>, vector<8x128xf32> -> vector<8x128xf32>
      %145 = vector.broadcast %139 : vector<1x128xf32> to vector<8x128xf32>
      %146 = arith.addf %144, %145 : vector<8x128xf32>
      %cst_52 = arith.constant dense<0.000000e+00> : vector<128xf32>
      %147 = vector.multi_reduction <add>, %146, %cst_52 [0] : vector<8x128xf32> to vector<128xf32>
      %148 = vector.shape_cast %147 : vector<128xf32> to vector<1x128xf32>
      %cst_53 = arith.constant 8.000000e+00 : f32
      %149 = vector.broadcast %cst_53 : f32 to vector<1x128xf32>
      %150 = arith.divf %148, %149 : vector<1x128xf32>
      %151 = vector.broadcast %150 : vector<1x128xf32> to vector<8x128xf32>
      %152 = arith.subf %146, %151 : vector<8x128xf32>
      %153 = arith.mulf %152, %152 : vector<8x128xf32>
      %cst_54 = arith.constant dense<0.000000e+00> : vector<128xf32>
      %154 = vector.multi_reduction <add>, %153, %cst_54 [0] : vector<8x128xf32> to vector<128xf32>
      %155 = vector.shape_cast %154 : vector<128xf32> to vector<1x128xf32>
      %cst_55 = arith.constant 8.000000e+00 : f32
      %156 = vector.broadcast %cst_55 : f32 to vector<1x128xf32>
      %157 = arith.divf %155, %156 : vector<1x128xf32>
      %158 = vector.broadcast %150 : vector<1x128xf32> to vector<8x128xf32>
      %159 = arith.subf %146, %158 : vector<8x128xf32>
      %cst_56 = arith.constant 9.99999974E-6 : f32
      %160 = vector.broadcast %cst_56 : f32 to vector<1x128xf32>
      %161 = arith.addf %157, %160 : vector<1x128xf32>
      %162 = math.rsqrt %161 : vector<1x128xf32>
      %163 = vector.broadcast %162 : vector<1x128xf32> to vector<8x128xf32>
      %164 = arith.mulf %159, %163 : vector<8x128xf32>
      %165 = vector.broadcast %140 : vector<1x128xf32> to vector<8x128xf32>
      %166 = arith.mulf %164, %165 : vector<8x128xf32>
      %167 = vector.broadcast %141 : vector<1x128xf32> to vector<8x128xf32>
      %168 = arith.addf %166, %167 : vector<8x128xf32>
      %cst_57 = arith.constant 0.000000e+00 : f32
      %169 = vector.broadcast %cst_57 : f32 to vector<8x128xf32>
      %170 = arith.maximumf %168, %169 : vector<8x128xf32>
      %171 = vector.extract_strided_slice %0 {offsets = [13, 0], sizes = [1, 128], strides = [1, 1]} : vector<14x128xf32> to vector<1x128xf32>
      %172 = arith.truncf %170 : vector<8x128xf32> to vector<8x128xbf16>
      %c0_58 = arith.constant 0 : index
      %c0_59 = arith.constant 0 : index
      %173 = vector.load %arg8[%c0_58, %c0_59] : memref<128x128xbf16, #tpu.memory_space<vmem>>, vector<128x128xbf16>
      %cst_60 = arith.constant dense<0.000000e+00> : vector<8x128xf32>
      %174 = tpu.matmul %172, %173, %cst_60 {dimension_numbers = #tpu.dot_dimension_numbers<[1], [0], [0], [1], [0, 0, 1, 1], [], []>} : vector<8x128xbf16>, vector<128x128xbf16>, vector<8x128xf32> -> vector<8x128xf32>
      %175 = vector.broadcast %171 : vector<1x128xf32> to vector<8x128xf32>
      %176 = arith.addf %174, %175 : vector<8x128xf32>
      %177 = arith.mulf %176, %176 : vector<8x128xf32>
      %cst_61 = arith.constant dense<0.000000e+00> : vector<8xf32>
      %178 = vector.multi_reduction <add>, %177, %cst_61 [1] : vector<8x128xf32> to vector<8xf32>
      %179 = vector.shape_cast %178 : vector<8xf32> to vector<8x1xf32>
      %cst_62 = arith.constant 1.000000e-24 : f32
      %180 = vector.broadcast %cst_62 : f32 to vector<8x1xf32>
      %181 = arith.maximumf %179, %180 : vector<8x1xf32>
      %182 = math.rsqrt %181 : vector<8x1xf32>
      %183 = vector.broadcast %182 : vector<8x1xf32> to vector<8x128xf32>
      %184 = arith.mulf %176, %183 : vector<8x128xf32>
      %185 = arith.mulf %138, %138 : vector<8x128xf32>
      %cst_63 = arith.constant dense<0.000000e+00> : vector<8xf32>
      %186 = vector.multi_reduction <add>, %185, %cst_63 [1] : vector<8x128xf32> to vector<8xf32>
      %187 = vector.shape_cast %186 : vector<8xf32> to vector<8x1xf32>
      %cst_64 = arith.constant 1.000000e-24 : f32
      %188 = vector.broadcast %cst_64 : f32 to vector<8x1xf32>
      %189 = arith.maximumf %187, %188 : vector<8x1xf32>
      %190 = math.rsqrt %189 : vector<8x1xf32>
      %191 = vector.broadcast %190 : vector<8x1xf32> to vector<8x128xf32>
      %192 = arith.mulf %138, %191 : vector<8x128xf32>
      %c0_65 = arith.constant 0 : index
      %c0_66 = arith.constant 0 : index
      %193 = vector.load %arg12[%c0_65, %c0_66] : memref<8x128xf32, #tpu.memory_space<vmem>>, vector<8x128xf32>
      tpu.vector_store %arg12[%c0_65, %c0_66], %192 {strides = array<i32>} : memref<8x128xf32, #tpu.memory_space<vmem>>, vector<8x128xf32>,
      %194 = tpu.concatenate %184, %192 in 0 : vector<8x128xf32>, vector<8x128xf32> -> vector<16x128xf32>
      %195 = arith.truncf %194 : vector<16x128xf32> to vector<16x128xbf16>
      %c0_67 = arith.constant 0 : index
      %c0_68 = arith.constant 0 : index
      %196 = vector.load %arg15[%c0_67, %c0_68] : memref<16x128xbf16, #tpu.memory_space<vmem>>, vector<16x128xbf16>
      tpu.vector_store %arg15[%c0_67, %c0_68], %195 {strides = array<i32>} : memref<16x128xbf16, #tpu.memory_space<vmem>>, vector<16x128xbf16>,
    } else {
    }
    %c0_2 = arith.constant 0 : index
    %c0_3 = arith.constant 0 : index
    %4 = vector.load %arg15[%c0_2, %c0_3] : memref<16x128xbf16, #tpu.memory_space<vmem>>, vector<16x128xbf16>
    %c0_4 = arith.constant 0 : index
    %c0_5 = arith.constant 0 : index
    %5 = vector.load %arg9[%c0_4, %c0_5] : memref<128x896xbf16, #tpu.memory_space<vmem>>, vector<128x896xbf16>
    %cst = arith.constant dense<0.000000e+00> : vector<16x896xf32>
    %6 = tpu.matmul %4, %5, %cst {dimension_numbers = #tpu.dot_dimension_numbers<[1], [0], [0], [1], [0, 0, 1, 1], [], []>} : vector<16x128xbf16>, vector<128x896xbf16>, vector<16x896xf32> -> vector<16x896xf32>
    %cst_6 = arith.constant 1.000000e+01 : f32
    %7 = vector.broadcast %cst_6 : f32 to vector<16x896xf32>
    %8 = arith.mulf %6, %7 : vector<16x896xf32>
    %c0_7 = arith.constant 0 : index
    %c0_8 = arith.constant 0 : index
    %9 = vector.load %arg13[%c0_7, %c0_8] : memref<16x896xf32, #tpu.memory_space<vmem>>, vector<16x896xf32>
    tpu.vector_store %arg13[%c0_7, %c0_8], %8 {strides = array<i32>} : memref<16x896xf32, #tpu.memory_space<vmem>>, vector<16x896xf32>,
    %10 = vector.extract_strided_slice %4 {offsets = [8, 0], sizes = [8, 128], strides = [1, 1]} : vector<16x128xbf16> to vector<8x128xbf16>
    %c0_9 = arith.constant 0 : index
    %c0_10 = arith.constant 0 : index
    %11 = vector.load %arg10[%c0_9, %c0_10] : memref<128x896xbf16, #tpu.memory_space<vmem>>, vector<128x896xbf16>
    %cst_11 = arith.constant dense<0.000000e+00> : vector<8x896xf32>
    %12 = tpu.matmul %10, %11, %cst_11 {dimension_numbers = #tpu.dot_dimension_numbers<[1], [0], [0], [1], [0, 0, 1, 1], [], []>} : vector<8x128xbf16>, vector<128x896xbf16>, vector<8x896xf32> -> vector<8x896xf32>
    %c0_12 = arith.constant 0 : index
    %c0_13 = arith.constant 0 : index
    %13 = vector.load %arg11[%c0_12, %c0_13] : memref<1x896xf32, #tpu.memory_space<vmem>>, vector<1x896xf32>
    %14 = vector.broadcast %13 : vector<1x896xf32> to vector<8x896xf32>
    %15 = arith.addf %12, %14 : vector<8x896xf32>
    %c0_14 = arith.constant 0 : index
    %c0_15 = arith.constant 0 : index
    %16 = vector.load %arg14[%c0_14, %c0_15] : memref<8x896xf32, #tpu.memory_space<vmem>>, vector<8x896xf32>
    tpu.vector_store %arg14[%c0_14, %c0_15], %15 {strides = array<i32>} : memref<8x896xf32, #tpu.memory_space<vmem>>, vector<8x896xf32>,
    return
  }
  func.func @transform_0(%arg0: i32) -> (i32, i32) {
    %c0_i32 = arith.constant 0 : i32
    %c0_i32_0 = arith.constant 0 : i32
    %c0_i32_1 = arith.constant 0 : i32
    return %c0_i32, %c0_i32_0 : i32, i32
  }
  func.func @transform_1(%arg0: i32) -> (i32, i32) {
    %c0_i32 = arith.constant 0 : i32
    %c0_i32_0 = arith.constant 0 : i32
    %c0_i32_1 = arith.constant 0 : i32
    return %c0_i32, %c0_i32_0 : i32, i32
  }
  func.func @transform_2(%arg0: i32) -> (i32, i32) {
    %c0_i32 = arith.constant 0 : i32
    %c0_i32_0 = arith.constant 0 : i32
    %c0_i32_1 = arith.constant 0 : i32
    return %c0_i32, %c0_i32_0 : i32, i32
  }
  func.func @transform_3(%arg0: i32) -> (i32, i32) {
    %c0_i32 = arith.constant 0 : i32
    %c0_i32_0 = arith.constant 0 : i32
    %c0_i32_1 = arith.constant 0 : i32
    return %c0_i32, %c0_i32_0 : i32, i32
  }
  func.func @transform_4(%arg0: i32) -> (i32, i32) {
    %c0_i32 = arith.constant 0 : i32
    %c0_i32_0 = arith.constant 0 : i32
    %c0_i32_1 = arith.constant 0 : i32
    return %c0_i32, %c0_i32_0 : i32, i32
  }
  func.func @transform_5(%arg0: i32) -> (i32, i32) {
    %c0_i32 = arith.constant 0 : i32
    %c0_i32_0 = arith.constant 0 : i32
    %c0_i32_1 = arith.constant 0 : i32
    return %c0_i32, %c0_i32_0 : i32, i32
  }
  func.func @transform_6(%arg0: i32) -> (i32, i32) {
    %c0_i32 = arith.constant 0 : i32
    %c0_i32_0 = arith.constant 0 : i32
    %c0_i32_1 = arith.constant 0 : i32
    return %c0_i32, %c0_i32_0 : i32, i32
  }
  func.func @transform_7(%arg0: i32) -> (i32, i32) {
    %c0_i32 = arith.constant 0 : i32
    %c0_i32_0 = arith.constant 0 : i32
    %c0_i32_1 = arith.constant 0 : i32
    return %c0_i32, %c0_i32_0 : i32, i32
  }
  func.func @transform_8(%arg0: i32) -> (i32, i32) {
    %c0_i32 = arith.constant 0 : i32
    %c0_i32_0 = arith.constant 0 : i32
    return %c0_i32, %arg0 : i32, i32
  }
  func.func @transform_9(%arg0: i32) -> (i32, i32) {
    %c0_i32 = arith.constant 0 : i32
    %c0_i32_0 = arith.constant 0 : i32
    return %c0_i32, %arg0 : i32, i32
  }
  func.func @transform_10(%arg0: i32) -> (i32, i32) {
    %c0_i32 = arith.constant 0 : i32
    %c0_i32_0 = arith.constant 0 : i32
    return %c0_i32, %arg0 : i32, i32
  }
  func.func @transform_11(%arg0: i32) -> (i32, i32) {
    %c0_i32 = arith.constant 0 : i32
    %c0_i32_0 = arith.constant 0 : i32
    %c0_i32_1 = arith.constant 0 : i32
    return %c0_i32, %c0_i32_0 : i32, i32
  }
  func.func @transform_12(%arg0: i32) -> (i32, i32) {
    %c0_i32 = arith.constant 0 : i32
    %c0_i32_0 = arith.constant 0 : i32
    return %c0_i32, %arg0 : i32, i32
  }
  func.func @transform_13(%arg0: i32) -> (i32, i32) {
    %c0_i32 = arith.constant 0 : i32
    %c0_i32_0 = arith.constant 0 : i32
    return %c0_i32, %arg0 : i32, i32
  }
}

</mosaic_0001>

<llo_original>
// kernel: tpu_custom_call.1
$region0: #{tpu_custom_call.1}
  #allocation0 [shape = 'u32[]', space=smem, size = 0x4, offset = 0x4, fixed_abs, tag = 'smem constant byte address 0x4 - core index']
  #allocation1 [shape = 'u32[144,128]{1,0:T(1,128)}', space=vmem, size = 0x12000, scoped, tag = 'internal scratch']
  #allocation2 [shape = 'bf16[16,128]{1,0:T(8,128)(2,1)}', space=vmem, size = 0x1000, scoped, tag = 'scratch operand']
  %s0 = inlined_call_operand.vmem [shape: f32[512,3], index: 0, kind: input, shape index: {}]
  %s1 = inlined_call_operand.vmem [shape: f32[3,128], index: 1, kind: input, shape index: {}]
  %s2 = inlined_call_operand.vmem [shape: f32[14,128], index: 2, kind: input, shape index: {}]
  %s3 = inlined_call_operand.vmem [shape: bf16[128,128], index: 3, kind: input, shape index: {}]
  %s4 = inlined_call_operand.hbm [shape: bf16[128,128], index: 4, kind: input, shape index: {}]
  %s5 = inlined_call_operand.hbm [shape: bf16[128,128], index: 5, kind: input, shape index: {}]
  %s6 = inlined_call_operand.hbm [shape: bf16[128,128], index: 6, kind: input, shape index: {}]
  %s7 = inlined_call_operand.hbm [shape: bf16[128,128], index: 7, kind: input, shape index: {}]
  %s8 = inlined_call_operand.vmem [shape: bf16[128,896], index: 8, kind: input, shape index: {}]
  %s9 = inlined_call_operand.hbm [shape: bf16[128,896], index: 9, kind: input, shape index: {}]
  %s10 = inlined_call_operand.vmem [shape: f32[1,896], index: 10, kind: input, shape index: {}]
  %s11 = inlined_call_operand.hbm [shape: f32[8,128], index: 11, kind: output, shape index: {0}]
  %s12 = inlined_call_operand.hbm [shape: f32[16,896], index: 12, kind: output, shape index: {1}]
  %s13 = inlined_call_operand.hbm [shape: f32[8,896], index: 13, kind: output, shape index: {2}]
  %14 = xla_tuple %s11, %s12, %s13
  %s15 = sld [smem:[#allocation0]]
  $region94: #{tpu_custom_call.1} parent=0
    _
  %s17 = ssub.s32 1, %s15
  %s18 = scalar_select 0, %s17, %s15
  $region1: #{tpu_custom_call.1} parent=0
    #allocation3 [shape = 'u8[32768]{0}', space=vmem, size = 0x8000, scoped, tag = 'input window, operand 4, single buffered']
    #allocation4 [shape = 's32[1]{0}', space=sflag, size = 0x4, scoped, tag = 'scoped memory for tpu_custom_call.1']
    #allocation5 [shape = 's32[1]{0}', space=sflag, size = 0x4, scoped, tag = 'scoped memory for tpu_custom_call.1']
    #allocation6 [shape = 'u8[32768]{0}', space=vmem, size = 0x8000, scoped, tag = 'input window, operand 5, single buffered']
    #allocation7 [shape = 's32[1]{0}', space=sflag, size = 0x4, scoped, tag = 'scoped memory for tpu_custom_call.1']
    #allocation8 [shape = 'u8[32768]{0}', space=vmem, size = 0x8000, scoped, tag = 'input window, operand 6, single buffered']
    #allocation9 [shape = 'u8[32768]{0}', space=vmem, size = 0x8000, scoped, tag = 'input window, operand 7, single buffered']
    #allocation10 [shape = 's32[1]{0}', space=sflag, size = 0x4, scoped, tag = 'scoped memory for tpu_custom_call.1']
    #allocation11 [shape = 'u8[229376]{0}', space=vmem, size = 0x38000, scoped, tag = 'input window, operand 9, single buffered']
    #allocation12 [shape = 'u8[4096]{0}', space=vmem, size = 0x1000, scoped, tag = 'output window, operand 0, single buffered']
    #allocation13 [shape = 'u8[57344]{0}', space=vmem, size = 0xe000, scoped, tag = 'output window, operand 1, single buffered']
    #allocation14 [shape = 's32[1]{0}', space=sflag, size = 0x4, scoped, tag = 'scoped memory for tpu_custom_call.1']
    #allocation15 [shape = 'u8[28672]{0}', space=vmem, size = 0x7000, scoped, tag = 'output window, operand 2, single buffered']
    %19 = vsyncpa [#allocation4], 0
    %20 = vsyncpa [#allocation7], 0
    %21 = vsyncpa [#allocation10], 0
    %22 = vsyncpa [#allocation5], 0
    %23 = vsyncpa [#allocation14], 0
    // Predicated region
    $region2: #{tpu_custom_call.1} parent=1 // pred_check
      _
    $region3: #{tpu_custom_call.1} parent=1 // pred_check_branch
      %25 = sbr.rel (0) target = $region5
    $region4: #{tpu_custom_call.1} parent=1 // pred_region
      _
    $region5: #{tpu_custom_call.1} parent=1 // pred_fallthru
      _
    // Predicated region
    $region6: #{tpu_custom_call.1} parent=1 // pred_check
      _
    $region7: #{tpu_custom_call.1} parent=1 // pred_check_branch
      %27 = sbr.rel (0) target = $region9
    $region8: #{tpu_custom_call.1} parent=1 // pred_region
      _
    $region9: #{tpu_custom_call.1} parent=1 // pred_fallthru
      _
    // Predicated region
    $region10: #{tpu_custom_call.1} parent=1 // pred_check
      _
    $region11: #{tpu_custom_call.1} parent=1 // pred_check_branch
      %29 = sbr.rel (0) target = $region13
    $region12: #{tpu_custom_call.1} parent=1 // pred_region
      _
    $region13: #{tpu_custom_call.1} parent=1 // pred_fallthru
      _
    // Predicated region
    $region14: #{tpu_custom_call.1} parent=1 // pred_check
      _
    $region15: #{tpu_custom_call.1} parent=1 // pred_check_branch
      %31 = sbr.rel (0) target = $region17
    $region16: #{tpu_custom_call.1} parent=1 // pred_region
      _
    $region17: #{tpu_custom_call.1} parent=1 // pred_fallthru
      _
    // Predicated region
    $region18: #{tpu_custom_call.1} parent=1 // pred_check
      _
    $region19: #{tpu_custom_call.1} parent=1 // pred_check_branch
      %33 = sbr.rel (0) target = $region21
    $region20: #{tpu_custom_call.1} parent=1 // pred_region
      %s35 = ssub.s32 1024, 1024
      %36 = vsyncadd [#allocation4], %s35
      %s37 = sshll.u32 [#allocation3], 4
      %s38 = int_to_ptr.vmem [resolvable:$true] %s37
      %43 = dma.hbm_to_vmem [thread:$0]  %s4, 1024, %s38, [#allocation4], 64, 64, 4
    $region21: #{tpu_custom_call.1} parent=1 // pred_fallthru
      _
    // Predicated region
    $region22: #{tpu_custom_call.1} parent=1 // pred_check
      _
    $region23: #{tpu_custom_call.1} parent=1 // pred_check_branch
      %45 = sbr.rel (0) target = $region25
    $region24: #{tpu_custom_call.1} parent=1 // pred_region
      %s47 = ssub.s32 1024, 1024
      %48 = vsyncadd [#allocation7], %s47
      %s49 = sshll.u32 [#allocation6], 4
      %s50 = int_to_ptr.vmem [resolvable:$true] %s49
      %55 = dma.hbm_to_vmem [thread:$0]  %s5, 1024, %s50, [#allocation7], 64, 64, 4
    $region25: #{tpu_custom_call.1} parent=1 // pred_fallthru
      _
    // Predicated region
    $region26: #{tpu_custom_call.1} parent=1 // pred_check
      _
    $region27: #{tpu_custom_call.1} parent=1 // pred_check_branch
      %57 = sbr.rel (0) target = $region29
    $region28: #{tpu_custom_call.1} parent=1 // pred_region
      %s59 = ssub.s32 1024, 1024
      %60 = vsyncadd [#allocation7], %s59
      %s61 = sshll.u32 [#allocation8], 4
      %s62 = int_to_ptr.vmem [resolvable:$true] %s61
      %67 = dma.hbm_to_vmem [thread:$0]  %s6, 1024, %s62, [#allocation7], 64, 64, 4
    $region29: #{tpu_custom_call.1} parent=1 // pred_fallthru
      _
    // Predicated region
    $region30: #{tpu_custom_call.1} parent=1 // pred_check
      _
    $region31: #{tpu_custom_call.1} parent=1 // pred_check_branch
      %69 = sbr.rel (0) target = $region33
    $region32: #{tpu_custom_call.1} parent=1 // pred_region
      %s71 = ssub.s32 1024, 1024
      %72 = vsyncadd [#allocation10], %s71
      %s73 = sshll.u32 [#allocation9], 4
      %s74 = int_to_ptr.vmem [resolvable:$true] %s73
      %79 = dma.hbm_to_vmem [thread:$0]  %s7, 1024, %s74, [#allocation10], 64, 64, 4
    $region33: #{tpu_custom_call.1} parent=1 // pred_fallthru
      _
    // Predicated region
    $region34: #{tpu_custom_call.1} parent=1 // pred_check
      _
    $region35: #{tpu_custom_call.1} parent=1 // pred_check_branch
      %81 = sbr.rel (0) target = $region37
    $region36: #{tpu_custom_call.1} parent=1 // pred_region
      _
    $region37: #{tpu_custom_call.1} parent=1 // pred_fallthru
      _
    // Predicated region
    $region38: #{tpu_custom_call.1} parent=1 // pred_check
      _
    $region39: #{tpu_custom_call.1} parent=1 // pred_check_branch
      %83 = sbr.rel (0) target = $region41
    $region40: #{tpu_custom_call.1} parent=1 // pred_region
      %s85 = ssub.s32 7168, 7168
      %86 = vsyncadd [#allocation10], %s85
      %s87 = sshll.u32 [#allocation11], 4
      %s88 = int_to_ptr.vmem [resolvable:$true] %s87
      %93 = dma.hbm_to_vmem [thread:$0]  %s9, 7168, %s88, [#allocation10], 448, 448, 28
    $region41: #{tpu_custom_call.1} parent=1 // pred_fallthru
      _
    // Predicated region
    $region42: #{tpu_custom_call.1} parent=1 // pred_check
      _
    $region43: #{tpu_custom_call.1} parent=1 // pred_check_branch
      %95 = sbr.rel (0) target = $region45
    $region44: #{tpu_custom_call.1} parent=1 // pred_region
      _
    $region45: #{tpu_custom_call.1} parent=1 // pred_fallthru
      _
    // Predicated region
    $region46: #{tpu_custom_call.1} parent=1 // pred_check
      _
    $region47: #{tpu_custom_call.1} parent=1 // pred_check_branch
      %97 = sbr.rel (0) target = $region49
    $region48: #{tpu_custom_call.1} parent=1 // pred_region
      %98 = dma.done [#allocation4], 1024
    $region49: #{tpu_custom_call.1} parent=1 // pred_fallthru
      _
    // Predicated region
    $region50: #{tpu_custom_call.1} parent=1 // pred_check
      _
    $region51: #{tpu_custom_call.1} parent=1 // pred_check_branch
      %100 = sbr.rel (0) target = $region53
    $region52: #{tpu_custom_call.1} parent=1 // pred_region
      %101 = dma.done [#allocation7], 1024
    $region53: #{tpu_custom_call.1} parent=1 // pred_fallthru
      _
    // Predicated region
    $region54: #{tpu_custom_call.1} parent=1 // pred_check
      _
    $region55: #{tpu_custom_call.1} parent=1 // pred_check_branch
      %103 = sbr.rel (0) target = $region57
    $region56: #{tpu_custom_call.1} parent=1 // pred_region
      %104 = dma.done [#allocation7], 1024
    $region57: #{tpu_custom_call.1} parent=1 // pred_fallthru
      _
    // Predicated region
    $region58: #{tpu_custom_call.1} parent=1 // pred_check
      _
    $region59: #{tpu_custom_call.1} parent=1 // pred_check_branch
      %106 = sbr.rel (0) target = $region61
    $region60: #{tpu_custom_call.1} parent=1 // pred_region
      %107 = dma.done [#allocation10], 1024
    $region61: #{tpu_custom_call.1} parent=1 // pred_fallthru
      _
    // Predicated region
    $region62: #{tpu_custom_call.1} parent=1 // pred_check
      _
    $region63: #{tpu_custom_call.1} parent=1 // pred_check_branch
      %109 = sbr.rel (0) target = $region65
    $region64: #{tpu_custom_call.1} parent=1 // pred_region
      %110 = dma.done [#allocation10], 7168
    $region65: #{tpu_custom_call.1} parent=1 // pred_fallthru
      _
    %v112 = vld [vmem:[%s2] sm:$0xff]
    %v113 = vld [vmem:[%s2 + $0x8] sm:$0x3f]
    %p114 = scmp.eq.s32.totalorder 0, 0
    // Predicated region
    $region66: #{tpu_custom_call.1} parent=1 // pred_check
      %p115 = pneg %p114
    $region67: #{tpu_custom_call.1} parent=1 // pred_check_branch
      %117 = sbr.rel (%p115) target = $region69
    $region68: #{tpu_custom_call.1} parent=1 // pred_region
      %v118 = vld [vmem:[%s0] sm:$0xff]
      %v119 = vld [vmem:[%s0 + $0x8] sm:$0xff]
      %v120 = vld [vmem:[%s0 + $0x10] sm:$0xff]
      %v121 = vld [vmem:[%s0 + $0x18] sm:$0xff]
      %v122 = vld [vmem:[%s0 + $0x20] sm:$0xff]
      %v123 = vld [vmem:[%s0 + $0x28] sm:$0xff]
      %v124 = vld [vmem:[%s0 + $0x30] sm:$0xff]
      %v125 = vld [vmem:[%s0 + $0x38] sm:$0xff]
      %v126 = vld [vmem:[%s0 + $0x40] sm:$0xff]
      %v127 = vld [vmem:[%s0 + $0x48] sm:$0xff]
      %v128 = vld [vmem:[%s0 + $0x50] sm:$0xff]
      %v129 = vld [vmem:[%s0 + $0x58] sm:$0xff]
      %v130 = vld [vmem:[%s0 + $0x60] sm:$0xff]
      %v131 = vld [vmem:[%s0 + $0x68] sm:$0xff]
      %v132 = vld [vmem:[%s0 + $0x70] sm:$0xff]
      %v133 = vld [vmem:[%s0 + $0x78] sm:$0xff]
      %v134 = vld [vmem:[%s0 + $0x80] sm:$0xff]
      %v135 = vld [vmem:[%s0 + $0x88] sm:$0xff]
      %v136 = vld [vmem:[%s0 + $0x90] sm:$0xff]
      %v137 = vld [vmem:[%s0 + $0x98] sm:$0xff]
      %v138 = vld [vmem:[%s0 + $0xa0] sm:$0xff]
      %v139 = vld [vmem:[%s0 + $0xa8] sm:$0xff]
      %v140 = vld [vmem:[%s0 + $0xb0] sm:$0xff]
      %v141 = vld [vmem:[%s0 + $0xb8] sm:$0xff]
      %v142 = vld [vmem:[%s0 + $0xc0] sm:$0xff]
      %v143 = vld [vmem:[%s0 + $0xc8] sm:$0xff]
      %v144 = vld [vmem:[%s0 + $0xd0] sm:$0xff]
      %v145 = vld [vmem:[%s0 + $0xd8] sm:$0xff]
      %v146 = vld [vmem:[%s0 + $0xe0] sm:$0xff]
      %v147 = vld [vmem:[%s0 + $0xe8] sm:$0xff]
      %v148 = vld [vmem:[%s0 + $0xf0] sm:$0xff]
      %v149 = vld [vmem:[%s0 + $0xf8] sm:$0xff]
      %v150 = vld [vmem:[%s0 + $0x100] sm:$0xff]
      %v151 = vld [vmem:[%s0 + $0x108] sm:$0xff]
      %v152 = vld [vmem:[%s0 + $0x110] sm:$0xff]
      %v153 = vld [vmem:[%s0 + $0x118] sm:$0xff]
      %v154 = vld [vmem:[%s0 + $0x120] sm:$0xff]
      %v155 = vld [vmem:[%s0 + $0x128] sm:$0xff]
      %v156 = vld [vmem:[%s0 + $0x130] sm:$0xff]
      %v157 = vld [vmem:[%s0 + $0x138] sm:$0xff]
      %v158 = vld [vmem:[%s0 + $0x140] sm:$0xff]
      %v159 = vld [vmem:[%s0 + $0x148] sm:$0xff]
      %v160 = vld [vmem:[%s0 + $0x150] sm:$0xff]
      %v161 = vld [vmem:[%s0 + $0x158] sm:$0xff]
      %v162 = vld [vmem:[%s0 + $0x160] sm:$0xff]
      %v163 = vld [vmem:[%s0 + $0x168] sm:$0xff]
      %v164 = vld [vmem:[%s0 + $0x170] sm:$0xff]
      %v165 = vld [vmem:[%s0 + $0x178] sm:$0xff]
      %v166 = vld [vmem:[%s0 + $0x180] sm:$0xff]
      %v167 = vld [vmem:[%s0 + $0x188] sm:$0xff]
      %v168 = vld [vmem:[%s0 + $0x190] sm:$0xff]
      %v169 = vld [vmem:[%s0 + $0x198] sm:$0xff]
      %v170 = vld [vmem:[%s0 + $0x1a0] sm:$0xff]
      %v171 = vld [vmem:[%s0 + $0x1a8] sm:$0xff]
      %v172 = vld [vmem:[%s0 + $0x1b0] sm:$0xff]
      %v173 = vld [vmem:[%s0 + $0x1b8] sm:$0xff]
      %v174 = vld [vmem:[%s0 + $0x1c0] sm:$0xff]
      %v175 = vld [vmem:[%s0 + $0x1c8] sm:$0xff]
      %v176 = vld [vmem:[%s0 + $0x1d0] sm:$0xff]
      %v177 = vld [vmem:[%s0 + $0x1d8] sm:$0xff]
      %v178 = vld [vmem:[%s0 + $0x1e0] sm:$0xff]
      %v179 = vld [vmem:[%s0 + $0x1e8] sm:$0xff]
      %v180 = vld [vmem:[%s0 + $0x1f0] sm:$0xff]
      %v181 = vld [vmem:[%s0 + $0x1f8] sm:$0xff]
      %v182 = vld [vmem:[%s1] sm:$0x7]
      %184 = vset.pattern.permute.xlu0 0
      %185 = vperm.xlu0 %184, %v118
      %v186 = vpop.permute.xlu0 %185
      %189 = vset.pattern.permute.xlu0 0
      %190 = vperm.xlu0 %189, %v119
      %v191 = vpop.permute.xlu0 %190
      %194 = vset.pattern.permute.xlu0 0
      %195 = vperm.xlu0 %194, %v120
      %v196 = vpop.permute.xlu0 %195
      %199 = vset.pattern.permute.xlu0 0
      %200 = vperm.xlu0 %199, %v121
      %v201 = vpop.permute.xlu0 %200
      %204 = vset.pattern.permute.xlu0 0
      %205 = vperm.xlu0 %204, %v122
      %v206 = vpop.permute.xlu0 %205
      %209 = vset.pattern.permute.xlu0 0
      %210 = vperm.xlu0 %209, %v123
      %v211 = vpop.permute.xlu0 %210
      %214 = vset.pattern.permute.xlu0 0
      %215 = vperm.xlu0 %214, %v124
      %v216 = vpop.permute.xlu0 %215
      %219 = vset.pattern.permute.xlu0 0
      %220 = vperm.xlu0 %219, %v125
      %v221 = vpop.permute.xlu0 %220
      %224 = vset.pattern.permute.xlu0 0
      %225 = vperm.xlu0 %224, %v126
      %v226 = vpop.permute.xlu0 %225
      %229 = vset.pattern.permute.xlu0 0
      %230 = vperm.xlu0 %229, %v127
      %v231 = vpop.permute.xlu0 %230
      %234 = vset.pattern.permute.xlu0 0
      %235 = vperm.xlu0 %234, %v128
      %v236 = vpop.permute.xlu0 %235
      %239 = vset.pattern.permute.xlu0 0
      %240 = vperm.xlu0 %239, %v129
      %v241 = vpop.permute.xlu0 %240
      %244 = vset.pattern.permute.xlu0 0
      %245 = vperm.xlu0 %244, %v130
      %v246 = vpop.permute.xlu0 %245
      %249 = vset.pattern.permute.xlu0 0
      %250 = vperm.xlu0 %249, %v131
      %v251 = vpop.permute.xlu0 %250
      %254 = vset.pattern.permute.xlu0 0
      %255 = vperm.xlu0 %254, %v132
      %v256 = vpop.permute.xlu0 %255
      %259 = vset.pattern.permute.xlu0 0
      %260 = vperm.xlu0 %259, %v133
      %v261 = vpop.permute.xlu0 %260
      %264 = vset.pattern.permute.xlu0 0
      %265 = vperm.xlu0 %264, %v134
      %v266 = vpop.permute.xlu0 %265
      %269 = vset.pattern.permute.xlu0 0
      %270 = vperm.xlu0 %269, %v135
      %v271 = vpop.permute.xlu0 %270
      %274 = vset.pattern.permute.xlu0 0
      %275 = vperm.xlu0 %274, %v136
      %v276 = vpop.permute.xlu0 %275
      %279 = vset.pattern.permute.xlu0 0
      %280 = vperm.xlu0 %279, %v137
      %v281 = vpop.permute.xlu0 %280
      %284 = vset.pattern.permute.xlu0 0
      %285 = vperm.xlu0 %284, %v138
      %v286 = vpop.permute.xlu0 %285
      %289 = vset.pattern.permute.xlu0 0
      %290 = vperm.xlu0 %289, %v139
      %v291 = vpop.permute.xlu0 %290
      %294 = vset.pattern.permute.xlu0 0
      %295 = vperm.xlu0 %294, %v140
      %v296 = vpop.permute.xlu0 %295
      %299 = vset.pattern.permute.xlu0 0
      %300 = vperm.xlu0 %299, %v141
      %v301 = vpop.permute.xlu0 %300
      %304 = vset.pattern.permute.xlu0 0
      %305 = vperm.xlu0 %304, %v142
      %v306 = vpop.permute.xlu0 %305
      %309 = vset.pattern.permute.xlu0 0
      %310 = vperm.xlu0 %309, %v143
      %v311 = vpop.permute.xlu0 %310
      %314 = vset.pattern.permute.xlu0 0
      %315 = vperm.xlu0 %314, %v144
      %v316 = vpop.permute.xlu0 %315
      %319 = vset.pattern.permute.xlu0 0
      %320 = vperm.xlu0 %319, %v145
      %v321 = vpop.permute.xlu0 %320
      %324 = vset.pattern.permute.xlu0 0
      %325 = vperm.xlu0 %324, %v146
      %v326 = vpop.permute.xlu0 %325
      %329 = vset.pattern.permute.xlu0 0
      %330 = vperm.xlu0 %329, %v147
      %v331 = vpop.permute.xlu0 %330
      %334 = vset.pattern.permute.xlu0 0
      %335 = vperm.xlu0 %334, %v148
      %v336 = vpop.permute.xlu0 %335
      %339 = vset.pattern.permute.xlu0 0
      %340 = vperm.xlu0 %339, %v149
      %v341 = vpop.permute.xlu0 %340
      %344 = vset.pattern.permute.xlu0 0
      %345 = vperm.xlu0 %344, %v150
      %v346 = vpop.permute.xlu0 %345
      %349 = vset.pattern.permute.xlu0 0
      %350 = vperm.xlu0 %349, %v151
      %v351 = vpop.permute.xlu0 %350
      %354 = vset.pattern.permute.xlu0 0
      %355 = vperm.xlu0 %354, %v152
      %v356 = vpop.permute.xlu0 %355
      %359 = vset.pattern.permute.xlu0 0
      %360 = vperm.xlu0 %359, %v153
      %v361 = vpop.permute.xlu0 %360
      %364 = vset.pattern.permute.xlu0 0
      %365 = vperm.xlu0 %364, %v154
      %v366 = vpop.permute.xlu0 %365
      %369 = vset.pattern.permute.xlu0 0
      %370 = vperm.xlu0 %369, %v155
      %v371 = vpop.permute.xlu0 %370
      %374 = vset.pattern.permute.xlu0 0
      %375 = vperm.xlu0 %374, %v156
      %v376 = vpop.permute.xlu0 %375
      %379 = vset.pattern.permute.xlu0 0
      %380 = vperm.xlu0 %379, %v157
      %v381 = vpop.permute.xlu0 %380
      %384 = vset.pattern.permute.xlu0 0
      %385 = vperm.xlu0 %384, %v158
      %v386 = vpop.permute.xlu0 %385
      %389 = vset.pattern.permute.xlu0 0
      %390 = vperm.xlu0 %389, %v159
      %v391 = vpop.permute.xlu0 %390
      %394 = vset.pattern.permute.xlu0 0
      %395 = vperm.xlu0 %394, %v160
      %v396 = vpop.permute.xlu0 %395
      %399 = vset.pattern.permute.xlu0 0
      %400 = vperm.xlu0 %399, %v161
      %v401 = vpop.permute.xlu0 %400
      %404 = vset.pattern.permute.xlu0 0
      %405 = vperm.xlu0 %404, %v162
      %v406 = vpop.permute.xlu0 %405
      %409 = vset.pattern.permute.xlu0 0
      %410 = vperm.xlu0 %409, %v163
      %v411 = vpop.permute.xlu0 %410
      %414 = vset.pattern.permute.xlu0 0
      %415 = vperm.xlu0 %414, %v164
      %v416 = vpop.permute.xlu0 %415
      %419 = vset.pattern.permute.xlu0 0
      %420 = vperm.xlu0 %419, %v165
      %v421 = vpop.permute.xlu0 %420
      %424 = vset.pattern.permute.xlu0 0
      %425 = vperm.xlu0 %424, %v166
      %v426 = vpop.permute.xlu0 %425
      %429 = vset.pattern.permute.xlu0 0
      %430 = vperm.xlu0 %429, %v167
      %v431 = vpop.permute.xlu0 %430
      %434 = vset.pattern.permute.xlu0 0
      %435 = vperm.xlu0 %434, %v168
      %v436 = vpop.permute.xlu0 %435
      %439 = vset.pattern.permute.xlu0 0
      %440 = vperm.xlu0 %439, %v169
      %v441 = vpop.permute.xlu0 %440
      %444 = vset.pattern.permute.xlu0 0
      %445 = vperm.xlu0 %444, %v170
      %v446 = vpop.permute.xlu0 %445
      %449 = vset.pattern.permute.xlu0 0
      %450 = vperm.xlu0 %449, %v171
      %v451 = vpop.permute.xlu0 %450
      %454 = vset.pattern.permute.xlu0 0
      %455 = vperm.xlu0 %454, %v172
      %v456 = vpop.permute.xlu0 %455
      %459 = vset.pattern.permute.xlu0 0
      %460 = vperm.xlu0 %459, %v173
      %v461 = vpop.permute.xlu0 %460
      %464 = vset.pattern.permute.xlu0 0
      %465 = vperm.xlu0 %464, %v174
      %v466 = vpop.permute.xlu0 %465
      %469 = vset.pattern.permute.xlu0 0
      %470 = vperm.xlu0 %469, %v175
      %v471 = vpop.permute.xlu0 %470
      %474 = vset.pattern.permute.xlu0 0
      %475 = vperm.xlu0 %474, %v176
      %v476 = vpop.permute.xlu0 %475
      %479 = vset.pattern.permute.xlu0 0
      %480 = vperm.xlu0 %479, %v177
      %v481 = vpop.permute.xlu0 %480
      %484 = vset.pattern.permute.xlu0 0
      %485 = vperm.xlu0 %484, %v178
      %v486 = vpop.permute.xlu0 %485
      %489 = vset.pattern.permute.xlu0 0
      %490 = vperm.xlu0 %489, %v179
      %v491 = vpop.permute.xlu0 %490
      %494 = vset.pattern.permute.xlu0 0
      %495 = vperm.xlu0 %494, %v180
      %v496 = vpop.permute.xlu0 %495
      %499 = vset.pattern.permute.xlu0 0
      %500 = vperm.xlu0 %499, %v181
      %v501 = vpop.permute.xlu0 %500
      %v503 = vlaneseq
      %v504 = vshrl.u32 %v503, 7
      %v505 = vsub.s32 0, %v504
      %v506 = vrot.slane %v182, %v505
      %v507 = vmul.f32 %v186, %v506
      %v508 = vmul.f32 %v191, %v506
      %v509 = vmul.f32 %v196, %v506
      %v510 = vmul.f32 %v201, %v506
      %v511 = vmul.f32 %v206, %v506
      %v512 = vmul.f32 %v211, %v506
      %v513 = vmul.f32 %v216, %v506
      %v514 = vmul.f32 %v221, %v506
      %v515 = vmul.f32 %v226, %v506
      %v516 = vmul.f32 %v231, %v506
      %v517 = vmul.f32 %v236, %v506
      %v518 = vmul.f32 %v241, %v506
      %v519 = vmul.f32 %v246, %v506
      %v520 = vmul.f32 %v251, %v506
      %v521 = vmul.f32 %v256, %v506
      %v522 = vmul.f32 %v261, %v506
      %v523 = vmul.f32 %v266, %v506
      %v524 = vmul.f32 %v271, %v506
      %v525 = vmul.f32 %v276, %v506
      %v526 = vmul.f32 %v281, %v506
      %v527 = vmul.f32 %v286, %v506
      %v528 = vmul.f32 %v291, %v506
      %v529 = vmul.f32 %v296, %v506
      %v530 = vmul.f32 %v301, %v506
      %v531 = vmul.f32 %v306, %v506
      %v532 = vmul.f32 %v311, %v506
      %v533 = vmul.f32 %v316, %v506
      %v534 = vmul.f32 %v321, %v506
      %v535 = vmul.f32 %v326, %v506
      %v536 = vmul.f32 %v331, %v506
      %v537 = vmul.f32 %v336, %v506
      %v538 = vmul.f32 %v341, %v506
      %v539 = vmul.f32 %v346, %v506
      %v540 = vmul.f32 %v351, %v506
      %v541 = vmul.f32 %v356, %v506
      %v542 = vmul.f32 %v361, %v506
      %v543 = vmul.f32 %v366, %v506
      %v544 = vmul.f32 %v371, %v506
      %v545 = vmul.f32 %v376, %v506
      %v546 = vmul.f32 %v381, %v506
      %v547 = vmul.f32 %v386, %v506
      %v548 = vmul.f32 %v391, %v506
      %v549 = vmul.f32 %v396, %v506
      %v550 = vmul.f32 %v401, %v506
      %v551 = vmul.f32 %v406, %v506
      %v552 = vmul.f32 %v411, %v506
      %v553 = vmul.f32 %v416, %v506
      %v554 = vmul.f32 %v421, %v506
      %v555 = vmul.f32 %v426, %v506
      %v556 = vmul.f32 %v431, %v506
      %v557 = vmul.f32 %v436, %v506
      %v558 = vmul.f32 %v441, %v506
      %v559 = vmul.f32 %v446, %v506
      %v560 = vmul.f32 %v451, %v506
      %v561 = vmul.f32 %v456, %v506
      %v562 = vmul.f32 %v461, %v506
      %v563 = vmul.f32 %v466, %v506
      %v564 = vmul.f32 %v471, %v506
      %v565 = vmul.f32 %v476, %v506
      %v566 = vmul.f32 %v481, %v506
      %v567 = vmul.f32 %v486, %v506
      %v568 = vmul.f32 %v491, %v506
      %v569 = vmul.f32 %v496, %v506
      %v570 = vmul.f32 %v501, %v506
      %571 = vset.pattern.permute.xlu0 1
      %572 = vperm.xlu0 %571, %v118
      %v573 = vpop.permute.xlu0 %572
      %575 = vset.pattern.permute.xlu0 1
      %576 = vperm.xlu0 %575, %v119
      %v577 = vpop.permute.xlu0 %576
      %579 = vset.pattern.permute.xlu0 1
      %580 = vperm.xlu0 %579, %v120
      %v581 = vpop.permute.xlu0 %580
      %583 = vset.pattern.permute.xlu0 1
      %584 = vperm.xlu0 %583, %v121
      %v585 = vpop.permute.xlu0 %584
      %587 = vset.pattern.permute.xlu0 1
      %588 = vperm.xlu0 %587, %v122
      %v589 = vpop.permute.xlu0 %588
      %591 = vset.pattern.permute.xlu0 1
      %592 = vperm.xlu0 %591, %v123
      %v593 = vpop.permute.xlu0 %592
      %595 = vset.pattern.permute.xlu0 1
      %596 = vperm.xlu0 %595, %v124
      %v597 = vpop.permute.xlu0 %596
      %599 = vset.pattern.permute.xlu0 1
      %600 = vperm.xlu0 %599, %v125
      %v601 = vpop.permute.xlu0 %600
      %603 = vset.pattern.permute.xlu0 1
      %604 = vperm.xlu0 %603, %v126
      %v605 = vpop.permute.xlu0 %604
      %607 = vset.pattern.permute.xlu0 1
      %608 = vperm.xlu0 %607, %v127
      %v609 = vpop.permute.xlu0 %608
      %611 = vset.pattern.permute.xlu0 1
      %612 = vperm.xlu0 %611, %v128
      %v613 = vpop.permute.xlu0 %612
      %615 = vset.pattern.permute.xlu0 1
      %616 = vperm.xlu0 %615, %v129
      %v617 = vpop.permute.xlu0 %616
      %619 = vset.pattern.permute.xlu0 1
      %620 = vperm.xlu0 %619, %v130
      %v621 = vpop.permute.xlu0 %620
      %623 = vset.pattern.permute.xlu0 1
      %624 = vperm.xlu0 %623, %v131
      %v625 = vpop.permute.xlu0 %624
      %627 = vset.pattern.permute.xlu0 1
      %628 = vperm.xlu0 %627, %v132
      %v629 = vpop.permute.xlu0 %628
      %631 = vset.pattern.permute.xlu0 1
      %632 = vperm.xlu0 %631, %v133
      %v633 = vpop.permute.xlu0 %632
      %635 = vset.pattern.permute.xlu0 1
      %636 = vperm.xlu0 %635, %v134
      %v637 = vpop.permute.xlu0 %636
      %639 = vset.pattern.permute.xlu0 1
      %640 = vperm.xlu0 %639, %v135
      %v641 = vpop.permute.xlu0 %640
      %643 = vset.pattern.permute.xlu0 1
      %644 = vperm.xlu0 %643, %v136
      %v645 = vpop.permute.xlu0 %644
      %647 = vset.pattern.permute.xlu0 1
      %648 = vperm.xlu0 %647, %v137
      %v649 = vpop.permute.xlu0 %648
      %651 = vset.pattern.permute.xlu0 1
      %652 = vperm.xlu0 %651, %v138
      %v653 = vpop.permute.xlu0 %652
      %655 = vset.pattern.permute.xlu0 1
      %656 = vperm.xlu0 %655, %v139
      %v657 = vpop.permute.xlu0 %656
      %659 = vset.pattern.permute.xlu0 1
      %660 = vperm.xlu0 %659, %v140
      %v661 = vpop.permute.xlu0 %660
      %663 = vset.pattern.permute.xlu0 1
      %664 = vperm.xlu0 %663, %v141
      %v665 = vpop.permute.xlu0 %664
      %667 = vset.pattern.permute.xlu0 1
      %668 = vperm.xlu0 %667, %v142
      %v669 = vpop.permute.xlu0 %668
      %671 = vset.pattern.permute.xlu0 1
      %672 = vperm.xlu0 %671, %v143
      %v673 = vpop.permute.xlu0 %672
      %675 = vset.pattern.permute.xlu0 1
      %676 = vperm.xlu0 %675, %v144
      %v677 = vpop.permute.xlu0 %676
      %679 = vset.pattern.permute.xlu0 1
      %680 = vperm.xlu0 %679, %v145
      %v681 = vpop.permute.xlu0 %680
      %683 = vset.pattern.permute.xlu0 1
      %684 = vperm.xlu0 %683, %v146
      %v685 = vpop.permute.xlu0 %684
      %687 = vset.pattern.permute.xlu0 1
      %688 = vperm.xlu0 %687, %v147
      %v689 = vpop.permute.xlu0 %688
      %691 = vset.pattern.permute.xlu0 1
      %692 = vperm.xlu0 %691, %v148
      %v693 = vpop.permute.xlu0 %692
      %695 = vset.pattern.permute.xlu0 1
      %696 = vperm.xlu0 %695, %v149
      %v697 = vpop.permute.xlu0 %696
      %699 = vset.pattern.permute.xlu0 1
      %700 = vperm.xlu0 %699, %v150
      %v701 = vpop.permute.xlu0 %700
      %703 = vset.pattern.permute.xlu0 1
      %704 = vperm.xlu0 %703, %v151
      %v705 = vpop.permute.xlu0 %704
      %707 = vset.pattern.permute.xlu0 1
      %708 = vperm.xlu0 %707, %v152
      %v709 = vpop.permute.xlu0 %708
      %711 = vset.pattern.permute.xlu0 1
      %712 = vperm.xlu0 %711, %v153
      %v713 = vpop.permute.xlu0 %712
      %715 = vset.pattern.permute.xlu0 1
      %716 = vperm.xlu0 %715, %v154
      %v717 = vpop.permute.xlu0 %716
      %719 = vset.pattern.permute.xlu0 1
      %720 = vperm.xlu0 %719, %v155
      %v721 = vpop.permute.xlu0 %720
      %723 = vset.pattern.permute.xlu0 1
      %724 = vperm.xlu0 %723, %v156
      %v725 = vpop.permute.xlu0 %724
      %727 = vset.pattern.permute.xlu0 1
      %728 = vperm.xlu0 %727, %v157
      %v729 = vpop.permute.xlu0 %728
      %731 = vset.pattern.permute.xlu0 1
      %732 = vperm.xlu0 %731, %v158
      %v733 = vpop.permute.xlu0 %732
      %735 = vset.pattern.permute.xlu0 1
      %736 = vperm.xlu0 %735, %v159
      %v737 = vpop.permute.xlu0 %736
      %739 = vset.pattern.permute.xlu0 1
      %740 = vperm.xlu0 %739, %v160
      %v741 = vpop.permute.xlu0 %740
      %743 = vset.pattern.permute.xlu0 1
      %744 = vperm.xlu0 %743, %v161
      %v745 = vpop.permute.xlu0 %744
      %747 = vset.pattern.permute.xlu0 1
      %748 = vperm.xlu0 %747, %v162
      %v749 = vpop.permute.xlu0 %748
      %751 = vset.pattern.permute.xlu0 1
      %752 = vperm.xlu0 %751, %v163
      %v753 = vpop.permute.xlu0 %752
      %755 = vset.pattern.permute.xlu0 1
      %756 = vperm.xlu0 %755, %v164
      %v757 = vpop.permute.xlu0 %756
      %759 = vset.pattern.permute.xlu0 1
      %760 = vperm.xlu0 %759, %v165
      %v761 = vpop.permute.xlu0 %760
      %763 = vset.pattern.permute.xlu0 1
      %764 = vperm.xlu0 %763, %v166
      %v765 = vpop.permute.xlu0 %764
      %767 = vset.pattern.permute.xlu0 1
      %768 = vperm.xlu0 %767, %v167
      %v769 = vpop.permute.xlu0 %768
      %771 = vset.pattern.permute.xlu0 1
      %772 = vperm.xlu0 %771, %v168
      %v773 = vpop.permute.xlu0 %772
      %775 = vset.pattern.permute.xlu0 1
      %776 = vperm.xlu0 %775, %v169
      %v777 = vpop.permute.xlu0 %776
      %779 = vset.pattern.permute.xlu0 1
      %780 = vperm.xlu0 %779, %v170
      %v781 = vpop.permute.xlu0 %780
      %783 = vset.pattern.permute.xlu0 1
      %784 = vperm.xlu0 %783, %v171
      %v785 = vpop.permute.xlu0 %784
      %787 = vset.pattern.permute.xlu0 1
      %788 = vperm.xlu0 %787, %v172
      %v789 = vpop.permute.xlu0 %788
      %791 = vset.pattern.permute.xlu0 1
      %792 = vperm.xlu0 %791, %v173
      %v793 = vpop.permute.xlu0 %792
      %795 = vset.pattern.permute.xlu0 1
      %796 = vperm.xlu0 %795, %v174
      %v797 = vpop.permute.xlu0 %796
      %799 = vset.pattern.permute.xlu0 1
      %800 = vperm.xlu0 %799, %v175
      %v801 = vpop.permute.xlu0 %800
      %803 = vset.pattern.permute.xlu0 1
      %804 = vperm.xlu0 %803, %v176
      %v805 = vpop.permute.xlu0 %804
      %807 = vset.pattern.permute.xlu0 1
      %808 = vperm.xlu0 %807, %v177
      %v809 = vpop.permute.xlu0 %808
      %811 = vset.pattern.permute.xlu0 1
      %812 = vperm.xlu0 %811, %v178
      %v813 = vpop.permute.xlu0 %812
      %815 = vset.pattern.permute.xlu0 1
      %816 = vperm.xlu0 %815, %v179
      %v817 = vpop.permute.xlu0 %816
      %819 = vset.pattern.permute.xlu0 1
      %820 = vperm.xlu0 %819, %v180
      %v821 = vpop.permute.xlu0 %820
      %823 = vset.pattern.permute.xlu0 1
      %824 = vperm.xlu0 %823, %v181
      %v825 = vpop.permute.xlu0 %824
      %v827 = vlaneseq
      %v828 = vshrl.u32 %v827, 7
      %v829 = vsub.s32 1, %v828
      %v830 = vrot.slane %v182, %v829
      %v831 = vmul.f32 %v573, %v830
      %v832 = vmul.f32 %v577, %v830
      %v833 = vmul.f32 %v581, %v830
      %v834 = vmul.f32 %v585, %v830
      %v835 = vmul.f32 %v589, %v830
      %v836 = vmul.f32 %v593, %v830
      %v837 = vmul.f32 %v597, %v830
      %v838 = vmul.f32 %v601, %v830
      %v839 = vmul.f32 %v605, %v830
      %v840 = vmul.f32 %v609, %v830
      %v841 = vmul.f32 %v613, %v830
      %v842 = vmul.f32 %v617, %v830
      %v843 = vmul.f32 %v621, %v830
      %v844 = vmul.f32 %v625, %v830
      %v845 = vmul.f32 %v629, %v830
      %v846 = vmul.f32 %v633, %v830
      %v847 = vmul.f32 %v637, %v830
      %v848 = vmul.f32 %v641, %v830
      %v849 = vmul.f32 %v645, %v830
      %v850 = vmul.f32 %v649, %v830
      %v851 = vmul.f32 %v653, %v830
      %v852 = vmul.f32 %v657, %v830
      %v853 = vmul.f32 %v661, %v830
      %v854 = vmul.f32 %v665, %v830
      %v855 = vmul.f32 %v669, %v830
      %v856 = vmul.f32 %v673, %v830
      %v857 = vmul.f32 %v677, %v830
      %v858 = vmul.f32 %v681, %v830
      %v859 = vmul.f32 %v685, %v830
      %v860 = vmul.f32 %v689, %v830
      %v861 = vmul.f32 %v693, %v830
      %v862 = vmul.f32 %v697, %v830
      %v863 = vmul.f32 %v701, %v830
      %v864 = vmul.f32 %v705, %v830
      %v865 = vmul.f32 %v709, %v830
      %v866 = vmul.f32 %v713, %v830
      %v867 = vmul.f32 %v717, %v830
      %v868 = vmul.f32 %v721, %v830
      %v869 = vmul.f32 %v725, %v830
      %v870 = vmul.f32 %v729, %v830
      %v871 = vmul.f32 %v733, %v830
      %v872 = vmul.f32 %v737, %v830
      %v873 = vmul.f32 %v741, %v830
      %v874 = vmul.f32 %v745, %v830
      %v875 = vmul.f32 %v749, %v830
      %v876 = vmul.f32 %v753, %v830
      %v877 = vmul.f32 %v757, %v830
      %v878 = vmul.f32 %v761, %v830
      %v879 = vmul.f32 %v765, %v830
      %v880 = vmul.f32 %v769, %v830
      %v881 = vmul.f32 %v773, %v830
      %v882 = vmul.f32 %v777, %v830
      %v883 = vmul.f32 %v781, %v830
      %v884 = vmul.f32 %v785, %v830
      %v885 = vmul.f32 %v789, %v830
      %v886 = vmul.f32 %v793, %v830
      %v887 = vmul.f32 %v797, %v830
      %v888 = vmul.f32 %v801, %v830
      %v889 = vmul.f32 %v805, %v830
      %v890 = vmul.f32 %v809, %v830
      %v891 = vmul.f32 %v813, %v830
      %v892 = vmul.f32 %v817, %v830
      %v893 = vmul.f32 %v821, %v830
      %v894 = vmul.f32 %v825, %v830
      %v895 = vadd.f32 %v507, %v831
      %v896 = vadd.f32 %v508, %v832
      %v897 = vadd.f32 %v509, %v833
      %v898 = vadd.f32 %v510, %v834
      %v899 = vadd.f32 %v511, %v835
      %v900 = vadd.f32 %v512, %v836
      %v901 = vadd.f32 %v513, %v837
      %v902 = vadd.f32 %v514, %v838
      %v903 = vadd.f32 %v515, %v839
      %v904 = vadd.f32 %v516, %v840
      %v905 = vadd.f32 %v517, %v841
      %v906 = vadd.f32 %v518, %v842
      %v907 = vadd.f32 %v519, %v843
      %v908 = vadd.f32 %v520, %v844
      %v909 = vadd.f32 %v521, %v845
      %v910 = vadd.f32 %v522, %v846
      %v911 = vadd.f32 %v523, %v847
      %v912 = vadd.f32 %v524, %v848
      %v913 = vadd.f32 %v525, %v849
      %v914 = vadd.f32 %v526, %v850
      %v915 = vadd.f32 %v527, %v851
      %v916 = vadd.f32 %v528, %v852
      %v917 = vadd.f32 %v529, %v853
      %v918 = vadd.f32 %v530, %v854
      %v919 = vadd.f32 %v531, %v855
      %v920 = vadd.f32 %v532, %v856
      %v921 = vadd.f32 %v533, %v857
      %v922 = vadd.f32 %v534, %v858
      %v923 = vadd.f32 %v535, %v859
      %v924 = vadd.f32 %v536, %v860
      %v925 = vadd.f32 %v537, %v861
      %v926 = vadd.f32 %v538, %v862
      %v927 = vadd.f32 %v539, %v863
      %v928 = vadd.f32 %v540, %v864
      %v929 = vadd.f32 %v541, %v865
      %v930 = vadd.f32 %v542, %v866
      %v931 = vadd.f32 %v543, %v867
      %v932 = vadd.f32 %v544, %v868
      %v933 = vadd.f32 %v545, %v869
      %v934 = vadd.f32 %v546, %v870
      %v935 = vadd.f32 %v547, %v871
      %v936 = vadd.f32 %v548, %v872
      %v937 = vadd.f32 %v549, %v873
      %v938 = vadd.f32 %v550, %v874
      %v939 = vadd.f32 %v551, %v875
      %v940 = vadd.f32 %v552, %v876
      %v941 = vadd.f32 %v553, %v877
      %v942 = vadd.f32 %v554, %v878
      %v943 = vadd.f32 %v555, %v879
      %v944 = vadd.f32 %v556, %v880
      %v945 = vadd.f32 %v557, %v881
      %v946 = vadd.f32 %v558, %v882
      %v947 = vadd.f32 %v559, %v883
      %v948 = vadd.f32 %v560, %v884
      %v949 = vadd.f32 %v561, %v885
      %v950 = vadd.f32 %v562, %v886
      %v951 = vadd.f32 %v563, %v887
      %v952 = vadd.f32 %v564, %v888
      %v953 = vadd.f32 %v565, %v889
      %v954 = vadd.f32 %v566, %v890
      %v955 = vadd.f32 %v567, %v891
      %v956 = vadd.f32 %v568, %v892
      %v957 = vadd.f32 %v569, %v893
      %v958 = vadd.f32 %v570, %v894
      %959 = vset.pattern.permute.xlu0 2
      %960 = vperm.xlu0 %959, %v118
      %v961 = vpop.permute.xlu0 %960
      %963 = vset.pattern.permute.xlu0 2
      %964 = vperm.xlu0 %963, %v119
      %v965 = vpop.permute.xlu0 %964
      %967 = vset.pattern.permute.xlu0 2
      %968 = vperm.xlu0 %967, %v120
      %v969 = vpop.permute.xlu0 %968
      %971 = vset.pattern.permute.xlu0 2
      %972 = vperm.xlu0 %971, %v121
      %v973 = vpop.permute.xlu0 %972
      %975 = vset.pattern.permute.xlu0 2
      %976 = vperm.xlu0 %975, %v122
      %v977 = vpop.permute.xlu0 %976
      %979 = vset.pattern.permute.xlu0 2
      %980 = vperm.xlu0 %979, %v123
      %v981 = vpop.permute.xlu0 %980
      %983 = vset.pattern.permute.xlu0 2
      %984 = vperm.xlu0 %983, %v124
      %v985 = vpop.permute.xlu0 %984
      %987 = vset.pattern.permute.xlu0 2
      %988 = vperm.xlu0 %987, %v125
      %v989 = vpop.permute.xlu0 %988
      %991 = vset.pattern.permute.xlu0 2
      %992 = vperm.xlu0 %991, %v126
      %v993 = vpop.permute.xlu0 %992
      %995 = vset.pattern.permute.xlu0 2
      %996 = vperm.xlu0 %995, %v127
      %v997 = vpop.permute.xlu0 %996
      %999 = vset.pattern.permute.xlu0 2
      %1000 = vperm.xlu0 %999, %v128
      %v1001 = vpop.permute.xlu0 %1000
      %1003 = vset.pattern.permute.xlu0 2
      %1004 = vperm.xlu0 %1003, %v129
      %v1005 = vpop.permute.xlu0 %1004
      %1007 = vset.pattern.permute.xlu0 2
      %1008 = vperm.xlu0 %1007, %v130
      %v1009 = vpop.permute.xlu0 %1008
      %1011 = vset.pattern.permute.xlu0 2
      %1012 = vperm.xlu0 %1011, %v131
      %v1013 = vpop.permute.xlu0 %1012
      %1015 = vset.pattern.permute.xlu0 2
      %1016 = vperm.xlu0 %1015, %v132
      %v1017 = vpop.permute.xlu0 %1016
      %1019 = vset.pattern.permute.xlu0 2
      %1020 = vperm.xlu0 %1019, %v133
      %v1021 = vpop.permute.xlu0 %1020
      %1023 = vset.pattern.permute.xlu0 2
      %1024 = vperm.xlu0 %1023, %v134
      %v1025 = vpop.permute.xlu0 %1024
      %1027 = vset.pattern.permute.xlu0 2
      %1028 = vperm.xlu0 %1027, %v135
      %v1029 = vpop.permute.xlu0 %1028
      %1031 = vset.pattern.permute.xlu0 2
      %1032 = vperm.xlu0 %1031, %v136
      %v1033 = vpop.permute.xlu0 %1032
      %1035 = vset.pattern.permute.xlu0 2
      %1036 = vperm.xlu0 %1035, %v137
      %v1037 = vpop.permute.xlu0 %1036
      %1039 = vset.pattern.permute.xlu0 2
      %1040 = vperm.xlu0 %1039, %v138
      %v1041 = vpop.permute.xlu0 %1040
      %1043 = vset.pattern.permute.xlu0 2
      %1044 = vperm.xlu0 %1043, %v139
      %v1045 = vpop.permute.xlu0 %1044
      %1047 = vset.pattern.permute.xlu0 2
      %1048 = vperm.xlu0 %1047, %v140
      %v1049 = vpop.permute.xlu0 %1048
      %1051 = vset.pattern.permute.xlu0 2
      %1052 = vperm.xlu0 %1051, %v141
      %v1053 = vpop.permute.xlu0 %1052
      %1055 = vset.pattern.permute.xlu0 2
      %1056 = vperm.xlu0 %1055, %v142
      %v1057 = vpop.permute.xlu0 %1056
      %1059 = vset.pattern.permute.xlu0 2
      %1060 = vperm.xlu0 %1059, %v143
      %v1061 = vpop.permute.xlu0 %1060
      %1063 = vset.pattern.permute.xlu0 2
      %1064 = vperm.xlu0 %1063, %v144
      %v1065 = vpop.permute.xlu0 %1064
      %1067 = vset.pattern.permute.xlu0 2
      %1068 = vperm.xlu0 %1067, %v145
      %v1069 = vpop.permute.xlu0 %1068
      %1071 = vset.pattern.permute.xlu0 2
      %1072 = vperm.xlu0 %1071, %v146
      %v1073 = vpop.permute.xlu0 %1072
      %1075 = vset.pattern.permute.xlu0 2
      %1076 = vperm.xlu0 %1075, %v147
      %v1077 = vpop.permute.xlu0 %1076
      %1079 = vset.pattern.permute.xlu0 2
      %1080 = vperm.xlu0 %1079, %v148
      %v1081 = vpop.permute.xlu0 %1080
      %1083 = vset.pattern.permute.xlu0 2
      %1084 = vperm.xlu0 %1083, %v149
      %v1085 = vpop.permute.xlu0 %1084
      %1087 = vset.pattern.permute.xlu0 2
      %1088 = vperm.xlu0 %1087, %v150
      %v1089 = vpop.permute.xlu0 %1088
      %1091 = vset.pattern.permute.xlu0 2
      %1092 = vperm.xlu0 %1091, %v151
      %v1093 = vpop.permute.xlu0 %1092
      %1095 = vset.pattern.permute.xlu0 2
      %1096 = vperm.xlu0 %1095, %v152
      %v1097 = vpop.permute.xlu0 %1096
      %1099 = vset.pattern.permute.xlu0 2
      %1100 = vperm.xlu0 %1099, %v153
      %v1101 = vpop.permute.xlu0 %1100
      %1103 = vset.pattern.permute.xlu0 2
      %1104 = vperm.xlu0 %1103, %v154
      %v1105 = vpop.permute.xlu0 %1104
      %1107 = vset.pattern.permute.xlu0 2
      %1108 = vperm.xlu0 %1107, %v155
      %v1109 = vpop.permute.xlu0 %1108
      %1111 = vset.pattern.permute.xlu0 2
      %1112 = vperm.xlu0 %1111, %v156
      %v1113 = vpop.permute.xlu0 %1112
      %1115 = vset.pattern.permute.xlu0 2
      %1116 = vperm.xlu0 %1115, %v157
      %v1117 = vpop.permute.xlu0 %1116
      %1119 = vset.pattern.permute.xlu0 2
      %1120 = vperm.xlu0 %1119, %v158
      %v1121 = vpop.permute.xlu0 %1120
      %1123 = vset.pattern.permute.xlu0 2
      %1124 = vperm.xlu0 %1123, %v159
      %v1125 = vpop.permute.xlu0 %1124
      %1127 = vset.pattern.permute.xlu0 2
      %1128 = vperm.xlu0 %1127, %v160
      %v1129 = vpop.permute.xlu0 %1128
      %1131 = vset.pattern.permute.xlu0 2
      %1132 = vperm.xlu0 %1131, %v161
      %v1133 = vpop.permute.xlu0 %1132
      %1135 = vset.pattern.permute.xlu0 2
      %1136 = vperm.xlu0 %1135, %v162
      %v1137 = vpop.permute.xlu0 %1136
      %1139 = vset.pattern.permute.xlu0 2
      %1140 = vperm.xlu0 %1139, %v163
      %v1141 = vpop.permute.xlu0 %1140
      %1143 = vset.pattern.permute.xlu0 2
      %1144 = vperm.xlu0 %1143, %v164
      %v1145 = vpop.permute.xlu0 %1144
      %1147 = vset.pattern.permute.xlu0 2
      %1148 = vperm.xlu0 %1147, %v165
      %v1149 = vpop.permute.xlu0 %1148
      %1151 = vset.pattern.permute.xlu0 2
      %1152 = vperm.xlu0 %1151, %v166
      %v1153 = vpop.permute.xlu0 %1152
      %1155 = vset.pattern.permute.xlu0 2
      %1156 = vperm.xlu0 %1155, %v167
      %v1157 = vpop.permute.xlu0 %1156
      %1159 = vset.pattern.permute.xlu0 2
      %1160 = vperm.xlu0 %1159, %v168
      %v1161 = vpop.permute.xlu0 %1160
      %1163 = vset.pattern.permute.xlu0 2
      %1164 = vperm.xlu0 %1163, %v169
      %v1165 = vpop.permute.xlu0 %1164
      %1167 = vset.pattern.permute.xlu0 2
      %1168 = vperm.xlu0 %1167, %v170
      %v1169 = vpop.permute.xlu0 %1168
      %1171 = vset.pattern.permute.xlu0 2
      %1172 = vperm.xlu0 %1171, %v171
      %v1173 = vpop.permute.xlu0 %1172
      %1175 = vset.pattern.permute.xlu0 2
      %1176 = vperm.xlu0 %1175, %v172
      %v1177 = vpop.permute.xlu0 %1176
      %1179 = vset.pattern.permute.xlu0 2
      %1180 = vperm.xlu0 %1179, %v173
      %v1181 = vpop.permute.xlu0 %1180
      %1183 = vset.pattern.permute.xlu0 2
      %1184 = vperm.xlu0 %1183, %v174
      %v1185 = vpop.permute.xlu0 %1184
      %1187 = vset.pattern.permute.xlu0 2
      %1188 = vperm.xlu0 %1187, %v175
      %v1189 = vpop.permute.xlu0 %1188
      %1191 = vset.pattern.permute.xlu0 2
      %1192 = vperm.xlu0 %1191, %v176
      %v1193 = vpop.permute.xlu0 %1192
      %1195 = vset.pattern.permute.xlu0 2
      %1196 = vperm.xlu0 %1195, %v177
      %v1197 = vpop.permute.xlu0 %1196
      %1199 = vset.pattern.permute.xlu0 2
      %1200 = vperm.xlu0 %1199, %v178
      %v1201 = vpop.permute.xlu0 %1200
      %1203 = vset.pattern.permute.xlu0 2
      %1204 = vperm.xlu0 %1203, %v179
      %v1205 = vpop.permute.xlu0 %1204
      %1207 = vset.pattern.permute.xlu0 2
      %1208 = vperm.xlu0 %1207, %v180
      %v1209 = vpop.permute.xlu0 %1208
      %1211 = vset.pattern.permute.xlu0 2
      %1212 = vperm.xlu0 %1211, %v181
      %v1213 = vpop.permute.xlu0 %1212
      %v1215 = vlaneseq
      %v1216 = vshrl.u32 %v1215, 7
      %v1217 = vsub.s32 2, %v1216
      %v1218 = vrot.slane %v182, %v1217
      %v1219 = vmul.f32 %v961, %v1218
      %v1220 = vmul.f32 %v965, %v1218
      %v1221 = vmul.f32 %v969, %v1218
      %v1222 = vmul.f32 %v973, %v1218
      %v1223 = vmul.f32 %v977, %v1218
      %v1224 = vmul.f32 %v981, %v1218
      %v1225 = vmul.f32 %v985, %v1218
      %v1226 = vmul.f32 %v989, %v1218
      %v1227 = vmul.f32 %v993, %v1218
      %v1228 = vmul.f32 %v997, %v1218
      %v1229 = vmul.f32 %v1001, %v1218
      %v1230 = vmul.f32 %v1005, %v1218
      %v1231 = vmul.f32 %v1009, %v1218
      %v1232 = vmul.f32 %v1013, %v1218
      %v1233 = vmul.f32 %v1017, %v1218
      %v1234 = vmul.f32 %v1021, %v1218
      %v1235 = vmul.f32 %v1025, %v1218
      %v1236 = vmul.f32 %v1029, %v1218
      %v1237 = vmul.f32 %v1033, %v1218
      %v1238 = vmul.f32 %v1037, %v1218
      %v1239 = vmul.f32 %v1041, %v1218
      %v1240 = vmul.f32 %v1045, %v1218
      %v1241 = vmul.f32 %v1049, %v1218
      %v1242 = vmul.f32 %v1053, %v1218
      %v1243 = vmul.f32 %v1057, %v1218
      %v1244 = vmul.f32 %v1061, %v1218
      %v1245 = vmul.f32 %v1065, %v1218
      %v1246 = vmul.f32 %v1069, %v1218
      %v1247 = vmul.f32 %v1073, %v1218
      %v1248 = vmul.f32 %v1077, %v1218
      %v1249 = vmul.f32 %v1081, %v1218
      %v1250 = vmul.f32 %v1085, %v1218
      %v1251 = vmul.f32 %v1089, %v1218
      %v1252 = vmul.f32 %v1093, %v1218
      %v1253 = vmul.f32 %v1097, %v1218
      %v1254 = vmul.f32 %v1101, %v1218
      %v1255 = vmul.f32 %v1105, %v1218
      %v1256 = vmul.f32 %v1109, %v1218
      %v1257 = vmul.f32 %v1113, %v1218
      %v1258 = vmul.f32 %v1117, %v1218
      %v1259 = vmul.f32 %v1121, %v1218
      %v1260 = vmul.f32 %v1125, %v1218
      %v1261 = vmul.f32 %v1129, %v1218
      %v1262 = vmul.f32 %v1133, %v1218
      %v1263 = vmul.f32 %v1137, %v1218
      %v1264 = vmul.f32 %v1141, %v1218
      %v1265 = vmul.f32 %v1145, %v1218
      %v1266 = vmul.f32 %v1149, %v1218
      %v1267 = vmul.f32 %v1153, %v1218
      %v1268 = vmul.f32 %v1157, %v1218
      %v1269 = vmul.f32 %v1161, %v1218
      %v1270 = vmul.f32 %v1165, %v1218
      %v1271 = vmul.f32 %v1169, %v1218
      %v1272 = vmul.f32 %v1173, %v1218
      %v1273 = vmul.f32 %v1177, %v1218
      %v1274 = vmul.f32 %v1181, %v1218
      %v1275 = vmul.f32 %v1185, %v1218
      %v1276 = vmul.f32 %v1189, %v1218
      %v1277 = vmul.f32 %v1193, %v1218
      %v1278 = vmul.f32 %v1197, %v1218
      %v1279 = vmul.f32 %v1201, %v1218
      %v1280 = vmul.f32 %v1205, %v1218
      %v1281 = vmul.f32 %v1209, %v1218
      %v1282 = vmul.f32 %v1213, %v1218
      %v1283 = vadd.f32 %v895, %v1219
      %v1284 = vadd.f32 %v896, %v1220
      %v1285 = vadd.f32 %v897, %v1221
      %v1286 = vadd.f32 %v898, %v1222
      %v1287 = vadd.f32 %v899, %v1223
      %v1288 = vadd.f32 %v900, %v1224
      %v1289 = vadd.f32 %v901, %v1225
      %v1290 = vadd.f32 %v902, %v1226
      %v1291 = vadd.f32 %v903, %v1227
      %v1292 = vadd.f32 %v904, %v1228
      %v1293 = vadd.f32 %v905, %v1229
      %v1294 = vadd.f32 %v906, %v1230
      %v1295 = vadd.f32 %v907, %v1231
      %v1296 = vadd.f32 %v908, %v1232
      %v1297 = vadd.f32 %v909, %v1233
      %v1298 = vadd.f32 %v910, %v1234
      %v1299 = vadd.f32 %v911, %v1235
      %v1300 = vadd.f32 %v912, %v1236
      %v1301 = vadd.f32 %v913, %v1237
      %v1302 = vadd.f32 %v914, %v1238
      %v1303 = vadd.f32 %v915, %v1239
      %v1304 = vadd.f32 %v916, %v1240
      %v1305 = vadd.f32 %v917, %v1241
      %v1306 = vadd.f32 %v918, %v1242
      %v1307 = vadd.f32 %v919, %v1243
      %v1308 = vadd.f32 %v920, %v1244
      %v1309 = vadd.f32 %v921, %v1245
      %v1310 = vadd.f32 %v922, %v1246
      %v1311 = vadd.f32 %v923, %v1247
      %v1312 = vadd.f32 %v924, %v1248
      %v1313 = vadd.f32 %v925, %v1249
      %v1314 = vadd.f32 %v926, %v1250
      %v1315 = vadd.f32 %v927, %v1251
      %v1316 = vadd.f32 %v928, %v1252
      %v1317 = vadd.f32 %v929, %v1253
      %v1318 = vadd.f32 %v930, %v1254
      %v1319 = vadd.f32 %v931, %v1255
      %v1320 = vadd.f32 %v932, %v1256
      %v1321 = vadd.f32 %v933, %v1257
      %v1322 = vadd.f32 %v934, %v1258
      %v1323 = vadd.f32 %v935, %v1259
      %v1324 = vadd.f32 %v936, %v1260
      %v1325 = vadd.f32 %v937, %v1261
      %v1326 = vadd.f32 %v938, %v1262
      %v1327 = vadd.f32 %v939, %v1263
      %v1328 = vadd.f32 %v940, %v1264
      %v1329 = vadd.f32 %v941, %v1265
      %v1330 = vadd.f32 %v942, %v1266
      %v1331 = vadd.f32 %v943, %v1267
      %v1332 = vadd.f32 %v944, %v1268
      %v1333 = vadd.f32 %v945, %v1269
      %v1334 = vadd.f32 %v946, %v1270
      %v1335 = vadd.f32 %v947, %v1271
      %v1336 = vadd.f32 %v948, %v1272
      %v1337 = vadd.f32 %v949, %v1273
      %v1338 = vadd.f32 %v950, %v1274
      %v1339 = vadd.f32 %v951, %v1275
      %v1340 = vadd.f32 %v952, %v1276
      %v1341 = vadd.f32 %v953, %v1277
      %v1342 = vadd.f32 %v954, %v1278
      %v1343 = vadd.f32 %v955, %v1279
      %v1344 = vadd.f32 %v956, %v1280
      %v1345 = vadd.f32 %v957, %v1281
      %v1346 = vadd.f32 %v958, %v1282
      %v1347 = vlaneseq
      %v1348 = vshrl.u32 %v1347, 7
      %v1349 = vsub.s32 0, %v1348
      %v1350 = vrot.slane %v112, %v1349
      %v1351 = vadd.f32 %v1283, %v1350
      %v1352 = vadd.f32 %v1284, %v1350
      %v1353 = vadd.f32 %v1285, %v1350
      %v1354 = vadd.f32 %v1286, %v1350
      %v1355 = vadd.f32 %v1287, %v1350
      %v1356 = vadd.f32 %v1288, %v1350
      %v1357 = vadd.f32 %v1289, %v1350
      %v1358 = vadd.f32 %v1290, %v1350
      %v1359 = vadd.f32 %v1291, %v1350
      %v1360 = vadd.f32 %v1292, %v1350
      %v1361 = vadd.f32 %v1293, %v1350
      %v1362 = vadd.f32 %v1294, %v1350
      %v1363 = vadd.f32 %v1295, %v1350
      %v1364 = vadd.f32 %v1296, %v1350
      %v1365 = vadd.f32 %v1297, %v1350
      %v1366 = vadd.f32 %v1298, %v1350
      %v1367 = vadd.f32 %v1299, %v1350
      %v1368 = vadd.f32 %v1300, %v1350
      %v1369 = vadd.f32 %v1301, %v1350
      %v1370 = vadd.f32 %v1302, %v1350
      %v1371 = vadd.f32 %v1303, %v1350
      %v1372 = vadd.f32 %v1304, %v1350
      %v1373 = vadd.f32 %v1305, %v1350
      %v1374 = vadd.f32 %v1306, %v1350
      %v1375 = vadd.f32 %v1307, %v1350
      %v1376 = vadd.f32 %v1308, %v1350
      %v1377 = vadd.f32 %v1309, %v1350
      %v1378 = vadd.f32 %v1310, %v1350
      %v1379 = vadd.f32 %v1311, %v1350
      %v1380 = vadd.f32 %v1312, %v1350
      %v1381 = vadd.f32 %v1313, %v1350
      %v1382 = vadd.f32 %v1314, %v1350
      %v1383 = vadd.f32 %v1315, %v1350
      %v1384 = vadd.f32 %v1316, %v1350
      %v1385 = vadd.f32 %v1317, %v1350
      %v1386 = vadd.f32 %v1318, %v1350
      %v1387 = vadd.f32 %v1319, %v1350
      %v1388 = vadd.f32 %v1320, %v1350
      %v1389 = vadd.f32 %v1321, %v1350
      %v1390 = vadd.f32 %v1322, %v1350
      %v1391 = vadd.f32 %v1323, %v1350
      %v1392 = vadd.f32 %v1324, %v1350
      %v1393 = vadd.f32 %v1325, %v1350
      %v1394 = vadd.f32 %v1326, %v1350
      %v1395 = vadd.f32 %v1327, %v1350
      %v1396 = vadd.f32 %v1328, %v1350
      %v1397 = vadd.f32 %v1329, %v1350
      %v1398 = vadd.f32 %v1330, %v1350
      %v1399 = vadd.f32 %v1331, %v1350
      %v1400 = vadd.f32 %v1332, %v1350
      %v1401 = vadd.f32 %v1333, %v1350
      %v1402 = vadd.f32 %v1334, %v1350
      %v1403 = vadd.f32 %v1335, %v1350
      %v1404 = vadd.f32 %v1336, %v1350
      %v1405 = vadd.f32 %v1337, %v1350
      %v1406 = vadd.f32 %v1338, %v1350
      %v1407 = vadd.f32 %v1339, %v1350
      %v1408 = vadd.f32 %v1340, %v1350
      %v1409 = vadd.f32 %v1341, %v1350
      %v1410 = vadd.f32 %v1342, %v1350
      %v1411 = vadd.f32 %v1343, %v1350
      %v1412 = vadd.f32 %v1344, %v1350
      %v1413 = vadd.f32 %v1345, %v1350
      %v1414 = vadd.f32 %v1346, %v1350
      %v1415 = vmax.f32 %v1351, 0.0
      %v1416 = vmax.f32 %v1352, 0.0
      %v1417 = vmax.f32 %v1353, 0.0
      %v1418 = vmax.f32 %v1354, 0.0
      %v1419 = vmax.f32 %v1355, 0.0
      %v1420 = vmax.f32 %v1356, 0.0
      %v1421 = vmax.f32 %v1357, 0.0
      %v1422 = vmax.f32 %v1358, 0.0
      %v1423 = vmax.f32 %v1359, 0.0
      %v1424 = vmax.f32 %v1360, 0.0
      %v1425 = vmax.f32 %v1361, 0.0
      %v1426 = vmax.f32 %v1362, 0.0
      %v1427 = vmax.f32 %v1363, 0.0
      %v1428 = vmax.f32 %v1364, 0.0
      %v1429 = vmax.f32 %v1365, 0.0
      %v1430 = vmax.f32 %v1366, 0.0
      %v1431 = vmax.f32 %v1367, 0.0
      %v1432 = vmax.f32 %v1368, 0.0
      %v1433 = vmax.f32 %v1369, 0.0
      %v1434 = vmax.f32 %v1370, 0.0
      %v1435 = vmax.f32 %v1371, 0.0
      %v1436 = vmax.f32 %v1372, 0.0
      %v1437 = vmax.f32 %v1373, 0.0
      %v1438 = vmax.f32 %v1374, 0.0
      %v1439 = vmax.f32 %v1375, 0.0
      %v1440 = vmax.f32 %v1376, 0.0
      %v1441 = vmax.f32 %v1377, 0.0
      %v1442 = vmax.f32 %v1378, 0.0
      %v1443 = vmax.f32 %v1379, 0.0
      %v1444 = vmax.f32 %v1380, 0.0
      %v1445 = vmax.f32 %v1381, 0.0
      %v1446 = vmax.f32 %v1382, 0.0
      %v1447 = vmax.f32 %v1383, 0.0
      %v1448 = vmax.f32 %v1384, 0.0
      %v1449 = vmax.f32 %v1385, 0.0
      %v1450 = vmax.f32 %v1386, 0.0
      %v1451 = vmax.f32 %v1387, 0.0
      %v1452 = vmax.f32 %v1388, 0.0
      %v1453 = vmax.f32 %v1389, 0.0
      %v1454 = vmax.f32 %v1390, 0.0
      %v1455 = vmax.f32 %v1391, 0.0
      %v1456 = vmax.f32 %v1392, 0.0
      %v1457 = vmax.f32 %v1393, 0.0
      %v1458 = vmax.f32 %v1394, 0.0
      %v1459 = vmax.f32 %v1395, 0.0
      %v1460 = vmax.f32 %v1396, 0.0
      %v1461 = vmax.f32 %v1397, 0.0
      %v1462 = vmax.f32 %v1398, 0.0
      %v1463 = vmax.f32 %v1399, 0.0
      %v1464 = vmax.f32 %v1400, 0.0
      %v1465 = vmax.f32 %v1401, 0.0
      %v1466 = vmax.f32 %v1402, 0.0
      %v1467 = vmax.f32 %v1403, 0.0
      %v1468 = vmax.f32 %v1404, 0.0
      %v1469 = vmax.f32 %v1405, 0.0
      %v1470 = vmax.f32 %v1406, 0.0
      %v1471 = vmax.f32 %v1407, 0.0
      %v1472 = vmax.f32 %v1408, 0.0
      %v1473 = vmax.f32 %v1409, 0.0
      %v1474 = vmax.f32 %v1410, 0.0
      %v1475 = vmax.f32 %v1411, 0.0
      %v1476 = vmax.f32 %v1412, 0.0
      %v1477 = vmax.f32 %v1413, 0.0
      %v1478 = vmax.f32 %v1414, 0.0
      %v1479 = vadd.f32 %v1415, %v1416
      %v1480 = vadd.f32 %v1479, %v1417
      %v1481 = vadd.f32 %v1480, %v1418
      %v1482 = vadd.f32 %v1481, %v1419
      %v1483 = vadd.f32 %v1482, %v1420
      %v1484 = vadd.f32 %v1483, %v1421
      %v1485 = vadd.f32 %v1484, %v1422
      %v1486 = vrot.slane %v1485, 4
      %v1487 = vadd.f32 %v1485, %v1486
      %v1488 = vrot.slane %v1487, 2
      %v1489 = vadd.f32 %v1487, %v1488
      %v1490 = vrot.slane %v1489, 1
      %v1491 = vadd.f32 %v1489, %v1490
      %v1492 = vadd.f32 %v1423, %v1424
      %v1493 = vadd.f32 %v1492, %v1425
      %v1494 = vadd.f32 %v1493, %v1426
      %v1495 = vadd.f32 %v1494, %v1427
      %v1496 = vadd.f32 %v1495, %v1428
      %v1497 = vadd.f32 %v1496, %v1429
      %v1498 = vadd.f32 %v1497, %v1430
      %v1499 = vrot.slane %v1498, 4
      %v1500 = vadd.f32 %v1498, %v1499
      %v1501 = vrot.slane %v1500, 2
      %v1502 = vadd.f32 %v1500, %v1501
      %v1503 = vrot.slane %v1502, 1
      %v1504 = vadd.f32 %v1502, %v1503
      %v1505 = vadd.f32 %v1431, %v1432
      %v1506 = vadd.f32 %v1505, %v1433
      %v1507 = vadd.f32 %v1506, %v1434
      %v1508 = vadd.f32 %v1507, %v1435
      %v1509 = vadd.f32 %v1508, %v1436
      %v1510 = vadd.f32 %v1509, %v1437
      %v1511 = vadd.f32 %v1510, %v1438
      %v1512 = vrot.slane %v1511, 4
      %v1513 = vadd.f32 %v1511, %v1512
      %v1514 = vrot.slane %v1513, 2
      %v1515 = vadd.f32 %v1513, %v1514
      %v1516 = vrot.slane %v1515, 1
      %v1517 = vadd.f32 %v1515, %v1516
      %v1518 = vadd.f32 %v1439, %v1440
      %v1519 = vadd.f32 %v1518, %v1441
      %v1520 = vadd.f32 %v1519, %v1442
      %v1521 = vadd.f32 %v1520, %v1443
      %v1522 = vadd.f32 %v1521, %v1444
      %v1523 = vadd.f32 %v1522, %v1445
      %v1524 = vadd.f32 %v1523, %v1446
      %v1525 = vrot.slane %v1524, 4
      %v1526 = vadd.f32 %v1524, %v1525
      %v1527 = vrot.slane %v1526, 2
      %v1528 = vadd.f32 %v1526, %v1527
      %v1529 = vrot.slane %v1528, 1
      %v1530 = vadd.f32 %v1528, %v1529
      %v1531 = vadd.f32 %v1447, %v1448
      %v1532 = vadd.f32 %v1531, %v1449
      %v1533 = vadd.f32 %v1532, %v1450
      %v1534 = vadd.f32 %v1533, %v1451
      %v1535 = vadd.f32 %v1534, %v1452
      %v1536 = vadd.f32 %v1535, %v1453
      %v1537 = vadd.f32 %v1536, %v1454
      %v1538 = vrot.slane %v1537, 4
      %v1539 = vadd.f32 %v1537, %v1538
      %v1540 = vrot.slane %v1539, 2
      %v1541 = vadd.f32 %v1539, %v1540
      %v1542 = vrot.slane %v1541, 1
      %v1543 = vadd.f32 %v1541, %v1542
      %v1544 = vadd.f32 %v1455, %v1456
      %v1545 = vadd.f32 %v1544, %v1457
      %v1546 = vadd.f32 %v1545, %v1458
      %v1547 = vadd.f32 %v1546, %v1459
      %v1548 = vadd.f32 %v1547, %v1460
      %v1549 = vadd.f32 %v1548, %v1461
      %v1550 = vadd.f32 %v1549, %v1462
      %v1551 = vrot.slane %v1550, 4
      %v1552 = vadd.f32 %v1550, %v1551
      %v1553 = vrot.slane %v1552, 2
      %v1554 = vadd.f32 %v1552, %v1553
      %v1555 = vrot.slane %v1554, 1
      %v1556 = vadd.f32 %v1554, %v1555
      %v1557 = vadd.f32 %v1463, %v1464
      %v1558 = vadd.f32 %v1557, %v1465
      %v1559 = vadd.f32 %v1558, %v1466
      %v1560 = vadd.f32 %v1559, %v1467
      %v1561 = vadd.f32 %v1560, %v1468
      %v1562 = vadd.f32 %v1561, %v1469
      %v1563 = vadd.f32 %v1562, %v1470
      %v1564 = vrot.slane %v1563, 4
      %v1565 = vadd.f32 %v1563, %v1564
      %v1566 = vrot.slane %v1565, 2
      %v1567 = vadd.f32 %v1565, %v1566
      %v1568 = vrot.slane %v1567, 1
      %v1569 = vadd.f32 %v1567, %v1568
      %v1570 = vadd.f32 %v1471, %v1472
      %v1571 = vadd.f32 %v1570, %v1473
      %v1572 = vadd.f32 %v1571, %v1474
      %v1573 = vadd.f32 %v1572, %v1475
      %v1574 = vadd.f32 %v1573, %v1476
      %v1575 = vadd.f32 %v1574, %v1477
      %v1576 = vadd.f32 %v1575, %v1478
      %v1577 = vrot.slane %v1576, 4
      %v1578 = vadd.f32 %v1576, %v1577
      %v1579 = vrot.slane %v1578, 2
      %v1580 = vadd.f32 %v1578, %v1579
      %v1581 = vrot.slane %v1580, 1
      %v1582 = vadd.f32 %v1580, %v1581
      %v1583 = vmul.f32 %v1491, 0.015625
      %v1584 = vmul.f32 %v1504, 0.015625
      %v1585 = vmul.f32 %v1517, 0.015625
      %v1586 = vmul.f32 %v1530, 0.015625
      %v1587 = vmul.f32 %v1543, 0.015625
      %v1588 = vmul.f32 %v1556, 0.015625
      %v1589 = vmul.f32 %v1569, 0.015625
      %v1590 = vmul.f32 %v1582, 0.015625
      %v1591 = vpack.c.bf16 %v1583, %v1583
      %v1592 = vpack.c.bf16 %v1584, %v1584
      %v1593 = vpack.c.bf16 %v1585, %v1585
      %v1594 = vpack.c.bf16 %v1586, %v1586
      %v1595 = vpack.c.bf16 %v1587, %v1587
      %v1596 = vpack.c.bf16 %v1588, %v1588
      %v1597 = vpack.c.bf16 %v1589, %v1589
      %v1598 = vpack.c.bf16 %v1590, %v1590
      %v1599 = vld [vmem:[%s3] sm:$0xf]
      %v1600 = vld [vmem:[%s3 + $0x4] sm:$0xf]
      %v1601 = vld [vmem:[%s3 + $0x8] sm:$0xf]
      %v1602 = vld [vmem:[%s3 + $0xc] sm:$0xf]
      %v1603 = vld [vmem:[%s3 + $0x10] sm:$0xf]
      %v1604 = vld [vmem:[%s3 + $0x14] sm:$0xf]
      %v1605 = vld [vmem:[%s3 + $0x18] sm:$0xf]
      %v1606 = vld [vmem:[%s3 + $0x1c] sm:$0xf]
      %v1607 = vld [vmem:[%s3 + $0x20] sm:$0xf]
      %v1608 = vld [vmem:[%s3 + $0x24] sm:$0xf]
      %v1609 = vld [vmem:[%s3 + $0x28] sm:$0xf]
      %v1610 = vld [vmem:[%s3 + $0x2c] sm:$0xf]
      %v1611 = vld [vmem:[%s3 + $0x30] sm:$0xf]
      %v1612 = vld [vmem:[%s3 + $0x34] sm:$0xf]
      %v1613 = vld [vmem:[%s3 + $0x38] sm:$0xf]
      %v1614 = vld [vmem:[%s3 + $0x3c] sm:$0xf]
      %v1615 = vlaneseq
      %v1616 = vshrl.u32 %v1615, 7
      %v1617 = vsub.s32 1, %v1616
      %v1618 = vrot.slane %v112, %v1617
      %v1627 = vunpack.c.l.b16 %v1591
      %v1628 = vunpack.c.l.b16 %v1592
      %v1629 = vunpack.c.l.b16 %v1593
      %v1630 = vunpack.c.l.b16 %v1594
      %v1631 = vunpack.c.l.b16 %v1595
      %v1632 = vunpack.c.l.b16 %v1596
      %v1633 = vunpack.c.l.b16 %v1597
      %v1634 = vunpack.c.l.b16 %v1598
      %vm1635 = vcmask 1041409
      %v1636 = vsel %vm1635, %v1628, %v1627
      %vm1637 = vcmask 1042434
      %v1638 = vsel %vm1637, %v1629, %v1636
      %vm1639 = vcmask 1043459
      %v1640 = vsel %vm1639, %v1630, %v1638
      %vm1641 = vcmask 1044484
      %v1642 = vsel %vm1641, %v1631, %v1640
      %vm1643 = vcmask 1045509
      %v1644 = vsel %vm1643, %v1632, %v1642
      %vm1645 = vcmask 1046534
      %v1646 = vsel %vm1645, %v1633, %v1644
      %vm1647 = vcmask 1047559
      %v1648 = vsel %vm1647, %v1634, %v1646
      %v1649 = vpack.c.b16 %v1648, %v1648
      %v1667 = vunpack.c.l.b16 %v1599
      %v1668 = vunpack.c.l.b16 %v1600
      %v1669 = vunpack.c.l.b16 %v1601
      %v1670 = vunpack.c.l.b16 %v1602
      %v1671 = vunpack.c.l.b16 %v1603
      %v1672 = vunpack.c.l.b16 %v1604
      %v1673 = vunpack.c.l.b16 %v1605
      %v1674 = vunpack.c.l.b16 %v1606
      %v1675 = vunpack.c.l.b16 %v1607
      %v1676 = vunpack.c.l.b16 %v1608
      %v1677 = vunpack.c.l.b16 %v1609
      %v1678 = vunpack.c.l.b16 %v1610
      %v1679 = vunpack.c.l.b16 %v1611
      %v1680 = vunpack.c.l.b16 %v1612
      %v1681 = vunpack.c.l.b16 %v1613
      %v1682 = vunpack.c.l.b16 %v1614
      %v1683 = vpack.c.b16 %v1668, %v1667
      %v1684 = vpack.c.b16 %v1670, %v1669
      %v1685 = vpack.c.b16 %v1672, %v1671
      %v1686 = vpack.c.b16 %v1674, %v1673
      %v1687 = vpack.c.b16 %v1676, %v1675
      %v1688 = vpack.c.b16 %v1678, %v1677
      %v1689 = vpack.c.b16 %v1680, %v1679
      %v1690 = vpack.c.b16 %v1682, %v1681
      %1699 = vmatprep.subr.bf16.mxu0 0
      %1700 = vmatpush1.bf16.msra.mxu0 %v1690
      %1701 = vmatprep.subr.bf16.mxu0 0
      %1702 = vmatpush1.bf16.msra.mxu0 %v1689
      %1703 = vmatprep.subr.bf16.mxu0 0
      %1704 = vmatpush1.bf16.msra.mxu0 %v1688
      %1705 = vmatprep.subr.bf16.mxu0 0
      %1706 = vmatpush1.bf16.msra.mxu0 %v1687
      %1707 = vmatprep.subr.bf16.mxu0 0
      %1708 = vmatpush1.bf16.msra.mxu0 %v1686
      %1709 = vmatprep.subr.bf16.mxu0 0
      %1710 = vmatpush1.bf16.msra.mxu0 %v1685
      %1711 = vmatprep.subr.bf16.mxu0 0
      %1712 = vmatpush1.bf16.msra.mxu0 %v1684
      %1713 = vmatprep.subr.bf16.mxu0 0
      %1714 = vmatpush1.bf16.msra.mxu0 %v1683
      %1715 = vmatprep.subr.bf16.mxu0 0
      %1716 = vmatpush2.bf16.msra.mxu0 0
      %1717 = vmatprep.subr.bf16.mxu0 0
      %1718 = vmatpush2.bf16.msra.mxu0 0
      %1719 = vmatprep.subr.bf16.mxu0 0
      %1720 = vmatpush2.bf16.msra.mxu0 0
      %1721 = vmatprep.subr.bf16.mxu0 0
      %1722 = vmatpush2.bf16.msra.mxu0 0
      %1723 = vmatprep.subr.bf16.mxu0 0
      %1724 = vmatpush2.bf16.msra.mxu0 0
      %1725 = vmatprep.subr.bf16.mxu0 0
      %1726 = vmatpush2.bf16.msra.mxu0 0
      %1727 = vmatprep.subr.bf16.mxu0 0
      %1728 = vmatpush2.bf16.msra.mxu0 0
      %1729 = vmatprep.subr.bf16.mxu0 0
      %1730 = vmatpush2.bf16.msra.mxu0 0
      %1731 = vmatprep.mubr.bf16.mxu0 0
      %1732 = vmatmul.mubr.bf16.gmra.mxu0 %v1649
      %v1733 = vpop.f32.mrf.mxu0
      %v1734 = vadd.f32 %v1618, %v1733
      %v1735 = vpop.f32.mrf.mxu0
      %v1736 = vpop.f32.mrf.mxu0
      %v1737 = vpop.f32.mrf.mxu0
      %1738 = vdwg.mxu0
      %v1739 = vrot.slane %v1734, 4
      %v1740 = vadd.f32 %v1734, %v1739
      %v1741 = vrot.slane %v1740, 2
      %v1742 = vadd.f32 %v1740, %v1741
      %v1743 = vrot.slane %v1742, 1
      %v1744 = vadd.f32 %v1742, %v1743
      %v1745 = vrcp.pop 8.0
      %v1746 = vmul.f32 %v1744, %v1745
      %v1747 = vsub.f32 %v1734, %v1746
      %v1748 = vmul.f32 %v1747, %v1747
      %v1749 = vrot.slane %v1748, 4
      %v1750 = vadd.f32 %v1748, %v1749
      %v1751 = vrot.slane %v1750, 2
      %v1752 = vadd.f32 %v1750, %v1751
      %v1753 = vrot.slane %v1752, 1
      %v1754 = vadd.f32 %v1752, %v1753
      %v1755 = vmul.f32 %v1754, %v1745
      %v1756 = vadd.f32 %v1755, 1e-05
      %v1757 = vrsqrt.pop %v1756
      %v1758 = vmul.f32 %v1747, %v1757
      %v1759 = vlaneseq
      %v1760 = vshrl.u32 %v1759, 7
      %v1761 = vsub.s32 2, %v1760
      %v1762 = vrot.slane %v112, %v1761
      %v1763 = vmul.f32 %v1758, %v1762
      %v1764 = vlaneseq
      %v1765 = vshrl.u32 %v1764, 7
      %v1766 = vsub.s32 3, %v1765
      %v1767 = vrot.slane %v112, %v1766
      %v1768 = vadd.f32 %v1763, %v1767
      %v1769 = vmax.f32 %v1768, 0.0
      %v1770 = vpack.c.bf16 %v1769, %v1769
      %v1771 = vld [vmem:[#allocation3] sm:$0xf]
      %v1772 = vld [vmem:[#allocation3 + $0x4] sm:$0xf]
      %v1773 = vld [vmem:[#allocation3 + $0x8] sm:$0xf]
      %v1774 = vld [vmem:[#allocation3 + $0xc] sm:$0xf]
      %v1775 = vld [vmem:[#allocation3 + $0x10] sm:$0xf]
      %v1776 = vld [vmem:[#allocation3 + $0x14] sm:$0xf]
      %v1777 = vld [vmem:[#allocation3 + $0x18] sm:$0xf]
      %v1778 = vld [vmem:[#allocation3 + $0x1c] sm:$0xf]
      %v1779 = vld [vmem:[#allocation3 + $0x20] sm:$0xf]
      %v1780 = vld [vmem:[#allocation3 + $0x24] sm:$0xf]
      %v1781 = vld [vmem:[#allocation3 + $0x28] sm:$0xf]
      %v1782 = vld [vmem:[#allocation3 + $0x2c] sm:$0xf]
      %v1783 = vld [vmem:[#allocation3 + $0x30] sm:$0xf]
      %v1784 = vld [vmem:[#allocation3 + $0x34] sm:$0xf]
      %v1785 = vld [vmem:[#allocation3 + $0x38] sm:$0xf]
      %v1786 = vld [vmem:[#allocation3 + $0x3c] sm:$0xf]
      %v1787 = vlaneseq
      %v1788 = vshrl.u32 %v1787, 7
      %v1789 = vsub.s32 4, %v1788
      %v1790 = vrot.slane %v112, %v1789
      %v1807 = vunpack.c.l.b16 %v1771
      %v1808 = vunpack.c.l.b16 %v1772
      %v1809 = vunpack.c.l.b16 %v1773
      %v1810 = vunpack.c.l.b16 %v1774
      %v1811 = vunpack.c.l.b16 %v1775
      %v1812 = vunpack.c.l.b16 %v1776
      %v1813 = vunpack.c.l.b16 %v1777
      %v1814 = vunpack.c.l.b16 %v1778
      %v1815 = vunpack.c.l.b16 %v1779
      %v1816 = vunpack.c.l.b16 %v1780
      %v1817 = vunpack.c.l.b16 %v1781
      %v1818 = vunpack.c.l.b16 %v1782
      %v1819 = vunpack.c.l.b16 %v1783
      %v1820 = vunpack.c.l.b16 %v1784
      %v1821 = vunpack.c.l.b16 %v1785
      %v1822 = vunpack.c.l.b16 %v1786
      %v1823 = vpack.c.b16 %v1808, %v1807
      %v1824 = vpack.c.b16 %v1810, %v1809
      %v1825 = vpack.c.b16 %v1812, %v1811
      %v1826 = vpack.c.b16 %v1814, %v1813
      %v1827 = vpack.c.b16 %v1816, %v1815
      %v1828 = vpack.c.b16 %v1818, %v1817
      %v1829 = vpack.c.b16 %v1820, %v1819
      %v1830 = vpack.c.b16 %v1822, %v1821
      %1839 = vmatprep.subr.bf16.mxu0 0
      %1840 = vmatpush1.bf16.msra.mxu0 %v1830
      %1841 = vmatprep.subr.bf16.mxu0 0
      %1842 = vmatpush1.bf16.msra.mxu0 %v1829
      %1843 = vmatprep.subr.bf16.mxu0 0
      %1844 = vmatpush1.bf16.msra.mxu0 %v1828
      %1845 = vmatprep.subr.bf16.mxu0 0
      %1846 = vmatpush1.bf16.msra.mxu0 %v1827
      %1847 = vmatprep.subr.bf16.mxu0 0
      %1848 = vmatpush1.bf16.msra.mxu0 %v1826
      %1849 = vmatprep.subr.bf16.mxu0 0
      %1850 = vmatpush1.bf16.msra.mxu0 %v1825
      %1851 = vmatprep.subr.bf16.mxu0 0
      %1852 = vmatpush1.bf16.msra.mxu0 %v1824
      %1853 = vmatprep.subr.bf16.mxu0 0
      %1854 = vmatpush1.bf16.msra.mxu0 %v1823
      %1855 = vmatprep.subr.bf16.mxu0 0
      %1856 = vmatpush2.bf16.msra.mxu0 0
      %1857 = vmatprep.subr.bf16.mxu0 0
      %1858 = vmatpush2.bf16.msra.mxu0 0
      %1859 = vmatprep.subr.bf16.mxu0 0
      %1860 = vmatpush2.bf16.msra.mxu0 0
      %1861 = vmatprep.subr.bf16.mxu0 0
      %1862 = vmatpush2.bf16.msra.mxu0 0
      %1863 = vmatprep.subr.bf16.mxu0 0
      %1864 = vmatpush2.bf16.msra.mxu0 0
      %1865 = vmatprep.subr.bf16.mxu0 0
      %1866 = vmatpush2.bf16.msra.mxu0 0
      %1867 = vmatprep.subr.bf16.mxu0 0
      %1868 = vmatpush2.bf16.msra.mxu0 0
      %1869 = vmatprep.subr.bf16.mxu0 0
      %1870 = vmatpush2.bf16.msra.mxu0 0
      %1871 = vmatprep.mubr.bf16.mxu0 0
      %1872 = vmatmul.mubr.bf16.gmra.mxu0 %v1770
      %v1873 = vpop.f32.mrf.mxu0
      %v1874 = vadd.f32 %v1790, %v1873
      %v1875 = vpop.f32.mrf.mxu0
      %v1876 = vpop.f32.mrf.mxu0
      %v1877 = vpop.f32.mrf.mxu0
      %1878 = vdwg.mxu0
      %v1879 = vrot.slane %v1874, 4
      %v1880 = vadd.f32 %v1874, %v1879
      %v1881 = vrot.slane %v1880, 2
      %v1882 = vadd.f32 %v1880, %v1881
      %v1883 = vrot.slane %v1882, 1
      %v1884 = vadd.f32 %v1882, %v1883
      %v1885 = vmul.f32 %v1884, %v1745
      %v1886 = vsub.f32 %v1874, %v1885
      %v1887 = vmul.f32 %v1886, %v1886
      %v1888 = vrot.slane %v1887, 4
      %v1889 = vadd.f32 %v1887, %v1888
      %v1890 = vrot.slane %v1889, 2
      %v1891 = vadd.f32 %v1889, %v1890
      %v1892 = vrot.slane %v1891, 1
      %v1893 = vadd.f32 %v1891, %v1892
      %v1894 = vmul.f32 %v1893, %v1745
      %v1895 = vadd.f32 %v1894, 1e-05
      %v1896 = vrsqrt.pop %v1895
      %v1897 = vmul.f32 %v1886, %v1896
      %v1898 = vlaneseq
      %v1899 = vshrl.u32 %v1898, 7
      %v1900 = vsub.s32 5, %v1899
      %v1901 = vrot.slane %v112, %v1900
      %v1902 = vmul.f32 %v1897, %v1901
      %v1903 = vlaneseq
      %v1904 = vshrl.u32 %v1903, 7
      %v1905 = vsub.s32 6, %v1904
      %v1906 = vrot.slane %v112, %v1905
      %v1907 = vadd.f32 %v1902, %v1906
      %v1908 = vmax.f32 %v1907, 0.0
      %v1909 = vpack.c.bf16 %v1908, %v1908
      %v1910 = vld [vmem:[#allocation6] sm:$0xf]
      %v1911 = vld [vmem:[#allocation6 + $0x4] sm:$0xf]
      %v1912 = vld [vmem:[#allocation6 + $0x8] sm:$0xf]
      %v1913 = vld [vmem:[#allocation6 + $0xc] sm:$0xf]
      %v1914 = vld [vmem:[#allocation6 + $0x10] sm:$0xf]
      %v1915 = vld [vmem:[#allocation6 + $0x14] sm:$0xf]
      %v1916 = vld [vmem:[#allocation6 + $0x18] sm:$0xf]
      %v1917 = vld [vmem:[#allocation6 + $0x1c] sm:$0xf]
      %v1918 = vld [vmem:[#allocation6 + $0x20] sm:$0xf]
      %v1919 = vld [vmem:[#allocation6 + $0x24] sm:$0xf]
      %v1920 = vld [vmem:[#allocation6 + $0x28] sm:$0xf]
      %v1921 = vld [vmem:[#allocation6 + $0x2c] sm:$0xf]
      %v1922 = vld [vmem:[#allocation6 + $0x30] sm:$0xf]
      %v1923 = vld [vmem:[#allocation6 + $0x34] sm:$0xf]
      %v1924 = vld [vmem:[#allocation6 + $0x38] sm:$0xf]
      %v1925 = vld [vmem:[#allocation6 + $0x3c] sm:$0xf]
      %v1926 = vlaneseq
      %v1927 = vshrl.u32 %v1926, 7
      %v1928 = vsub.s32 7, %v1927
      %v1929 = vrot.slane %v112, %v1928
      %v1946 = vunpack.c.l.b16 %v1910
      %v1947 = vunpack.c.l.b16 %v1911
      %v1948 = vunpack.c.l.b16 %v1912
      %v1949 = vunpack.c.l.b16 %v1913
      %v1950 = vunpack.c.l.b16 %v1914
      %v1951 = vunpack.c.l.b16 %v1915
      %v1952 = vunpack.c.l.b16 %v1916
      %v1953 = vunpack.c.l.b16 %v1917
      %v1954 = vunpack.c.l.b16 %v1918
      %v1955 = vunpack.c.l.b16 %v1919
      %v1956 = vunpack.c.l.b16 %v1920
      %v1957 = vunpack.c.l.b16 %v1921
      %v1958 = vunpack.c.l.b16 %v1922
      %v1959 = vunpack.c.l.b16 %v1923
      %v1960 = vunpack.c.l.b16 %v1924
      %v1961 = vunpack.c.l.b16 %v1925
      %v1962 = vpack.c.b16 %v1947, %v1946
      %v1963 = vpack.c.b16 %v1949, %v1948
      %v1964 = vpack.c.b16 %v1951, %v1950
      %v1965 = vpack.c.b16 %v1953, %v1952
      %v1966 = vpack.c.b16 %v1955, %v1954
      %v1967 = vpack.c.b16 %v1957, %v1956
      %v1968 = vpack.c.b16 %v1959, %v1958
      %v1969 = vpack.c.b16 %v1961, %v1960
      %1978 = vmatprep.subr.bf16.mxu0 0
      %1979 = vmatpush1.bf16.msra.mxu0 %v1969
      %1980 = vmatprep.subr.bf16.mxu0 0
      %1981 = vmatpush1.bf16.msra.mxu0 %v1968
      %1982 = vmatprep.subr.bf16.mxu0 0
      %1983 = vmatpush1.bf16.msra.mxu0 %v1967
      %1984 = vmatprep.subr.bf16.mxu0 0
      %1985 = vmatpush1.bf16.msra.mxu0 %v1966
      %1986 = vmatprep.subr.bf16.mxu0 0
      %1987 = vmatpush1.bf16.msra.mxu0 %v1965
      %1988 = vmatprep.subr.bf16.mxu0 0
      %1989 = vmatpush1.bf16.msra.mxu0 %v1964
      %1990 = vmatprep.subr.bf16.mxu0 0
      %1991 = vmatpush1.bf16.msra.mxu0 %v1963
      %1992 = vmatprep.subr.bf16.mxu0 0
      %1993 = vmatpush1.bf16.msra.mxu0 %v1962
      %1994 = vmatprep.subr.bf16.mxu0 0
      %1995 = vmatpush2.bf16.msra.mxu0 0
      %1996 = vmatprep.subr.bf16.mxu0 0
      %1997 = vmatpush2.bf16.msra.mxu0 0
      %1998 = vmatprep.subr.bf16.mxu0 0
      %1999 = vmatpush2.bf16.msra.mxu0 0
      %2000 = vmatprep.subr.bf16.mxu0 0
      %2001 = vmatpush2.bf16.msra.mxu0 0
      %2002 = vmatprep.subr.bf16.mxu0 0
      %2003 = vmatpush2.bf16.msra.mxu0 0
      %2004 = vmatprep.subr.bf16.mxu0 0
      %2005 = vmatpush2.bf16.msra.mxu0 0
      %2006 = vmatprep.subr.bf16.mxu0 0
      %2007 = vmatpush2.bf16.msra.mxu0 0
      %2008 = vmatprep.subr.bf16.mxu0 0
      %2009 = vmatpush2.bf16.msra.mxu0 0
      %2010 = vmatprep.mubr.bf16.mxu0 0
      %2011 = vmatmul.mubr.bf16.gmra.mxu0 %v1909
      %v2012 = vpop.f32.mrf.mxu0
      %v2013 = vadd.f32 %v1929, %v2012
      %v2014 = vpop.f32.mrf.mxu0
      %v2015 = vpop.f32.mrf.mxu0
      %v2016 = vpop.f32.mrf.mxu0
      %2017 = vdwg.mxu0
      %v2018 = vrot.slane %v2013, 4
      %v2019 = vadd.f32 %v2013, %v2018
      %v2020 = vrot.slane %v2019, 2
      %v2021 = vadd.f32 %v2019, %v2020
      %v2022 = vrot.slane %v2021, 1
      %v2023 = vadd.f32 %v2021, %v2022
      %v2024 = vmul.f32 %v2023, %v1745
      %v2025 = vsub.f32 %v2013, %v2024
      %v2026 = vmul.f32 %v2025, %v2025
      %v2027 = vrot.slane %v2026, 4
      %v2028 = vadd.f32 %v2026, %v2027
      %v2029 = vrot.slane %v2028, 2
      %v2030 = vadd.f32 %v2028, %v2029
      %v2031 = vrot.slane %v2030, 1
      %v2032 = vadd.f32 %v2030, %v2031
      %v2033 = vmul.f32 %v2032, %v1745
      %v2034 = vadd.f32 %v2033, 1e-05
      %v2035 = vrsqrt.pop %v2034
      %v2036 = vmul.f32 %v2025, %v2035
      %v2037 = vlaneseq
      %v2038 = vshrl.u32 %v2037, 7
      %v2039 = vsub.s32 0, %v2038
      %v2040 = vrot.slane %v113, %v2039
      %v2041 = vmul.f32 %v2036, %v2040
      %v2042 = vlaneseq
      %v2043 = vshrl.u32 %v2042, 7
      %v2044 = vsub.s32 1, %v2043
      %v2045 = vrot.slane %v113, %v2044
      %v2046 = vadd.f32 %v2041, %v2045
      %v2047 = vpack.c.bf16 %v2046, %v2046
      %v2048 = vld [vmem:[#allocation8] sm:$0xf]
      %v2049 = vld [vmem:[#allocation8 + $0x4] sm:$0xf]
      %v2050 = vld [vmem:[#allocation8 + $0x8] sm:$0xf]
      %v2051 = vld [vmem:[#allocation8 + $0xc] sm:$0xf]
      %v2052 = vld [vmem:[#allocation8 + $0x10] sm:$0xf]
      %v2053 = vld [vmem:[#allocation8 + $0x14] sm:$0xf]
      %v2054 = vld [vmem:[#allocation8 + $0x18] sm:$0xf]
      %v2055 = vld [vmem:[#allocation8 + $0x1c] sm:$0xf]
      %v2056 = vld [vmem:[#allocation8 + $0x20] sm:$0xf]
      %v2057 = vld [vmem:[#allocation8 + $0x24] sm:$0xf]
      %v2058 = vld [vmem:[#allocation8 + $0x28] sm:$0xf]
      %v2059 = vld [vmem:[#allocation8 + $0x2c] sm:$0xf]
      %v2060 = vld [vmem:[#allocation8 + $0x30] sm:$0xf]
      %v2061 = vld [vmem:[#allocation8 + $0x34] sm:$0xf]
      %v2062 = vld [vmem:[#allocation8 + $0x38] sm:$0xf]
      %v2063 = vld [vmem:[#allocation8 + $0x3c] sm:$0xf]
      %v2064 = vlaneseq
      %v2065 = vshrl.u32 %v2064, 7
      %v2066 = vsub.s32 2, %v2065
      %v2067 = vrot.slane %v113, %v2066
      %v2084 = vunpack.c.l.b16 %v2048
      %v2085 = vunpack.c.l.b16 %v2049
      %v2086 = vunpack.c.l.b16 %v2050
      %v2087 = vunpack.c.l.b16 %v2051
      %v2088 = vunpack.c.l.b16 %v2052
      %v2089 = vunpack.c.l.b16 %v2053
      %v2090 = vunpack.c.l.b16 %v2054
      %v2091 = vunpack.c.l.b16 %v2055
      %v2092 = vunpack.c.l.b16 %v2056
      %v2093 = vunpack.c.l.b16 %v2057
      %v2094 = vunpack.c.l.b16 %v2058
      %v2095 = vunpack.c.l.b16 %v2059
      %v2096 = vunpack.c.l.b16 %v2060
      %v2097 = vunpack.c.l.b16 %v2061
      %v2098 = vunpack.c.l.b16 %v2062
      %v2099 = vunpack.c.l.b16 %v2063
      %v2100 = vpack.c.b16 %v2085, %v2084
      %v2101 = vpack.c.b16 %v2087, %v2086
      %v2102 = vpack.c.b16 %v2089, %v2088
      %v2103 = vpack.c.b16 %v2091, %v2090
      %v2104 = vpack.c.b16 %v2093, %v2092
      %v2105 = vpack.c.b16 %v2095, %v2094
      %v2106 = vpack.c.b16 %v2097, %v2096
      %v2107 = vpack.c.b16 %v2099, %v2098
      %2116 = vmatprep.subr.bf16.mxu0 0
      %2117 = vmatpush1.bf16.msra.mxu0 %v2107
      %2118 = vmatprep.subr.bf16.mxu0 0
      %2119 = vmatpush1.bf16.msra.mxu0 %v2106
      %2120 = vmatprep.subr.bf16.mxu0 0
      %2121 = vmatpush1.bf16.msra.mxu0 %v2105
      %2122 = vmatprep.subr.bf16.mxu0 0
      %2123 = vmatpush1.bf16.msra.mxu0 %v2104
      %2124 = vmatprep.subr.bf16.mxu0 0
      %2125 = vmatpush1.bf16.msra.mxu0 %v2103
      %2126 = vmatprep.subr.bf16.mxu0 0
      %2127 = vmatpush1.bf16.msra.mxu0 %v2102
      %2128 = vmatprep.subr.bf16.mxu0 0
      %2129 = vmatpush1.bf16.msra.mxu0 %v2101
      %2130 = vmatprep.subr.bf16.mxu0 0
      %2131 = vmatpush1.bf16.msra.mxu0 %v2100
      %2132 = vmatprep.subr.bf16.mxu0 0
      %2133 = vmatpush2.bf16.msra.mxu0 0
      %2134 = vmatprep.subr.bf16.mxu0 0
      %2135 = vmatpush2.bf16.msra.mxu0 0
      %2136 = vmatprep.subr.bf16.mxu0 0
      %2137 = vmatpush2.bf16.msra.mxu0 0
      %2138 = vmatprep.subr.bf16.mxu0 0
      %2139 = vmatpush2.bf16.msra.mxu0 0
      %2140 = vmatprep.subr.bf16.mxu0 0
      %2141 = vmatpush2.bf16.msra.mxu0 0
      %2142 = vmatprep.subr.bf16.mxu0 0
      %2143 = vmatpush2.bf16.msra.mxu0 0
      %2144 = vmatprep.subr.bf16.mxu0 0
      %2145 = vmatpush2.bf16.msra.mxu0 0
      %2146 = vmatprep.subr.bf16.mxu0 0
      %2147 = vmatpush2.bf16.msra.mxu0 0
      %2148 = vmatprep.mubr.bf16.mxu0 0
      %2149 = vmatmul.mubr.bf16.gmra.mxu0 %v2047
      %v2150 = vpop.f32.mrf.mxu0
      %v2151 = vadd.f32 %v2067, %v2150
      %v2152 = vpop.f32.mrf.mxu0
      %v2153 = vpop.f32.mrf.mxu0
      %v2154 = vpop.f32.mrf.mxu0
      %2155 = vdwg.mxu0
      %v2156 = vrot.slane %v2151, 4
      %v2157 = vadd.f32 %v2151, %v2156
      %v2158 = vrot.slane %v2157, 2
      %v2159 = vadd.f32 %v2157, %v2158
      %v2160 = vrot.slane %v2159, 1
      %v2161 = vadd.f32 %v2159, %v2160
      %v2162 = vmul.f32 %v2161, %v1745
      %v2163 = vsub.f32 %v2151, %v2162
      %v2164 = vmul.f32 %v2163, %v2163
      %v2165 = vrot.slane %v2164, 4
      %v2166 = vadd.f32 %v2164, %v2165
      %v2167 = vrot.slane %v2166, 2
      %v2168 = vadd.f32 %v2166, %v2167
      %v2169 = vrot.slane %v2168, 1
      %v2170 = vadd.f32 %v2168, %v2169
      %v2171 = vmul.f32 %v2170, %v1745
      %v2172 = vadd.f32 %v2171, 1e-05
      %v2173 = vrsqrt.pop %v2172
      %v2174 = vmul.f32 %v2163, %v2173
      %v2175 = vlaneseq
      %v2176 = vshrl.u32 %v2175, 7
      %v2177 = vsub.s32 3, %v2176
      %v2178 = vrot.slane %v113, %v2177
      %v2179 = vmul.f32 %v2174, %v2178
      %v2180 = vlaneseq
      %v2181 = vshrl.u32 %v2180, 7
      %v2182 = vsub.s32 4, %v2181
      %v2183 = vrot.slane %v113, %v2182
      %v2184 = vadd.f32 %v2179, %v2183
      %v2185 = vmax.f32 %v2184, 0.0
      %v2186 = vpack.c.bf16 %v2185, %v2185
      %v2187 = vld [vmem:[#allocation9] sm:$0xf]
      %v2188 = vld [vmem:[#allocation9 + $0x4] sm:$0xf]
      %v2189 = vld [vmem:[#allocation9 + $0x8] sm:$0xf]
      %v2190 = vld [vmem:[#allocation9 + $0xc] sm:$0xf]
      %v2191 = vld [vmem:[#allocation9 + $0x10] sm:$0xf]
      %v2192 = vld [vmem:[#allocation9 + $0x14] sm:$0xf]
      %v2193 = vld [vmem:[#allocation9 + $0x18] sm:$0xf]
      %v2194 = vld [vmem:[#allocation9 + $0x1c] sm:$0xf]
      %v2195 = vld [vmem:[#allocation9 + $0x20] sm:$0xf]
      %v2196 = vld [vmem:[#allocation9 + $0x24] sm:$0xf]
      %v2197 = vld [vmem:[#allocation9 + $0x28] sm:$0xf]
      %v2198 = vld [vmem:[#allocation9 + $0x2c] sm:$0xf]
      %v2199 = vld [vmem:[#allocation9 + $0x30] sm:$0xf]
      %v2200 = vld [vmem:[#allocation9 + $0x34] sm:$0xf]
      %v2201 = vld [vmem:[#allocation9 + $0x38] sm:$0xf]
      %v2202 = vld [vmem:[#allocation9 + $0x3c] sm:$0xf]
      %v2203 = vlaneseq
      %v2204 = vshrl.u32 %v2203, 7
      %v2205 = vsub.s32 5, %v2204
      %v2206 = vrot.slane %v113, %v2205
      %v2223 = vunpack.c.l.b16 %v2187
      %v2224 = vunpack.c.l.b16 %v2188
      %v2225 = vunpack.c.l.b16 %v2189
      %v2226 = vunpack.c.l.b16 %v2190
      %v2227 = vunpack.c.l.b16 %v2191
      %v2228 = vunpack.c.l.b16 %v2192
      %v2229 = vunpack.c.l.b16 %v2193
      %v2230 = vunpack.c.l.b16 %v2194
      %v2231 = vunpack.c.l.b16 %v2195
      %v2232 = vunpack.c.l.b16 %v2196
      %v2233 = vunpack.c.l.b16 %v2197
      %v2234 = vunpack.c.l.b16 %v2198
      %v2235 = vunpack.c.l.b16 %v2199
      %v2236 = vunpack.c.l.b16 %v2200
      %v2237 = vunpack.c.l.b16 %v2201
      %v2238 = vunpack.c.l.b16 %v2202
      %v2239 = vpack.c.b16 %v2224, %v2223
      %v2240 = vpack.c.b16 %v2226, %v2225
      %v2241 = vpack.c.b16 %v2228, %v2227
      %v2242 = vpack.c.b16 %v2230, %v2229
      %v2243 = vpack.c.b16 %v2232, %v2231
      %v2244 = vpack.c.b16 %v2234, %v2233
      %v2245 = vpack.c.b16 %v2236, %v2235
      %v2246 = vpack.c.b16 %v2238, %v2237
      %2255 = vmatprep.subr.bf16.mxu0 0
      %2256 = vmatpush1.bf16.msra.mxu0 %v2246
      %2257 = vmatprep.subr.bf16.mxu0 0
      %2258 = vmatpush1.bf16.msra.mxu0 %v2245
      %2259 = vmatprep.subr.bf16.mxu0 0
      %2260 = vmatpush1.bf16.msra.mxu0 %v2244
      %2261 = vmatprep.subr.bf16.mxu0 0
      %2262 = vmatpush1.bf16.msra.mxu0 %v2243
      %2263 = vmatprep.subr.bf16.mxu0 0
      %2264 = vmatpush1.bf16.msra.mxu0 %v2242
      %2265 = vmatprep.subr.bf16.mxu0 0
      %2266 = vmatpush1.bf16.msra.mxu0 %v2241
      %2267 = vmatprep.subr.bf16.mxu0 0
      %2268 = vmatpush1.bf16.msra.mxu0 %v2240
      %2269 = vmatprep.subr.bf16.mxu0 0
      %2270 = vmatpush1.bf16.msra.mxu0 %v2239
      %2271 = vmatprep.subr.bf16.mxu0 0
      %2272 = vmatpush2.bf16.msra.mxu0 0
      %2273 = vmatprep.subr.bf16.mxu0 0
      %2274 = vmatpush2.bf16.msra.mxu0 0
      %2275 = vmatprep.subr.bf16.mxu0 0
      %2276 = vmatpush2.bf16.msra.mxu0 0
      %2277 = vmatprep.subr.bf16.mxu0 0
      %2278 = vmatpush2.bf16.msra.mxu0 0
      %2279 = vmatprep.subr.bf16.mxu0 0
      %2280 = vmatpush2.bf16.msra.mxu0 0
      %2281 = vmatprep.subr.bf16.mxu0 0
      %2282 = vmatpush2.bf16.msra.mxu0 0
      %2283 = vmatprep.subr.bf16.mxu0 0
      %2284 = vmatpush2.bf16.msra.mxu0 0
      %2285 = vmatprep.subr.bf16.mxu0 0
      %2286 = vmatpush2.bf16.msra.mxu0 0
      %2287 = vmatprep.mubr.bf16.mxu0 0
      %2288 = vmatmul.mubr.bf16.gmra.mxu0 %v2186
      %v2289 = vpop.f32.mrf.mxu0
      %v2290 = vadd.f32 %v2206, %v2289
      %v2291 = vpop.f32.mrf.mxu0
      %v2292 = vpop.f32.mrf.mxu0
      %v2293 = vpop.f32.mrf.mxu0
      %2294 = vdwg.mxu0
      %v2295 = vmul.f32 %v2290, %v2290
      %2296 = vadd.xlane.f32.xlu0 %v2295
      %v2297 = vpop.xlane.xlu0 %2296
      %v2298 = vmax.f32 %v2297, 1e-24
      %v2299 = vrsqrt.pop %v2298
      %v2300 = vmul.f32 %v2290, %v2299
      %v2301 = vmul.f32 %v2046, %v2046
      %2302 = vadd.xlane.f32.xlu0 %v2301
      %v2303 = vpop.xlane.xlu0 %2302
      %v2304 = vmax.f32 %v2303, 1e-24
      %v2305 = vrsqrt.pop %v2304
      %v2306 = vmul.f32 %v2046, %v2305
      %2307 = vst [vmem:[#allocation12] sm:$0xff] %v2306
      %v2308 = vpack.c.bf16 %v2306, %v2300
      %v2310 = vunpack.c.l.b16 %v2308
      %v2311 = vunpack.c.h.b16 %v2308
      %v2312 = vpack.c.b16 %v2310, %v2310
      %v2313 = vpack.c.b16 %v2311, %v2311
      %2316 = vst [vmem:[#allocation2] sm:$0xf] %v2312
      %2317 = vst [vmem:[#allocation2 + $0x4] sm:$0xf] %v2313
    $region69: #{tpu_custom_call.1} parent=1 // pred_fallthru
      _
    %v2318 = vld [vmem:[#allocation2] sm:$0xf]
    %v2319 = vld [vmem:[#allocation2 + $0x4] sm:$0xf]
    %v2320 = vld [vmem:[%s8] sm:$0xff]
    %v2321 = vld [vmem:[%s8 + $0x8] sm:$0xff]
    %v2322 = vld [vmem:[%s8 + $0x10] sm:$0xff]
    %v2323 = vld [vmem:[%s8 + $0x18] sm:$0xf]
    %v2324 = vld [vmem:[%s8 + $0x1c] sm:$0xff]
    %v2325 = vld [vmem:[%s8 + $0x24] sm:$0xff]
    %v2326 = vld [vmem:[%s8 + $0x2c] sm:$0xff]
    %v2327 = vld [vmem:[%s8 + $0x34] sm:$0xf]
    %v2328 = vld [vmem:[%s8 + $0x38] sm:$0xff]
    %v2329 = vld [vmem:[%s8 + $0x40] sm:$0xff]
    %v2330 = vld [vmem:[%s8 + $0x48] sm:$0xff]
    %v2331 = vld [vmem:[%s8 + $0x50] sm:$0xf]
    %v2332 = vld [vmem:[%s8 + $0x54] sm:$0xff]
    %v2333 = vld [vmem:[%s8 + $0x5c] sm:$0xff]
    %v2334 = vld [vmem:[%s8 + $0x64] sm:$0xff]
    %v2335 = vld [vmem:[%s8 + $0x6c] sm:$0xf]
    %v2336 = vld [vmem:[%s8 + $0x70] sm:$0xff]
    %v2337 = vld [vmem:[%s8 + $0x78] sm:$0xff]
    %v2338 = vld [vmem:[%s8 + $0x80] sm:$0xff]
    %v2339 = vld [vmem:[%s8 + $0x88] sm:$0xf]
    %v2340 = vld [vmem:[%s8 + $0x8c] sm:$0xff]
    %v2341 = vld [vmem:[%s8 + $0x94] sm:$0xff]
    %v2342 = vld [vmem:[%s8 + $0x9c] sm:$0xff]
    %v2343 = vld [vmem:[%s8 + $0xa4] sm:$0xf]
    %v2344 = vld [vmem:[%s8 + $0xa8] sm:$0xff]
    %v2345 = vld [vmem:[%s8 + $0xb0] sm:$0xff]
    %v2346 = vld [vmem:[%s8 + $0xb8] sm:$0xff]
    %v2347 = vld [vmem:[%s8 + $0xc0] sm:$0xf]
    %v2348 = vld [vmem:[%s8 + $0xc4] sm:$0xff]
    %v2349 = vld [vmem:[%s8 + $0xcc] sm:$0xff]
    %v2350 = vld [vmem:[%s8 + $0xd4] sm:$0xff]
    %v2351 = vld [vmem:[%s8 + $0xdc] sm:$0xf]
    %v2352 = vld [vmem:[%s8 + $0xe0] sm:$0xff]
    %v2353 = vld [vmem:[%s8 + $0xe8] sm:$0xff]
    %v2354 = vld [vmem:[%s8 + $0xf0] sm:$0xff]
    %v2355 = vld [vmem:[%s8 + $0xf8] sm:$0xf]
    %v2356 = vld [vmem:[%s8 + $0xfc] sm:$0xff]
    %v2357 = vld [vmem:[%s8 + $0x104] sm:$0xff]
    %v2358 = vld [vmem:[%s8 + $0x10c] sm:$0xff]
    %v2359 = vld [vmem:[%s8 + $0x114] sm:$0xf]
    %v2360 = vld [vmem:[%s8 + $0x118] sm:$0xff]
    %v2361 = vld [vmem:[%s8 + $0x120] sm:$0xff]
    %v2362 = vld [vmem:[%s8 + $0x128] sm:$0xff]
    %v2363 = vld [vmem:[%s8 + $0x130] sm:$0xf]
    %v2364 = vld [vmem:[%s8 + $0x134] sm:$0xff]
    %v2365 = vld [vmem:[%s8 + $0x13c] sm:$0xff]
    %v2366 = vld [vmem:[%s8 + $0x144] sm:$0xff]
    %v2367 = vld [vmem:[%s8 + $0x14c] sm:$0xf]
    %v2368 = vld [vmem:[%s8 + $0x150] sm:$0xff]
    %v2369 = vld [vmem:[%s8 + $0x158] sm:$0xff]
    %v2370 = vld [vmem:[%s8 + $0x160] sm:$0xff]
    %v2371 = vld [vmem:[%s8 + $0x168] sm:$0xf]
    %v2372 = vld [vmem:[%s8 + $0x16c] sm:$0xff]
    %v2373 = vld [vmem:[%s8 + $0x174] sm:$0xff]
    %v2374 = vld [vmem:[%s8 + $0x17c] sm:$0xff]
    %v2375 = vld [vmem:[%s8 + $0x184] sm:$0xf]
    %v2376 = vld [vmem:[%s8 + $0x188] sm:$0xff]
    %v2377 = vld [vmem:[%s8 + $0x190] sm:$0xff]
    %v2378 = vld [vmem:[%s8 + $0x198] sm:$0xff]
    %v2379 = vld [vmem:[%s8 + $0x1a0] sm:$0xf]
    %v2380 = vld [vmem:[%s8 + $0x1a4] sm:$0xff]
    %v2381 = vld [vmem:[%s8 + $0x1ac] sm:$0xff]
    %v2382 = vld [vmem:[%s8 + $0x1b4] sm:$0xff]
    %v2383 = vld [vmem:[%s8 + $0x1bc] sm:$0xf]
    %v2386 = vunpack.c.l.b16 %v2318
    %v2387 = vunpack.c.l.b16 %v2319
    %v2388 = vpack.c.b16 %v2387, %v2386
    %v2454 = vunpack.c.l.b16 %v2320
    %v2455 = vunpack.c.h.b16 %v2320
    %v2456 = vunpack.c.l.b16 %v2321
    %v2457 = vunpack.c.h.b16 %v2321
    %v2458 = vunpack.c.l.b16 %v2322
    %v2459 = vunpack.c.h.b16 %v2322
    %v2460 = vunpack.c.l.b16 %v2323
    %v2461 = vunpack.c.l.b16 %v2324
    %v2462 = vunpack.c.h.b16 %v2324
    %v2463 = vunpack.c.l.b16 %v2325
    %v2464 = vunpack.c.h.b16 %v2325
    %v2465 = vunpack.c.l.b16 %v2326
    %v2466 = vunpack.c.h.b16 %v2326
    %v2467 = vunpack.c.l.b16 %v2327
    %v2468 = vunpack.c.l.b16 %v2328
    %v2469 = vunpack.c.h.b16 %v2328
    %v2470 = vunpack.c.l.b16 %v2329
    %v2471 = vunpack.c.h.b16 %v2329
    %v2472 = vunpack.c.l.b16 %v2330
    %v2473 = vunpack.c.h.b16 %v2330
    %v2474 = vunpack.c.l.b16 %v2331
    %v2475 = vunpack.c.l.b16 %v2332
    %v2476 = vunpack.c.h.b16 %v2332
    %v2477 = vunpack.c.l.b16 %v2333
    %v2478 = vunpack.c.h.b16 %v2333
    %v2479 = vunpack.c.l.b16 %v2334
    %v2480 = vunpack.c.h.b16 %v2334
    %v2481 = vunpack.c.l.b16 %v2335
    %v2482 = vunpack.c.l.b16 %v2336
    %v2483 = vunpack.c.h.b16 %v2336
    %v2484 = vunpack.c.l.b16 %v2337
    %v2485 = vunpack.c.h.b16 %v2337
    %v2486 = vunpack.c.l.b16 %v2338
    %v2487 = vunpack.c.h.b16 %v2338
    %v2488 = vunpack.c.l.b16 %v2339
    %v2489 = vunpack.c.l.b16 %v2340
    %v2490 = vunpack.c.h.b16 %v2340
    %v2491 = vunpack.c.l.b16 %v2341
    %v2492 = vunpack.c.h.b16 %v2341
    %v2493 = vunpack.c.l.b16 %v2342
    %v2494 = vunpack.c.h.b16 %v2342
    %v2495 = vunpack.c.l.b16 %v2343
    %v2496 = vunpack.c.l.b16 %v2344
    %v2497 = vunpack.c.h.b16 %v2344
    %v2498 = vunpack.c.l.b16 %v2345
    %v2499 = vunpack.c.h.b16 %v2345
    %v2500 = vunpack.c.l.b16 %v2346
    %v2501 = vunpack.c.h.b16 %v2346
    %v2502 = vunpack.c.l.b16 %v2347
    %v2503 = vunpack.c.l.b16 %v2348
    %v2504 = vunpack.c.h.b16 %v2348
    %v2505 = vunpack.c.l.b16 %v2349
    %v2506 = vunpack.c.h.b16 %v2349
    %v2507 = vunpack.c.l.b16 %v2350
    %v2508 = vunpack.c.h.b16 %v2350
    %v2509 = vunpack.c.l.b16 %v2351
    %v2510 = vunpack.c.l.b16 %v2352
    %v2511 = vunpack.c.h.b16 %v2352
    %v2512 = vunpack.c.l.b16 %v2353
    %v2513 = vunpack.c.h.b16 %v2353
    %v2514 = vunpack.c.l.b16 %v2354
    %v2515 = vunpack.c.h.b16 %v2354
    %v2516 = vunpack.c.l.b16 %v2355
    %v2517 = vunpack.c.l.b16 %v2356
    %v2518 = vunpack.c.h.b16 %v2356
    %v2519 = vunpack.c.l.b16 %v2357
    %v2520 = vunpack.c.h.b16 %v2357
    %v2521 = vunpack.c.l.b16 %v2358
    %v2522 = vunpack.c.h.b16 %v2358
    %v2523 = vunpack.c.l.b16 %v2359
    %v2524 = vunpack.c.l.b16 %v2360
    %v2525 = vunpack.c.h.b16 %v2360
    %v2526 = vunpack.c.l.b16 %v2361
    %v2527 = vunpack.c.h.b16 %v2361
    %v2528 = vunpack.c.l.b16 %v2362
    %v2529 = vunpack.c.h.b16 %v2362
    %v2530 = vunpack.c.l.b16 %v2363
    %v2531 = vunpack.c.l.b16 %v2364
    %v2532 = vunpack.c.h.b16 %v2364
    %v2533 = vunpack.c.l.b16 %v2365
    %v2534 = vunpack.c.h.b16 %v2365
    %v2535 = vunpack.c.l.b16 %v2366
    %v2536 = vunpack.c.h.b16 %v2366
    %v2537 = vunpack.c.l.b16 %v2367
    %v2538 = vunpack.c.l.b16 %v2368
    %v2539 = vunpack.c.h.b16 %v2368
    %v2540 = vunpack.c.l.b16 %v2369
    %v2541 = vunpack.c.h.b16 %v2369
    %v2542 = vunpack.c.l.b16 %v2370
    %v2543 = vunpack.c.h.b16 %v2370
    %v2544 = vunpack.c.l.b16 %v2371
    %v2545 = vunpack.c.l.b16 %v2372
    %v2546 = vunpack.c.h.b16 %v2372
    %v2547 = vunpack.c.l.b16 %v2373
    %v2548 = vunpack.c.h.b16 %v2373
    %v2549 = vunpack.c.l.b16 %v2374
    %v2550 = vunpack.c.h.b16 %v2374
    %v2551 = vunpack.c.l.b16 %v2375
    %v2552 = vunpack.c.l.b16 %v2376
    %v2553 = vunpack.c.h.b16 %v2376
    %v2554 = vunpack.c.l.b16 %v2377
    %v2555 = vunpack.c.h.b16 %v2377
    %v2556 = vunpack.c.l.b16 %v2378
    %v2557 = vunpack.c.h.b16 %v2378
    %v2558 = vunpack.c.l.b16 %v2379
    %v2559 = vunpack.c.l.b16 %v2380
    %v2560 = vunpack.c.h.b16 %v2380
    %v2561 = vunpack.c.l.b16 %v2381
    %v2562 = vunpack.c.h.b16 %v2381
    %v2563 = vunpack.c.l.b16 %v2382
    %v2564 = vunpack.c.h.b16 %v2382
    %v2565 = vunpack.c.l.b16 %v2383
    %v2566 = vpack.c.b16 %v2461, %v2454
    %v2567 = vpack.c.b16 %v2462, %v2455
    %v2568 = vpack.c.b16 %v2463, %v2456
    %v2569 = vpack.c.b16 %v2464, %v2457
    %v2570 = vpack.c.b16 %v2465, %v2458
    %v2571 = vpack.c.b16 %v2466, %v2459
    %v2572 = vpack.c.b16 %v2467, %v2460
    %v2573 = vpack.c.b16 %v2475, %v2468
    %v2574 = vpack.c.b16 %v2476, %v2469
    %v2575 = vpack.c.b16 %v2477, %v2470
    %v2576 = vpack.c.b16 %v2478, %v2471
    %v2577 = vpack.c.b16 %v2479, %v2472
    %v2578 = vpack.c.b16 %v2480, %v2473
    %v2579 = vpack.c.b16 %v2481, %v2474
    %v2580 = vpack.c.b16 %v2489, %v2482
    %v2581 = vpack.c.b16 %v2490, %v2483
    %v2582 = vpack.c.b16 %v2491, %v2484
    %v2583 = vpack.c.b16 %v2492, %v2485
    %v2584 = vpack.c.b16 %v2493, %v2486
    %v2585 = vpack.c.b16 %v2494, %v2487
    %v2586 = vpack.c.b16 %v2495, %v2488
    %v2587 = vpack.c.b16 %v2503, %v2496
    %v2588 = vpack.c.b16 %v2504, %v2497
    %v2589 = vpack.c.b16 %v2505, %v2498
    %v2590 = vpack.c.b16 %v2506, %v2499
    %v2591 = vpack.c.b16 %v2507, %v2500
    %v2592 = vpack.c.b16 %v2508, %v2501
    %v2593 = vpack.c.b16 %v2509, %v2502
    %v2594 = vpack.c.b16 %v2517, %v2510
    %v2595 = vpack.c.b16 %v2518, %v2511
    %v2596 = vpack.c.b16 %v2519, %v2512
    %v2597 = vpack.c.b16 %v2520, %v2513
    %v2598 = vpack.c.b16 %v2521, %v2514
    %v2599 = vpack.c.b16 %v2522, %v2515
    %v2600 = vpack.c.b16 %v2523, %v2516
    %v2601 = vpack.c.b16 %v2531, %v2524
    %v2602 = vpack.c.b16 %v2532, %v2525
    %v2603 = vpack.c.b16 %v2533, %v2526
    %v2604 = vpack.c.b16 %v2534, %v2527
    %v2605 = vpack.c.b16 %v2535, %v2528
    %v2606 = vpack.c.b16 %v2536, %v2529
    %v2607 = vpack.c.b16 %v2537, %v2530
    %v2608 = vpack.c.b16 %v2545, %v2538
    %v2609 = vpack.c.b16 %v2546, %v2539
    %v2610 = vpack.c.b16 %v2547, %v2540
    %v2611 = vpack.c.b16 %v2548, %v2541
    %v2612 = vpack.c.b16 %v2549, %v2542
    %v2613 = vpack.c.b16 %v2550, %v2543
    %v2614 = vpack.c.b16 %v2551, %v2544
    %v2615 = vpack.c.b16 %v2559, %v2552
    %v2616 = vpack.c.b16 %v2560, %v2553
    %v2617 = vpack.c.b16 %v2561, %v2554
    %v2618 = vpack.c.b16 %v2562, %v2555
    %v2619 = vpack.c.b16 %v2563, %v2556
    %v2620 = vpack.c.b16 %v2564, %v2557
    %v2621 = vpack.c.b16 %v2565, %v2558
    %2678 = vmatprep.subr.bf16.mxu0 %v2616
    %2679 = vmatpush1.bf16.msra.mxu0 %v2615
    %2680 = vmatprep.subr.bf16.mxu0 %v2609
    %2681 = vmatpush1.bf16.msra.mxu0 %v2608
    %2682 = vmatprep.subr.bf16.mxu0 %v2602
    %2683 = vmatpush1.bf16.msra.mxu0 %v2601
    %2684 = vmatprep.subr.bf16.mxu0 %v2595
    %2685 = vmatpush1.bf16.msra.mxu0 %v2594
    %2686 = vmatprep.subr.bf16.mxu0 %v2588
    %2687 = vmatpush1.bf16.msra.mxu0 %v2587
    %2688 = vmatprep.subr.bf16.mxu0 %v2581
    %2689 = vmatpush1.bf16.msra.mxu0 %v2580
    %2690 = vmatprep.subr.bf16.mxu0 %v2574
    %2691 = vmatpush1.bf16.msra.mxu0 %v2573
    %2692 = vmatprep.subr.bf16.mxu0 %v2567
    %2693 = vmatpush1.bf16.msra.mxu0 %v2566
    %2694 = vmatprep.subr.bf16.mxu0 0
    %2695 = vmatpush2.bf16.msra.mxu0 0
    %2696 = vmatprep.subr.bf16.mxu0 0
    %2697 = vmatpush2.bf16.msra.mxu0 0
    %2698 = vmatprep.subr.bf16.mxu0 0
    %2699 = vmatpush2.bf16.msra.mxu0 0
    %2700 = vmatprep.subr.bf16.mxu0 0
    %2701 = vmatpush2.bf16.msra.mxu0 0
    %2702 = vmatprep.subr.bf16.mxu0 0
    %2703 = vmatpush2.bf16.msra.mxu0 0
    %2704 = vmatprep.subr.bf16.mxu0 0
    %2705 = vmatpush2.bf16.msra.mxu0 0
    %2706 = vmatprep.subr.bf16.mxu0 0
    %2707 = vmatpush2.bf16.msra.mxu0 0
    %2708 = vmatprep.subr.bf16.mxu0 0
    %2709 = vmatpush2.bf16.msra.mxu0 0
    %2710 = vmatprep.mubr.bf16.mxu0 0
    %2711 = vmatmul.mubr.bf16.gmra.mxu0 %v2388
    %v2712 = vpop.f32.mrf.mxu0
    %v2713 = vadd.f32 0.0, %v2712
    %v2714 = vpop.f32.mrf.mxu0
    %v2715 = vadd.f32 0.0, %v2714
    %v2716 = vpop.f32.mrf.mxu0
    %v2717 = vadd.f32 0.0, %v2716
    %v2718 = vpop.f32.mrf.mxu0
    %v2719 = vadd.f32 0.0, %v2718
    %2720 = vdwg.mxu0
    %2721 = vmatprep.subr.bf16.mxu0 %v2618
    %2722 = vmatpush1.bf16.msra.mxu0 %v2617
    %2723 = vmatprep.subr.bf16.mxu0 %v2611
    %2724 = vmatpush1.bf16.msra.mxu0 %v2610
    %2725 = vmatprep.subr.bf16.mxu0 %v2604
    %2726 = vmatpush1.bf16.msra.mxu0 %v2603
    %2727 = vmatprep.subr.bf16.mxu0 %v2597
    %2728 = vmatpush1.bf16.msra.mxu0 %v2596
    %2729 = vmatprep.subr.bf16.mxu0 %v2590
    %2730 = vmatpush1.bf16.msra.mxu0 %v2589
    %2731 = vmatprep.subr.bf16.mxu0 %v2583
    %2732 = vmatpush1.bf16.msra.mxu0 %v2582
    %2733 = vmatprep.subr.bf16.mxu0 %v2576
    %2734 = vmatpush1.bf16.msra.mxu0 %v2575
    %2735 = vmatprep.subr.bf16.mxu0 %v2569
    %2736 = vmatpush1.bf16.msra.mxu0 %v2568
    %2737 = vmatprep.subr.bf16.mxu0 0
    %2738 = vmatpush2.bf16.msra.mxu0 0
    %2739 = vmatprep.subr.bf16.mxu0 0
    %2740 = vmatpush2.bf16.msra.mxu0 0
    %2741 = vmatprep.subr.bf16.mxu0 0
    %2742 = vmatpush2.bf16.msra.mxu0 0
    %2743 = vmatprep.subr.bf16.mxu0 0
    %2744 = vmatpush2.bf16.msra.mxu0 0
    %2745 = vmatprep.subr.bf16.mxu0 0
    %2746 = vmatpush2.bf16.msra.mxu0 0
    %2747 = vmatprep.subr.bf16.mxu0 0
    %2748 = vmatpush2.bf16.msra.mxu0 0
    %2749 = vmatprep.subr.bf16.mxu0 0
    %2750 = vmatpush2.bf16.msra.mxu0 0
    %2751 = vmatprep.subr.bf16.mxu0 0
    %2752 = vmatpush2.bf16.msra.mxu0 0
    %2753 = vmatprep.mubr.bf16.mxu0 0
    %2754 = vmatmul.mubr.bf16.gmra.mxu0 %v2388
    %v2755 = vpop.f32.mrf.mxu0
    %v2756 = vadd.f32 0.0, %v2755
    %v2757 = vpop.f32.mrf.mxu0
    %v2758 = vadd.f32 0.0, %v2757
    %v2759 = vpop.f32.mrf.mxu0
    %v2760 = vadd.f32 0.0, %v2759
    %v2761 = vpop.f32.mrf.mxu0
    %v2762 = vadd.f32 0.0, %v2761
    %2763 = vdwg.mxu0
    %2764 = vmatprep.subr.bf16.mxu0 %v2620
    %2765 = vmatpush1.bf16.msra.mxu0 %v2619
    %2766 = vmatprep.subr.bf16.mxu0 %v2613
    %2767 = vmatpush1.bf16.msra.mxu0 %v2612
    %2768 = vmatprep.subr.bf16.mxu0 %v2606
    %2769 = vmatpush1.bf16.msra.mxu0 %v2605
    %2770 = vmatprep.subr.bf16.mxu0 %v2599
    %2771 = vmatpush1.bf16.msra.mxu0 %v2598
    %2772 = vmatprep.subr.bf16.mxu0 %v2592
    %2773 = vmatpush1.bf16.msra.mxu0 %v2591
    %2774 = vmatprep.subr.bf16.mxu0 %v2585
    %2775 = vmatpush1.bf16.msra.mxu0 %v2584
    %2776 = vmatprep.subr.bf16.mxu0 %v2578
    %2777 = vmatpush1.bf16.msra.mxu0 %v2577
    %2778 = vmatprep.subr.bf16.mxu0 %v2571
    %2779 = vmatpush1.bf16.msra.mxu0 %v2570
    %2780 = vmatprep.subr.bf16.mxu0 0
    %2781 = vmatpush2.bf16.msra.mxu0 0
    %2782 = vmatprep.subr.bf16.mxu0 0
    %2783 = vmatpush2.bf16.msra.mxu0 0
    %2784 = vmatprep.subr.bf16.mxu0 0
    %2785 = vmatpush2.bf16.msra.mxu0 0
    %2786 = vmatprep.subr.bf16.mxu0 0
    %2787 = vmatpush2.bf16.msra.mxu0 0
    %2788 = vmatprep.subr.bf16.mxu0 0
    %2789 = vmatpush2.bf16.msra.mxu0 0
    %2790 = vmatprep.subr.bf16.mxu0 0
    %2791 = vmatpush2.bf16.msra.mxu0 0
    %2792 = vmatprep.subr.bf16.mxu0 0
    %2793 = vmatpush2.bf16.msra.mxu0 0
    %2794 = vmatprep.subr.bf16.mxu0 0
    %2795 = vmatpush2.bf16.msra.mxu0 0
    %2796 = vmatprep.mubr.bf16.mxu0 0
    %2797 = vmatmul.mubr.bf16.gmra.mxu0 %v2388
    %v2798 = vpop.f32.mrf.mxu0
    %v2799 = vadd.f32 0.0, %v2798
    %v2800 = vpop.f32.mrf.mxu0
    %v2801 = vadd.f32 0.0, %v2800
    %v2802 = vpop.f32.mrf.mxu0
    %v2803 = vadd.f32 0.0, %v2802
    %v2804 = vpop.f32.mrf.mxu0
    %v2805 = vadd.f32 0.0, %v2804
    %2806 = vdwg.mxu0
    %2807 = vmatprep.subr.bf16.mxu0 0
    %2808 = vmatpush1.bf16.msra.mxu0 %v2621
    %2809 = vmatprep.subr.bf16.mxu0 0
    %2810 = vmatpush1.bf16.msra.mxu0 %v2614
    %2811 = vmatprep.subr.bf16.mxu0 0
    %2812 = vmatpush1.bf16.msra.mxu0 %v2607
    %2813 = vmatprep.subr.bf16.mxu0 0
    %2814 = vmatpush1.bf16.msra.mxu0 %v2600
    %2815 = vmatprep.subr.bf16.mxu0 0
    %2816 = vmatpush1.bf16.msra.mxu0 %v2593
    %2817 = vmatprep.subr.bf16.mxu0 0
    %2818 = vmatpush1.bf16.msra.mxu0 %v2586
    %2819 = vmatprep.subr.bf16.mxu0 0
    %2820 = vmatpush1.bf16.msra.mxu0 %v2579
    %2821 = vmatprep.subr.bf16.mxu0 0
    %2822 = vmatpush1.bf16.msra.mxu0 %v2572
    %2823 = vmatprep.subr.bf16.mxu0 0
    %2824 = vmatpush2.bf16.msra.mxu0 0
    %2825 = vmatprep.subr.bf16.mxu0 0
    %2826 = vmatpush2.bf16.msra.mxu0 0
    %2827 = vmatprep.subr.bf16.mxu0 0
    %2828 = vmatpush2.bf16.msra.mxu0 0
    %2829 = vmatprep.subr.bf16.mxu0 0
    %2830 = vmatpush2.bf16.msra.mxu0 0
    %2831 = vmatprep.subr.bf16.mxu0 0
    %2832 = vmatpush2.bf16.msra.mxu0 0
    %2833 = vmatprep.subr.bf16.mxu0 0
    %2834 = vmatpush2.bf16.msra.mxu0 0
    %2835 = vmatprep.subr.bf16.mxu0 0
    %2836 = vmatpush2.bf16.msra.mxu0 0
    %2837 = vmatprep.subr.bf16.mxu0 0
    %2838 = vmatpush2.bf16.msra.mxu0 0
    %2839 = vmatprep.mubr.bf16.mxu0 0
    %2840 = vmatmul.mubr.bf16.gmra.mxu0 %v2388
    %v2841 = vpop.f32.mrf.mxu0
    %v2842 = vadd.f32 0.0, %v2841
    %v2843 = vpop.f32.mrf.mxu0
    %v2844 = vpop.f32.mrf.mxu0
    %v2845 = vadd.f32 0.0, %v2844
    %v2846 = vpop.f32.mrf.mxu0
    %2847 = vdwg.mxu0
    %v2848 = vmul.f32 %v2713, 10.0
    %v2849 = vmul.f32 %v2715, 10.0
    %v2850 = vmul.f32 %v2756, 10.0
    %v2851 = vmul.f32 %v2758, 10.0
    %v2852 = vmul.f32 %v2799, 10.0
    %v2853 = vmul.f32 %v2801, 10.0
    %v2854 = vmul.f32 %v2842, 10.0
    %v2855 = vmul.f32 %v2717, 10.0
    %v2856 = vmul.f32 %v2719, 10.0
    %v2857 = vmul.f32 %v2760, 10.0
    %v2858 = vmul.f32 %v2762, 10.0
    %v2859 = vmul.f32 %v2803, 10.0
    %v2860 = vmul.f32 %v2805, 10.0
    %v2861 = vmul.f32 %v2845, 10.0
    %2862 = vst [vmem:[#allocation13] sm:$0xff] %v2848
    %2863 = vst [vmem:[#allocation13 + $0x8] sm:$0xff] %v2849
    %2864 = vst [vmem:[#allocation13 + $0x10] sm:$0xff] %v2850
    %2865 = vst [vmem:[#allocation13 + $0x18] sm:$0xff] %v2851
    %2866 = vst [vmem:[#allocation13 + $0x20] sm:$0xff] %v2852
    %2867 = vst [vmem:[#allocation13 + $0x28] sm:$0xff] %v2853
    %2868 = vst [vmem:[#allocation13 + $0x30] sm:$0xff] %v2854
    %2869 = vst [vmem:[#allocation13 + $0x38] sm:$0xff] %v2855
    %2870 = vst [vmem:[#allocation13 + $0x40] sm:$0xff] %v2856
    %2871 = vst [vmem:[#allocation13 + $0x48] sm:$0xff] %v2857
    %2872 = vst [vmem:[#allocation13 + $0x50] sm:$0xff] %v2858
    %2873 = vst [vmem:[#allocation13 + $0x58] sm:$0xff] %v2859
    %2874 = vst [vmem:[#allocation13 + $0x60] sm:$0xff] %v2860
    %2875 = vst [vmem:[#allocation13 + $0x68] sm:$0xff] %v2861
    %v2876 = vld [vmem:[#allocation11] sm:$0xff]
    %v2877 = vld [vmem:[#allocation11 + $0x8] sm:$0xff]
    %v2878 = vld [vmem:[#allocation11 + $0x10] sm:$0xff]
    %v2879 = vld [vmem:[#allocation11 + $0x18] sm:$0xf]
    %v2880 = vld [vmem:[#allocation11 + $0x1c] sm:$0xff]
    %v2881 = vld [vmem:[#allocation11 + $0x24] sm:$0xff]
    %v2882 = vld [vmem:[#allocation11 + $0x2c] sm:$0xff]
    %v2883 = vld [vmem:[#allocation11 + $0x34] sm:$0xf]
    %v2884 = vld [vmem:[#allocation11 + $0x38] sm:$0xff]
    %v2885 = vld [vmem:[#allocation11 + $0x40] sm:$0xff]
    %v2886 = vld [vmem:[#allocation11 + $0x48] sm:$0xff]
    %v2887 = vld [vmem:[#allocation11 + $0x50] sm:$0xf]
    %v2888 = vld [vmem:[#allocation11 + $0x54] sm:$0xff]
    %v2889 = vld [vmem:[#allocation11 + $0x5c] sm:$0xff]
    %v2890 = vld [vmem:[#allocation11 + $0x64] sm:$0xff]
    %v2891 = vld [vmem:[#allocation11 + $0x6c] sm:$0xf]
    %v2892 = vld [vmem:[#allocation11 + $0x70] sm:$0xff]
    %v2893 = vld [vmem:[#allocation11 + $0x78] sm:$0xff]
    %v2894 = vld [vmem:[#allocation11 + $0x80] sm:$0xff]
    %v2895 = vld [vmem:[#allocation11 + $0x88] sm:$0xf]
    %v2896 = vld [vmem:[#allocation11 + $0x8c] sm:$0xff]
    %v2897 = vld [vmem:[#allocation11 + $0x94] sm:$0xff]
    %v2898 = vld [vmem:[#allocation11 + $0x9c] sm:$0xff]
    %v2899 = vld [vmem:[#allocation11 + $0xa4] sm:$0xf]
    %v2900 = vld [vmem:[#allocation11 + $0xa8] sm:$0xff]
    %v2901 = vld [vmem:[#allocation11 + $0xb0] sm:$0xff]
    %v2902 = vld [vmem:[#allocation11 + $0xb8] sm:$0xff]
    %v2903 = vld [vmem:[#allocation11 + $0xc0] sm:$0xf]
    %v2904 = vld [vmem:[#allocation11 + $0xc4] sm:$0xff]
    %v2905 = vld [vmem:[#allocation11 + $0xcc] sm:$0xff]
    %v2906 = vld [vmem:[#allocation11 + $0xd4] sm:$0xff]
    %v2907 = vld [vmem:[#allocation11 + $0xdc] sm:$0xf]
    %v2908 = vld [vmem:[#allocation11 + $0xe0] sm:$0xff]
    %v2909 = vld [vmem:[#allocation11 + $0xe8] sm:$0xff]
    %v2910 = vld [vmem:[#allocation11 + $0xf0] sm:$0xff]
    %v2911 = vld [vmem:[#allocation11 + $0xf8] sm:$0xf]
    %v2912 = vld [vmem:[#allocation11 + $0xfc] sm:$0xff]
    %v2913 = vld [vmem:[#allocation11 + $0x104] sm:$0xff]
    %v2914 = vld [vmem:[#allocation11 + $0x10c] sm:$0xff]
    %v2915 = vld [vmem:[#allocation11 + $0x114] sm:$0xf]
    %v2916 = vld [vmem:[#allocation11 + $0x118] sm:$0xff]
    %v2917 = vld [vmem:[#allocation11 + $0x120] sm:$0xff]
    %v2918 = vld [vmem:[#allocation11 + $0x128] sm:$0xff]
    %v2919 = vld [vmem:[#allocation11 + $0x130] sm:$0xf]
    %v2920 = vld [vmem:[#allocation11 + $0x134] sm:$0xff]
    %v2921 = vld [vmem:[#allocation11 + $0x13c] sm:$0xff]
    %v2922 = vld [vmem:[#allocation11 + $0x144] sm:$0xff]
    %v2923 = vld [vmem:[#allocation11 + $0x14c] sm:$0xf]
    %v2924 = vld [vmem:[#allocation11 + $0x150] sm:$0xff]
    %v2925 = vld [vmem:[#allocation11 + $0x158] sm:$0xff]
    %v2926 = vld [vmem:[#allocation11 + $0x160] sm:$0xff]
    %v2927 = vld [vmem:[#allocation11 + $0x168] sm:$0xf]
    %v2928 = vld [vmem:[#allocation11 + $0x16c] sm:$0xff]
    %v2929 = vld [vmem:[#allocation11 + $0x174] sm:$0xff]
    %v2930 = vld [vmem:[#allocation11 + $0x17c] sm:$0xff]
    %v2931 = vld [vmem:[#allocation11 + $0x184] sm:$0xf]
    %v2932 = vld [vmem:[#allocation11 + $0x188] sm:$0xff]
    %v2933 = vld [vmem:[#allocation11 + $0x190] sm:$0xff]
    %v2934 = vld [vmem:[#allocation11 + $0x198] sm:$0xff]
    %v2935 = vld [vmem:[#allocation11 + $0x1a0] sm:$0xf]
    %v2936 = vld [vmem:[#allocation11 + $0x1a4] sm:$0xff]
    %v2937 = vld [vmem:[#allocation11 + $0x1ac] sm:$0xff]
    %v2938 = vld [vmem:[#allocation11 + $0x1b4] sm:$0xff]
    %v2939 = vld [vmem:[#allocation11 + $0x1bc] sm:$0xf]
    %v2940 = vld [vmem:[%s10] sm:$0xff]
    %v2942 = vlaneseq
    %v2943 = vshrl.u32 %v2942, 7
    %v2944 = vsub.s32 0, %v2943
    %v2945 = vrot.slane %v2940, %v2944
    %v2946 = vlaneseq
    %v2947 = vshrl.u32 %v2946, 7
    %v2948 = vsub.s32 1, %v2947
    %v2949 = vrot.slane %v2940, %v2948
    %v2950 = vlaneseq
    %v2951 = vshrl.u32 %v2950, 7
    %v2952 = vsub.s32 2, %v2951
    %v2953 = vrot.slane %v2940, %v2952
    %v2954 = vlaneseq
    %v2955 = vshrl.u32 %v2954, 7
    %v2956 = vsub.s32 3, %v2955
    %v2957 = vrot.slane %v2940, %v2956
    %v2958 = vlaneseq
    %v2959 = vshrl.u32 %v2958, 7
    %v2960 = vsub.s32 4, %v2959
    %v2961 = vrot.slane %v2940, %v2960
    %v2962 = vlaneseq
    %v2963 = vshrl.u32 %v2962, 7
    %v2964 = vsub.s32 5, %v2963
    %v2965 = vrot.slane %v2940, %v2964
    %v2966 = vlaneseq
    %v2967 = vshrl.u32 %v2966, 7
    %v2968 = vsub.s32 6, %v2967
    %v2969 = vrot.slane %v2940, %v2968
    %v3041 = vunpack.c.l.b16 %v2876
    %v3042 = vunpack.c.h.b16 %v2876
    %v3043 = vunpack.c.l.b16 %v2877
    %v3044 = vunpack.c.h.b16 %v2877
    %v3045 = vunpack.c.l.b16 %v2878
    %v3046 = vunpack.c.h.b16 %v2878
    %v3047 = vunpack.c.l.b16 %v2879
    %v3048 = vunpack.c.l.b16 %v2880
    %v3049 = vunpack.c.h.b16 %v2880
    %v3050 = vunpack.c.l.b16 %v2881
    %v3051 = vunpack.c.h.b16 %v2881
    %v3052 = vunpack.c.l.b16 %v2882
    %v3053 = vunpack.c.h.b16 %v2882
    %v3054 = vunpack.c.l.b16 %v2883
    %v3055 = vunpack.c.l.b16 %v2884
    %v3056 = vunpack.c.h.b16 %v2884
    %v3057 = vunpack.c.l.b16 %v2885
    %v3058 = vunpack.c.h.b16 %v2885
    %v3059 = vunpack.c.l.b16 %v2886
    %v3060 = vunpack.c.h.b16 %v2886
    %v3061 = vunpack.c.l.b16 %v2887
    %v3062 = vunpack.c.l.b16 %v2888
    %v3063 = vunpack.c.h.b16 %v2888
    %v3064 = vunpack.c.l.b16 %v2889
    %v3065 = vunpack.c.h.b16 %v2889
    %v3066 = vunpack.c.l.b16 %v2890
    %v3067 = vunpack.c.h.b16 %v2890
    %v3068 = vunpack.c.l.b16 %v2891
    %v3069 = vunpack.c.l.b16 %v2892
    %v3070 = vunpack.c.h.b16 %v2892
    %v3071 = vunpack.c.l.b16 %v2893
    %v3072 = vunpack.c.h.b16 %v2893
    %v3073 = vunpack.c.l.b16 %v2894
    %v3074 = vunpack.c.h.b16 %v2894
    %v3075 = vunpack.c.l.b16 %v2895
    %v3076 = vunpack.c.l.b16 %v2896
    %v3077 = vunpack.c.h.b16 %v2896
    %v3078 = vunpack.c.l.b16 %v2897
    %v3079 = vunpack.c.h.b16 %v2897
    %v3080 = vunpack.c.l.b16 %v2898
    %v3081 = vunpack.c.h.b16 %v2898
    %v3082 = vunpack.c.l.b16 %v2899
    %v3083 = vunpack.c.l.b16 %v2900
    %v3084 = vunpack.c.h.b16 %v2900
    %v3085 = vunpack.c.l.b16 %v2901
    %v3086 = vunpack.c.h.b16 %v2901
    %v3087 = vunpack.c.l.b16 %v2902
    %v3088 = vunpack.c.h.b16 %v2902
    %v3089 = vunpack.c.l.b16 %v2903
    %v3090 = vunpack.c.l.b16 %v2904
    %v3091 = vunpack.c.h.b16 %v2904
    %v3092 = vunpack.c.l.b16 %v2905
    %v3093 = vunpack.c.h.b16 %v2905
    %v3094 = vunpack.c.l.b16 %v2906
    %v3095 = vunpack.c.h.b16 %v2906
    %v3096 = vunpack.c.l.b16 %v2907
    %v3097 = vunpack.c.l.b16 %v2908
    %v3098 = vunpack.c.h.b16 %v2908
    %v3099 = vunpack.c.l.b16 %v2909
    %v3100 = vunpack.c.h.b16 %v2909
    %v3101 = vunpack.c.l.b16 %v2910
    %v3102 = vunpack.c.h.b16 %v2910
    %v3103 = vunpack.c.l.b16 %v2911
    %v3104 = vunpack.c.l.b16 %v2912
    %v3105 = vunpack.c.h.b16 %v2912
    %v3106 = vunpack.c.l.b16 %v2913
    %v3107 = vunpack.c.h.b16 %v2913
    %v3108 = vunpack.c.l.b16 %v2914
    %v3109 = vunpack.c.h.b16 %v2914
    %v3110 = vunpack.c.l.b16 %v2915
    %v3111 = vunpack.c.l.b16 %v2916
    %v3112 = vunpack.c.h.b16 %v2916
    %v3113 = vunpack.c.l.b16 %v2917
    %v3114 = vunpack.c.h.b16 %v2917
    %v3115 = vunpack.c.l.b16 %v2918
    %v3116 = vunpack.c.h.b16 %v2918
    %v3117 = vunpack.c.l.b16 %v2919
    %v3118 = vunpack.c.l.b16 %v2920
    %v3119 = vunpack.c.h.b16 %v2920
    %v3120 = vunpack.c.l.b16 %v2921
    %v3121 = vunpack.c.h.b16 %v2921
    %v3122 = vunpack.c.l.b16 %v2922
    %v3123 = vunpack.c.h.b16 %v2922
    %v3124 = vunpack.c.l.b16 %v2923
    %v3125 = vunpack.c.l.b16 %v2924
    %v3126 = vunpack.c.h.b16 %v2924
    %v3127 = vunpack.c.l.b16 %v2925
    %v3128 = vunpack.c.h.b16 %v2925
    %v3129 = vunpack.c.l.b16 %v2926
    %v3130 = vunpack.c.h.b16 %v2926
    %v3131 = vunpack.c.l.b16 %v2927
    %v3132 = vunpack.c.l.b16 %v2928
    %v3133 = vunpack.c.h.b16 %v2928
    %v3134 = vunpack.c.l.b16 %v2929
    %v3135 = vunpack.c.h.b16 %v2929
    %v3136 = vunpack.c.l.b16 %v2930
    %v3137 = vunpack.c.h.b16 %v2930
    %v3138 = vunpack.c.l.b16 %v2931
    %v3139 = vunpack.c.l.b16 %v2932
    %v3140 = vunpack.c.h.b16 %v2932
    %v3141 = vunpack.c.l.b16 %v2933
    %v3142 = vunpack.c.h.b16 %v2933
    %v3143 = vunpack.c.l.b16 %v2934
    %v3144 = vunpack.c.h.b16 %v2934
    %v3145 = vunpack.c.l.b16 %v2935
    %v3146 = vunpack.c.l.b16 %v2936
    %v3147 = vunpack.c.h.b16 %v2936
    %v3148 = vunpack.c.l.b16 %v2937
    %v3149 = vunpack.c.h.b16 %v2937
    %v3150 = vunpack.c.l.b16 %v2938
    %v3151 = vunpack.c.h.b16 %v2938
    %v3152 = vunpack.c.l.b16 %v2939
    %v3153 = vpack.c.b16 %v3048, %v3041
    %v3154 = vpack.c.b16 %v3049, %v3042
    %v3155 = vpack.c.b16 %v3050, %v3043
    %v3156 = vpack.c.b16 %v3051, %v3044
    %v3157 = vpack.c.b16 %v3052, %v3045
    %v3158 = vpack.c.b16 %v3053, %v3046
    %v3159 = vpack.c.b16 %v3054, %v3047
    %v3160 = vpack.c.b16 %v3062, %v3055
    %v3161 = vpack.c.b16 %v3063, %v3056
    %v3162 = vpack.c.b16 %v3064, %v3057
    %v3163 = vpack.c.b16 %v3065, %v3058
    %v3164 = vpack.c.b16 %v3066, %v3059
    %v3165 = vpack.c.b16 %v3067, %v3060
    %v3166 = vpack.c.b16 %v3068, %v3061
    %v3167 = vpack.c.b16 %v3076, %v3069
    %v3168 = vpack.c.b16 %v3077, %v3070
    %v3169 = vpack.c.b16 %v3078, %v3071
    %v3170 = vpack.c.b16 %v3079, %v3072
    %v3171 = vpack.c.b16 %v3080, %v3073
    %v3172 = vpack.c.b16 %v3081, %v3074
    %v3173 = vpack.c.b16 %v3082, %v3075
    %v3174 = vpack.c.b16 %v3090, %v3083
    %v3175 = vpack.c.b16 %v3091, %v3084
    %v3176 = vpack.c.b16 %v3092, %v3085
    %v3177 = vpack.c.b16 %v3093, %v3086
    %v3178 = vpack.c.b16 %v3094, %v3087
    %v3179 = vpack.c.b16 %v3095, %v3088
    %v3180 = vpack.c.b16 %v3096, %v3089
    %v3181 = vpack.c.b16 %v3104, %v3097
    %v3182 = vpack.c.b16 %v3105, %v3098
    %v3183 = vpack.c.b16 %v3106, %v3099
    %v3184 = vpack.c.b16 %v3107, %v3100
    %v3185 = vpack.c.b16 %v3108, %v3101
    %v3186 = vpack.c.b16 %v3109, %v3102
    %v3187 = vpack.c.b16 %v3110, %v3103
    %v3188 = vpack.c.b16 %v3118, %v3111
    %v3189 = vpack.c.b16 %v3119, %v3112
    %v3190 = vpack.c.b16 %v3120, %v3113
    %v3191 = vpack.c.b16 %v3121, %v3114
    %v3192 = vpack.c.b16 %v3122, %v3115
    %v3193 = vpack.c.b16 %v3123, %v3116
    %v3194 = vpack.c.b16 %v3124, %v3117
    %v3195 = vpack.c.b16 %v3132, %v3125
    %v3196 = vpack.c.b16 %v3133, %v3126
    %v3197 = vpack.c.b16 %v3134, %v3127
    %v3198 = vpack.c.b16 %v3135, %v3128
    %v3199 = vpack.c.b16 %v3136, %v3129
    %v3200 = vpack.c.b16 %v3137, %v3130
    %v3201 = vpack.c.b16 %v3138, %v3131
    %v3202 = vpack.c.b16 %v3146, %v3139
    %v3203 = vpack.c.b16 %v3147, %v3140
    %v3204 = vpack.c.b16 %v3148, %v3141
    %v3205 = vpack.c.b16 %v3149, %v3142
    %v3206 = vpack.c.b16 %v3150, %v3143
    %v3207 = vpack.c.b16 %v3151, %v3144
    %v3208 = vpack.c.b16 %v3152, %v3145
    %3265 = vmatprep.subr.bf16.mxu0 %v3203
    %3266 = vmatpush1.bf16.msra.mxu0 %v3202
    %3267 = vmatprep.subr.bf16.mxu0 %v3196
    %3268 = vmatpush1.bf16.msra.mxu0 %v3195
    %3269 = vmatprep.subr.bf16.mxu0 %v3189
    %3270 = vmatpush1.bf16.msra.mxu0 %v3188
    %3271 = vmatprep.subr.bf16.mxu0 %v3182
    %3272 = vmatpush1.bf16.msra.mxu0 %v3181
    %3273 = vmatprep.subr.bf16.mxu0 %v3175
    %3274 = vmatpush1.bf16.msra.mxu0 %v3174
    %3275 = vmatprep.subr.bf16.mxu0 %v3168
    %3276 = vmatpush1.bf16.msra.mxu0 %v3167
    %3277 = vmatprep.subr.bf16.mxu0 %v3161
    %3278 = vmatpush1.bf16.msra.mxu0 %v3160
    %3279 = vmatprep.subr.bf16.mxu0 %v3154
    %3280 = vmatpush1.bf16.msra.mxu0 %v3153
    %3281 = vmatprep.subr.bf16.mxu0 0
    %3282 = vmatpush2.bf16.msra.mxu0 0
    %3283 = vmatprep.subr.bf16.mxu0 0
    %3284 = vmatpush2.bf16.msra.mxu0 0
    %3285 = vmatprep.subr.bf16.mxu0 0
    %3286 = vmatpush2.bf16.msra.mxu0 0
    %3287 = vmatprep.subr.bf16.mxu0 0
    %3288 = vmatpush2.bf16.msra.mxu0 0
    %3289 = vmatprep.subr.bf16.mxu0 0
    %3290 = vmatpush2.bf16.msra.mxu0 0
    %3291 = vmatprep.subr.bf16.mxu0 0
    %3292 = vmatpush2.bf16.msra.mxu0 0
    %3293 = vmatprep.subr.bf16.mxu0 0
    %3294 = vmatpush2.bf16.msra.mxu0 0
    %3295 = vmatprep.subr.bf16.mxu0 0
    %3296 = vmatpush2.bf16.msra.mxu0 0
    %3297 = vmatprep.mubr.bf16.mxu0 0
    %3298 = vmatmul.mubr.bf16.gmra.mxu0 %v2319
    %v3299 = vpop.f32.mrf.mxu0
    %v3300 = vadd.f32 %v2945, %v3299
    %v3301 = vpop.f32.mrf.mxu0
    %v3302 = vadd.f32 %v2949, %v3301
    %v3303 = vpop.f32.mrf.mxu0
    %v3304 = vpop.f32.mrf.mxu0
    %3305 = vdwg.mxu0
    %3306 = vmatprep.subr.bf16.mxu0 %v3205
    %3307 = vmatpush1.bf16.msra.mxu0 %v3204
    %3308 = vmatprep.subr.bf16.mxu0 %v3198
    %3309 = vmatpush1.bf16.msra.mxu0 %v3197
    %3310 = vmatprep.subr.bf16.mxu0 %v3191
    %3311 = vmatpush1.bf16.msra.mxu0 %v3190
    %3312 = vmatprep.subr.bf16.mxu0 %v3184
    %3313 = vmatpush1.bf16.msra.mxu0 %v3183
    %3314 = vmatprep.subr.bf16.mxu0 %v3177
    %3315 = vmatpush1.bf16.msra.mxu0 %v3176
    %3316 = vmatprep.subr.bf16.mxu0 %v3170
    %3317 = vmatpush1.bf16.msra.mxu0 %v3169
    %3318 = vmatprep.subr.bf16.mxu0 %v3163
    %3319 = vmatpush1.bf16.msra.mxu0 %v3162
    %3320 = vmatprep.subr.bf16.mxu0 %v3156
    %3321 = vmatpush1.bf16.msra.mxu0 %v3155
    %3322 = vmatprep.subr.bf16.mxu0 0
    %3323 = vmatpush2.bf16.msra.mxu0 0
    %3324 = vmatprep.subr.bf16.mxu0 0
    %3325 = vmatpush2.bf16.msra.mxu0 0
    %3326 = vmatprep.subr.bf16.mxu0 0
    %3327 = vmatpush2.bf16.msra.mxu0 0
    %3328 = vmatprep.subr.bf16.mxu0 0
    %3329 = vmatpush2.bf16.msra.mxu0 0
    %3330 = vmatprep.subr.bf16.mxu0 0
    %3331 = vmatpush2.bf16.msra.mxu0 0
    %3332 = vmatprep.subr.bf16.mxu0 0
    %3333 = vmatpush2.bf16.msra.mxu0 0
    %3334 = vmatprep.subr.bf16.mxu0 0
    %3335 = vmatpush2.bf16.msra.mxu0 0
    %3336 = vmatprep.subr.bf16.mxu0 0
    %3337 = vmatpush2.bf16.msra.mxu0 0
    %3338 = vmatprep.mubr.bf16.mxu0 0
    %3339 = vmatmul.mubr.bf16.gmra.mxu0 %v2319
    %v3340 = vpop.f32.mrf.mxu0
    %v3341 = vadd.f32 %v2953, %v3340
    %v3342 = vpop.f32.mrf.mxu0
    %v3343 = vadd.f32 %v2957, %v3342
    %v3344 = vpop.f32.mrf.mxu0
    %v3345 = vpop.f32.mrf.mxu0
    %3346 = vdwg.mxu0
    %3347 = vmatprep.subr.bf16.mxu0 %v3207
    %3348 = vmatpush1.bf16.msra.mxu0 %v3206
    %3349 = vmatprep.subr.bf16.mxu0 %v3200
    %3350 = vmatpush1.bf16.msra.mxu0 %v3199
    %3351 = vmatprep.subr.bf16.mxu0 %v3193
    %3352 = vmatpush1.bf16.msra.mxu0 %v3192
    %3353 = vmatprep.subr.bf16.mxu0 %v3186
    %3354 = vmatpush1.bf16.msra.mxu0 %v3185
    %3355 = vmatprep.subr.bf16.mxu0 %v3179
    %3356 = vmatpush1.bf16.msra.mxu0 %v3178
    %3357 = vmatprep.subr.bf16.mxu0 %v3172
    %3358 = vmatpush1.bf16.msra.mxu0 %v3171
    %3359 = vmatprep.subr.bf16.mxu0 %v3165
    %3360 = vmatpush1.bf16.msra.mxu0 %v3164
    %3361 = vmatprep.subr.bf16.mxu0 %v3158
    %3362 = vmatpush1.bf16.msra.mxu0 %v3157
    %3363 = vmatprep.subr.bf16.mxu0 0
    %3364 = vmatpush2.bf16.msra.mxu0 0
    %3365 = vmatprep.subr.bf16.mxu0 0
    %3366 = vmatpush2.bf16.msra.mxu0 0
    %3367 = vmatprep.subr.bf16.mxu0 0
    %3368 = vmatpush2.bf16.msra.mxu0 0
    %3369 = vmatprep.subr.bf16.mxu0 0
    %3370 = vmatpush2.bf16.msra.mxu0 0
    %3371 = vmatprep.subr.bf16.mxu0 0
    %3372 = vmatpush2.bf16.msra.mxu0 0
    %3373 = vmatprep.subr.bf16.mxu0 0
    %3374 = vmatpush2.bf16.msra.mxu0 0
    %3375 = vmatprep.subr.bf16.mxu0 0
    %3376 = vmatpush2.bf16.msra.mxu0 0
    %3377 = vmatprep.subr.bf16.mxu0 0
    %3378 = vmatpush2.bf16.msra.mxu0 0
    %3379 = vmatprep.mubr.bf16.mxu0 0
    %3380 = vmatmul.mubr.bf16.gmra.mxu0 %v2319
    %v3381 = vpop.f32.mrf.mxu0
    %v3382 = vadd.f32 %v2961, %v3381
    %v3383 = vpop.f32.mrf.mxu0
    %v3384 = vadd.f32 %v2965, %v3383
    %v3385 = vpop.f32.mrf.mxu0
    %v3386 = vpop.f32.mrf.mxu0
    %3387 = vdwg.mxu0
    %3388 = vmatprep.subr.bf16.mxu0 0
    %3389 = vmatpush1.bf16.msra.mxu0 %v3208
    %3390 = vmatprep.subr.bf16.mxu0 0
    %3391 = vmatpush1.bf16.msra.mxu0 %v3201
    %3392 = vmatprep.subr.bf16.mxu0 0
    %3393 = vmatpush1.bf16.msra.mxu0 %v3194
    %3394 = vmatprep.subr.bf16.mxu0 0
    %3395 = vmatpush1.bf16.msra.mxu0 %v3187
    %3396 = vmatprep.subr.bf16.mxu0 0
    %3397 = vmatpush1.bf16.msra.mxu0 %v3180
    %3398 = vmatprep.subr.bf16.mxu0 0
    %3399 = vmatpush1.bf16.msra.mxu0 %v3173
    %3400 = vmatprep.subr.bf16.mxu0 0
    %3401 = vmatpush1.bf16.msra.mxu0 %v3166
    %3402 = vmatprep.subr.bf16.mxu0 0
    %3403 = vmatpush1.bf16.msra.mxu0 %v3159
    %3404 = vmatprep.subr.bf16.mxu0 0
    %3405 = vmatpush2.bf16.msra.mxu0 0
    %3406 = vmatprep.subr.bf16.mxu0 0
    %3407 = vmatpush2.bf16.msra.mxu0 0
    %3408 = vmatprep.subr.bf16.mxu0 0
    %3409 = vmatpush2.bf16.msra.mxu0 0
    %3410 = vmatprep.subr.bf16.mxu0 0
    %3411 = vmatpush2.bf16.msra.mxu0 0
    %3412 = vmatprep.subr.bf16.mxu0 0
    %3413 = vmatpush2.bf16.msra.mxu0 0
    %3414 = vmatprep.subr.bf16.mxu0 0
    %3415 = vmatpush2.bf16.msra.mxu0 0
    %3416 = vmatprep.subr.bf16.mxu0 0
    %3417 = vmatpush2.bf16.msra.mxu0 0
    %3418 = vmatprep.subr.bf16.mxu0 0
    %3419 = vmatpush2.bf16.msra.mxu0 0
    %3420 = vmatprep.mubr.bf16.mxu0 0
    %3421 = vmatmul.mubr.bf16.gmra.mxu0 %v2319
    %v3422 = vpop.f32.mrf.mxu0
    %v3423 = vadd.f32 %v2969, %v3422
    %v3424 = vpop.f32.mrf.mxu0
    %v3425 = vpop.f32.mrf.mxu0
    %v3426 = vpop.f32.mrf.mxu0
    %3427 = vdwg.mxu0
    %3428 = vst [vmem:[#allocation15] sm:$0xff] %v3300
    %3429 = vst [vmem:[#allocation15 + $0x8] sm:$0xff] %v3302
    %3430 = vst [vmem:[#allocation15 + $0x10] sm:$0xff] %v3341
    %3431 = vst [vmem:[#allocation15 + $0x18] sm:$0xff] %v3343
    %3432 = vst [vmem:[#allocation15 + $0x20] sm:$0xff] %v3382
    %3433 = vst [vmem:[#allocation15 + $0x28] sm:$0xff] %v3384
    %3434 = vst [vmem:[#allocation15 + $0x30] sm:$0xff] %v3423
    // Predicated region
    $region70: #{tpu_custom_call.1} parent=1 // pred_check
      _
    $region71: #{tpu_custom_call.1} parent=1 // pred_check_branch
      %3436 = sbr.rel (0) target = $region73
    $region72: #{tpu_custom_call.1} parent=1 // pred_region
      %s3438 = ssub.s32 128, 128
      %3439 = vsyncadd [#allocation5], %s3438
      %s3441 = sshll.u32 [#allocation12], 4
      %s3442 = int_to_ptr.vmem [resolvable:$true] %s3441
      %3444 = dma.vmem_to_hbm [thread:$0]  %s3442, 128, %s11, [#allocation5]
    $region73: #{tpu_custom_call.1} parent=1 // pred_fallthru
      _
    // Predicated region
    $region74: #{tpu_custom_call.1} parent=1 // pred_check
      _
    $region75: #{tpu_custom_call.1} parent=1 // pred_check_branch
      %3446 = sbr.rel (0) target = $region77
    $region76: #{tpu_custom_call.1} parent=1 // pred_region
      %s3448 = ssub.s32 1792, 1792
      %3449 = vsyncadd [#allocation14], %s3448
      %s3450 = sshll.u32 [#allocation13], 4
      %s3451 = int_to_ptr.vmem [resolvable:$true] %s3450
      %3456 = dma.vmem_to_hbm [thread:$0]  %s3451, 1792, %s12, [#allocation14], 896, 896, 56
    $region77: #{tpu_custom_call.1} parent=1 // pred_fallthru
      _
    // Predicated region
    $region78: #{tpu_custom_call.1} parent=1 // pred_check
      _
    $region79: #{tpu_custom_call.1} parent=1 // pred_check_branch
      %3458 = sbr.rel (0) target = $region81
    $region80: #{tpu_custom_call.1} parent=1 // pred_region
      %s3460 = ssub.s32 896, 896
      %3461 = vsyncadd [#allocation14], %s3460
      %s3463 = sshll.u32 [#allocation15], 4
      %s3464 = int_to_ptr.vmem [resolvable:$true] %s3463
      %3466 = dma.vmem_to_hbm [thread:$0]  %s3464, 896, %s13, [#allocation14]
    $region81: #{tpu_custom_call.1} parent=1 // pred_fallthru
      _
    // Predicated region
    $region82: #{tpu_custom_call.1} parent=1 // pred_check
      _
    $region83: #{tpu_custom_call.1} parent=1 // pred_check_branch
      %3468 = sbr.rel (0) target = $region85
    $region84: #{tpu_custom_call.1} parent=1 // pred_region
      %3469 = dma.done [#allocation5], 128
    $region85: #{tpu_custom_call.1} parent=1 // pred_fallthru
      _
    // Predicated region
    $region86: #{tpu_custom_call.1} parent=1 // pred_check
      _
    $region87: #{tpu_custom_call.1} parent=1 // pred_check_branch
      %3471 = sbr.rel (0) target = $region89
    $region88: #{tpu_custom_call.1} parent=1 // pred_region
      %3472 = dma.done [#allocation14], 1792
    $region89: #{tpu_custom_call.1} parent=1 // pred_fallthru
      _
    // Predicated region
    $region90: #{tpu_custom_call.1} parent=1 // pred_check
      _
    $region91: #{tpu_custom_call.1} parent=1 // pred_check_branch
      %3474 = sbr.rel (0) target = $region93
    $region92: #{tpu_custom_call.1} parent=1 // pred_region
      %3475 = dma.done [#allocation14], 896
    $region93: #{tpu_custom_call.1} parent=1 // pred_fallthru
      _
    %3476 = vsyncpa [#allocation4], 1
    %3477 = vsyncpa [#allocation7], 1
    %3478 = vsyncpa [#allocation10], 1
    %3479 = vsyncpa [#allocation5], 1
    %3480 = vsyncpa [#allocation14], 1

</llo_original>
